<compile_context>
chip_gen: v5e
topology: v5e:2x2
jax: 0.10.0
libtpu: 0.0.40
codegen_flags: <defaults>
</compile_context>

<pallas_src>
import numpy as np
import jax
import jax.numpy as jnp
from jax import lax
from jax.experimental import pallas as pl
from jax.experimental.pallas import tpu as pltpu

K = 5            # conv kernel size (both convs)
C1 = 10          # conv1 out channels
C2 = 20          # conv2 out channels
P1_HW = 12       # spatial after conv1 + 2x2 pool
S1 = P1_HW * P1_HW          # 144
P2_HW = 4        # spatial after conv2 + 2x2 pool
S2 = P2_HW * P2_HW          # 16
NPH = 4          # 2x2 pooling phases
T2 = K * K       # 25 conv2 taps


# ---------------------------------------------------------------------------
# Constant selection matrix: flat h1 spatial (144) -> conv2 im2col columns
# ordered (tap, phase, pooled position)  -> shape (144, 25*4*16) = (144, 1600)
# ---------------------------------------------------------------------------
def _make_g2():
    g = np.zeros((S1, T2 * NPH * S2), np.float32)
    for ki in range(K):
        for kj in range(K):
            t = ki * K + kj
            for di in range(2):
                for dj in range(2):
                    p = di * 2 + dj
                    for u in range(P2_HW):
                        for v in range(P2_HW):
                            s1 = (2 * u + di + ki) * P1_HW + (2 * v + dj + kj)
                            col = t * (NPH * S2) + p * S2 + (u * P2_HW + v)
                            g[s1, col] = 1.0
    return jnp.asarray(g)


# ---------------------------------------------------------------------------
# Param prep (hoisted out of the jitted forward; runs once)
# ---------------------------------------------------------------------------
def prepare_params(params):
    return {
        "w1": params["cw1"].reshape(C1, K * K),                              # (10, 25)
        "b1": params["cb1"].reshape(C1, 1),                                  # (10, 1)
        "w2": jnp.transpose(params["cw2"], (2, 3, 0, 1)).reshape(T2, C2, C1),# (25,20,10)
        "b2": params["cb2"].reshape(C2, 1),                                  # (20, 1)
        "fw1": params["fw1"].T,                                              # (320, 50)
        "fb1": params["fb1"].reshape(1, -1),                                 # (1, 50)
        "fw2": params["fw2"].T,                                              # (50, 10)
        "fb2": params["fb2"].reshape(1, -1),                                 # (1, 10)
        "g2": _make_g2(),                                                    # (144, 1600)
    }


# ---------------------------------------------------------------------------
# Glue: polyphase im2col for conv1 only (pure layout on the raw 28x28 input)
#   -> (25, 4*B*144), columns ordered (phase, batch, pooled spatial)
# ---------------------------------------------------------------------------
def _im2col_phases_conv1(x):
    B = x.shape[0]
    phases = []
    for di in range(2):
        for dj in range(2):
            patches = jnp.stack(
                [jnp.stack(
                    [x[:, 0,
                       di + ki: di + ki + 2 * P1_HW: 2,
                       dj + kj: dj + kj + 2 * P1_HW: 2] for kj in range(K)],
                    axis=1) for ki in range(K)],
                axis=1)                                  # (B, K, K, 12, 12)
            phases.append(patches.reshape(B, K * K, S1)) # tap order (ki, kj)
    cols = jnp.stack(phases, axis=0)                     # (4, B, 25, 144)
    return jnp.transpose(cols, (2, 0, 1, 3)).reshape(K * K, NPH * B * S1)


# ---------------------------------------------------------------------------
# The fused kernel
# ---------------------------------------------------------------------------
def _cnn_soft_kernel(cols1_ref, w1_ref, b1_ref, g2_ref, w2_ref, b2_ref,
                     fw1_ref, fb1_ref, fw2_ref, fb2_ref, o_ref,
                     r1_s, c2_s, p2_s, h2_s, flat_s):
    B = o_ref.shape[0]

    # ---- conv1 (+bias): one wide matmul, phases & batch folded into N = 4*B*144
    r1_s[...] = (jnp.dot(w1_ref[...], cols1_ref[...],
                         preferred_element_type=jnp.float32) + b1_ref[...])

    g2 = g2_ref[...]
    for b in range(B):
        # ---- 2x2 max-pool over the 4 phase blocks + ReLU  -> h1_b: (10, 144)
        base = b * S1
        h1_b = r1_s[:, base:base + S1]
        for p in range(1, NPH):
            off = p * B * S1 + base
            h1_b = jnp.maximum(h1_b, r1_s[:, off:off + S1])
        h1_b = jnp.maximum(h1_b, 0.0)

        # ---- conv2 im2col in-kernel: one wide selection matmul -> (10, 1600)
        c2_s[...] = jnp.dot(h1_b, g2, preferred_element_type=jnp.float32)

        # ---- conv2 channel contraction on the MXU, accumulated over 25 taps
        acc = jnp.broadcast_to(b2_ref[...], (C2, NPH * S2))     # bias pre-pool
        for t in range(T2):
            acc = acc + jnp.dot(w2_ref[t],
                                c2_s[:, t * NPH * S2:(t + 1) * NPH * S2],
                                preferred_element_type=jnp.float32)
        p2_s[...] = acc                                         # (20, 64) = (c2, phase*16+s2)

        # ---- 2x2 max-pool over phases + ReLU -> h2: (20, 16)
        h2 = p2_s[:, 0:S2]
        for p in range(1, NPH):
            h2 = jnp.maximum(h2, p2_s[:, p * S2:(p + 1) * S2])
        h2_s[...] = jnp.maximum(h2, 0.0)

        # ---- channel-major flatten into the lane-dense (B, 320) slab (== torch view(-1,320))
        for c in range(C2):
            flat_s[b:b + 1, c * S2:(c + 1) * S2] = h2_s[c:c + 1, :]

    # ---- fc1 -> relu -> (dropout: identity) -> fc2 -> softmax -> log_softmax
    flat = flat_s[...]                                          # (B, 320)
    h = jnp.dot(flat, fw1_ref[...], preferred_element_type=jnp.float32) + fb1_ref[...]
    h = jnp.maximum(h, 0.0)
    logits = jnp.dot(h, fw2_ref[...], preferred_element_type=jnp.float32) + fb2_ref[...]

    m = jnp.max(logits, axis=1, keepdims=True)
    e = jnp.exp(logits - m)
    y = e * pl.reciprocal(jnp.sum(e, axis=1, keepdims=True), approx=True)   # softmax
    m2 = jnp.max(y, axis=1, keepdims=True)                                  # log_softmax(y)
    e2 = jnp.exp(y - m2)
    o_ref[...] = (y - m2) - jnp.log(jnp.sum(e2, axis=1, keepdims=True))


# ---------------------------------------------------------------------------
# Wrapper
# ---------------------------------------------------------------------------
def cnn_soft_forward(x, kp):
    """x: (B, 1, 28, 28) float32 -> (B, 10) log_softmax(softmax(logits))."""
    B = x.shape[0]
    cols1 = _im2col_phases_conv1(x)                      # (25, 4*B*144)
    return pl.pallas_call(
        _cnn_soft_kernel,
        out_shape=jax.ShapeDtypeStruct((B, 10), jnp.float32),
        scratch_shapes=[
            pltpu.VMEM((C1, NPH * B * S1), jnp.float32),   # conv1 result (10, 4*B*144)
            pltpu.VMEM((C1, T2 * NPH * S2), jnp.float32),  # conv2 im2col  (10, 1600)
            pltpu.VMEM((C2, NPH * S2), jnp.float32),       # conv2 pre-pool (20, 64)
            pltpu.VMEM((C2, S2), jnp.float32),             # conv2 pooled   (20, 16)
            pltpu.VMEM((B, C2 * S2), jnp.float32),         # flat slab      (B, 320)
        ],
    )(cols1, kp["w1"], kp["b1"], kp["g2"], kp["w2"], kp["b2"],
      kp["fw1"], kp["fb1"], kp["fw2"], kp["fb2"])


# ---------------------------------------------------------------------------
# Pure-JAX reference (independent path: lax.conv / reduce_window)
# ---------------------------------------------------------------------------
def _reference(x, p):
    def conv2d(h, w, b):
        out = lax.conv_general_dilated(h, w, (1, 1), "VALID",
                                       dimension_numbers=("NCHW", "OIHW", "NCHW"))
        return out + b[None, :, None, None]

    def maxpool2(h):
        return lax.reduce_window(h, -jnp.inf, lax.max, (1, 1, 2, 2), (1, 1, 2, 2), "VALID")

    h = jax.nn.relu(maxpool2(conv2d(x, p["cw1"], p["cb1"])))
    h = jax.nn.relu(maxpool2(conv2d(h, p["cw2"], p["cb2"])))
    h = h.reshape(h.shape[0], -1)
    h = jax.nn.relu(h @ p["fw1"].T + p["fb1"])
    logits = h @ p["fw2"].T + p["fb2"]
    y = jax.nn.softmax(logits, axis=1)
    return jax.nn.log_softmax(y, axis=1)


# ---------------------------------------------------------------------------
def _init_params(key):
    ks = jax.random.split(key, 8)
    f32 = jnp.float32
    return {
        "cw1": 0.20 * jax.random.normal(ks[0], (10, 1, 5, 5), f32),
        "cb1": 0.10 * jax.random.normal(ks[1], (10,), f32),
        "cw2": 0.06 * jax.random.normal(ks[2], (20, 10, 5, 5), f32),
        "cb2": 0.10 * jax.random.normal(ks[3], (20,), f32),
        "fw1": 0.06 * jax.random.normal(ks[4], (50, 320), f32),   # torch Linear: (out, in)
        "fb1": 0.10 * jax.random.normal(ks[5], (50,), f32),
        "fw2": 0.15 * jax.random.normal(ks[6], (10, 50), f32),
        "fb2": 0.10 * jax.random.normal(ks[7], (10,), f32),
    }


if __name__ == "__main__":
    key = jax.random.PRNGKey(0)
    pkey, xkey = jax.random.split(key)
    params = _init_params(pkey)
    kparams = prepare_params(params)                  # hoisted, runs once
    x = jax.random.normal(xkey, (2, 1, 28, 28), jnp.float32)

    fwd = jax.jit(cnn_soft_forward)
    out = jax.block_until_ready(fwd(x, kparams))

    ref = jax.block_until_ready(_reference(x, params))
    err = float(jnp.max(jnp.abs(out - ref)))
    assert out.shape == (2, 10), out.shape
    assert err < 1e-2, f"mismatch vs reference: max abs err {err}"

    print("KERNEL_OK")
</pallas_src>

<mosaic_0001>
module attributes {stable_mosaic.version = 11 : i64} {
  func.func @_cnn_soft_kernel(%arg0: memref<25x1152xf32, #tpu.memory_space<vmem>>, %arg1: memref<10x25xf32, #tpu.memory_space<vmem>>, %arg2: memref<10x1xf32, #tpu.memory_space<vmem>>, %arg3: memref<144x1600xf32, #tpu.memory_space<vmem>>, %arg4: memref<25x20x10xf32, #tpu.memory_space<vmem>>, %arg5: memref<20x1xf32, #tpu.memory_space<vmem>>, %arg6: memref<320x50xf32, #tpu.memory_space<vmem>>, %arg7: memref<1x50xf32, #tpu.memory_space<vmem>>, %arg8: memref<50x10xf32, #tpu.memory_space<vmem>>, %arg9: memref<1x10xf32, #tpu.memory_space<vmem>>, %arg10: memref<2x10xf32, #tpu.memory_space<vmem>>, %arg11: memref<10x1152xf32, #tpu.memory_space<vmem>>, %arg12: memref<10x1600xf32, #tpu.memory_space<vmem>>, %arg13: memref<20x64xf32, #tpu.memory_space<vmem>>, %arg14: memref<20x16xf32, #tpu.memory_space<vmem>>, %arg15: memref<2x320xf32, #tpu.memory_space<vmem>>) attributes {dimension_semantics = [], scalar_prefetch = 0 : i64, scratch_operands = 5 : i64, tpu.core_type = #tpu.core_type<tc>} {
    %c0 = arith.constant 0 : index
    %c0_0 = arith.constant 0 : index
    %0 = vector.load %arg1[%c0, %c0_0] : memref<10x25xf32, #tpu.memory_space<vmem>>, vector<10x25xf32>
    %c0_1 = arith.constant 0 : index
    %c0_2 = arith.constant 0 : index
    %1 = vector.load %arg0[%c0_1, %c0_2] : memref<25x1152xf32, #tpu.memory_space<vmem>>, vector<25x1152xf32>
    %cst = arith.constant dense<0.000000e+00> : vector<10x1152xf32>
    %2 = tpu.matmul %0, %1, %cst {dimension_numbers = #tpu.dot_dimension_numbers<[1], [0], [0], [1], [0, 0, 1, 1], [], []>} : vector<10x25xf32>, vector<25x1152xf32>, vector<10x1152xf32> -> vector<10x1152xf32>
    %c0_3 = arith.constant 0 : index
    %c0_4 = arith.constant 0 : index
    %3 = vector.load %arg2[%c0_3, %c0_4] : memref<10x1xf32, #tpu.memory_space<vmem>>, vector<10x1xf32>
    %4 = vector.broadcast %3 : vector<10x1xf32> to vector<10x1152xf32>
    %5 = arith.addf %2, %4 : vector<10x1152xf32>
    %c0_5 = arith.constant 0 : index
    %c0_6 = arith.constant 0 : index
    %6 = vector.load %arg11[%c0_5, %c0_6] : memref<10x1152xf32, #tpu.memory_space<vmem>>, vector<10x1152xf32>
    tpu.vector_store %arg11[%c0_5, %c0_6], %5 {strides = array<i32>} : memref<10x1152xf32, #tpu.memory_space<vmem>>, vector<10x1152xf32>,
    %c0_7 = arith.constant 0 : index
    %c0_8 = arith.constant 0 : index
    %7 = vector.load %arg3[%c0_7, %c0_8] : memref<144x1600xf32, #tpu.memory_space<vmem>>, vector<144x1600xf32>
    %c0_9 = arith.constant 0 : index
    %c0_10 = arith.constant 0 : index
    %8 = vector.load %arg11[%c0_9, %c0_10] : memref<10x1152xf32, #tpu.memory_space<vmem>>, vector<10x144xf32>
    %c0_11 = arith.constant 0 : index
    %c288 = arith.constant 288 : index
    %9 = vector.load %arg11[%c0_11, %c288] : memref<10x1152xf32, #tpu.memory_space<vmem>>, vector<10x144xf32>
    %10 = arith.maximumf %8, %9 : vector<10x144xf32>
    %c0_12 = arith.constant 0 : index
    %c576 = arith.constant 576 : index
    %11 = vector.load %arg11[%c0_12, %c576] : memref<10x1152xf32, #tpu.memory_space<vmem>>, vector<10x144xf32>
    %12 = arith.maximumf %10, %11 : vector<10x144xf32>
    %c0_13 = arith.constant 0 : index
    %c864 = arith.constant 864 : index
    %13 = vector.load %arg11[%c0_13, %c864] : memref<10x1152xf32, #tpu.memory_space<vmem>>, vector<10x144xf32>
    %14 = arith.maximumf %12, %13 : vector<10x144xf32>
    %cst_14 = arith.constant 0.000000e+00 : f32
    %15 = vector.broadcast %cst_14 : f32 to vector<10x144xf32>
    %16 = arith.maximumf %14, %15 : vector<10x144xf32>
    %cst_15 = arith.constant dense<0.000000e+00> : vector<10x1600xf32>
    %17 = tpu.matmul %16, %7, %cst_15 {dimension_numbers = #tpu.dot_dimension_numbers<[1], [0], [0], [1], [0, 0, 1, 1], [], []>} : vector<10x144xf32>, vector<144x1600xf32>, vector<10x1600xf32> -> vector<10x1600xf32>
    %c0_16 = arith.constant 0 : index
    %c0_17 = arith.constant 0 : index
    %18 = vector.load %arg12[%c0_16, %c0_17] : memref<10x1600xf32, #tpu.memory_space<vmem>>, vector<10x1600xf32>
    tpu.vector_store %arg12[%c0_16, %c0_17], %17 {strides = array<i32>} : memref<10x1600xf32, #tpu.memory_space<vmem>>, vector<10x1600xf32>,
    %c0_18 = arith.constant 0 : index
    %c0_19 = arith.constant 0 : index
    %19 = vector.load %arg5[%c0_18, %c0_19] : memref<20x1xf32, #tpu.memory_space<vmem>>, vector<20x1xf32>
    %20 = vector.shape_cast %19 : vector<20x1xf32> to vector<20x1xf32>
    %21 = vector.broadcast %20 : vector<20x1xf32> to vector<20x64xf32>
    %c0_20 = arith.constant 0 : index
    %c0_21 = arith.constant 0 : index
    %c0_22 = arith.constant 0 : index
    %22 = vector.load %arg4[%c0_20, %c0_21, %c0_22] : memref<25x20x10xf32, #tpu.memory_space<vmem>>, vector<1x20x10xf32>
    %23 = vector.shape_cast %22 : vector<1x20x10xf32> to vector<20x10xf32>
    %c0_23 = arith.constant 0 : index
    %c0_24 = arith.constant 0 : index
    %24 = vector.load %arg12[%c0_23, %c0_24] : memref<10x1600xf32, #tpu.memory_space<vmem>>, vector<10x64xf32>
    %cst_25 = arith.constant dense<0.000000e+00> : vector<20x64xf32>
    %25 = tpu.matmul %23, %24, %cst_25 {dimension_numbers = #tpu.dot_dimension_numbers<[1], [0], [0], [1], [0, 0, 1, 1], [], []>} : vector<20x10xf32>, vector<10x64xf32>, vector<20x64xf32> -> vector<20x64xf32>
    %26 = arith.addf %21, %25 : vector<20x64xf32>
    %c1 = arith.constant 1 : index
    %c0_26 = arith.constant 0 : index
    %c0_27 = arith.constant 0 : index
    %27 = vector.load %arg4[%c1, %c0_26, %c0_27] : memref<25x20x10xf32, #tpu.memory_space<vmem>>, vector<1x20x10xf32>
    %28 = vector.shape_cast %27 : vector<1x20x10xf32> to vector<20x10xf32>
    %c0_28 = arith.constant 0 : index
    %c64 = arith.constant 64 : index
    %29 = vector.load %arg12[%c0_28, %c64] : memref<10x1600xf32, #tpu.memory_space<vmem>>, vector<10x64xf32>
    %cst_29 = arith.constant dense<0.000000e+00> : vector<20x64xf32>
    %30 = tpu.matmul %28, %29, %cst_29 {dimension_numbers = #tpu.dot_dimension_numbers<[1], [0], [0], [1], [0, 0, 1, 1], [], []>} : vector<20x10xf32>, vector<10x64xf32>, vector<20x64xf32> -> vector<20x64xf32>
    %31 = arith.addf %26, %30 : vector<20x64xf32>
    %c2 = arith.constant 2 : index
    %c0_30 = arith.constant 0 : index
    %c0_31 = arith.constant 0 : index
    %32 = vector.load %arg4[%c2, %c0_30, %c0_31] : memref<25x20x10xf32, #tpu.memory_space<vmem>>, vector<1x20x10xf32>
    %33 = vector.shape_cast %32 : vector<1x20x10xf32> to vector<20x10xf32>
    %c0_32 = arith.constant 0 : index
    %c128 = arith.constant 128 : index
    %34 = vector.load %arg12[%c0_32, %c128] : memref<10x1600xf32, #tpu.memory_space<vmem>>, vector<10x64xf32>
    %cst_33 = arith.constant dense<0.000000e+00> : vector<20x64xf32>
    %35 = tpu.matmul %33, %34, %cst_33 {dimension_numbers = #tpu.dot_dimension_numbers<[1], [0], [0], [1], [0, 0, 1, 1], [], []>} : vector<20x10xf32>, vector<10x64xf32>, vector<20x64xf32> -> vector<20x64xf32>
    %36 = arith.addf %31, %35 : vector<20x64xf32>
    %c3 = arith.constant 3 : index
    %c0_34 = arith.constant 0 : index
    %c0_35 = arith.constant 0 : index
    %37 = vector.load %arg4[%c3, %c0_34, %c0_35] : memref<25x20x10xf32, #tpu.memory_space<vmem>>, vector<1x20x10xf32>
    %38 = vector.shape_cast %37 : vector<1x20x10xf32> to vector<20x10xf32>
    %c0_36 = arith.constant 0 : index
    %c192 = arith.constant 192 : index
    %39 = vector.load %arg12[%c0_36, %c192] : memref<10x1600xf32, #tpu.memory_space<vmem>>, vector<10x64xf32>
    %cst_37 = arith.constant dense<0.000000e+00> : vector<20x64xf32>
    %40 = tpu.matmul %38, %39, %cst_37 {dimension_numbers = #tpu.dot_dimension_numbers<[1], [0], [0], [1], [0, 0, 1, 1], [], []>} : vector<20x10xf32>, vector<10x64xf32>, vector<20x64xf32> -> vector<20x64xf32>
    %41 = arith.addf %36, %40 : vector<20x64xf32>
    %c4 = arith.constant 4 : index
    %c0_38 = arith.constant 0 : index
    %c0_39 = arith.constant 0 : index
    %42 = vector.load %arg4[%c4, %c0_38, %c0_39] : memref<25x20x10xf32, #tpu.memory_space<vmem>>, vector<1x20x10xf32>
    %43 = vector.shape_cast %42 : vector<1x20x10xf32> to vector<20x10xf32>
    %c0_40 = arith.constant 0 : index
    %c256 = arith.constant 256 : index
    %44 = vector.load %arg12[%c0_40, %c256] : memref<10x1600xf32, #tpu.memory_space<vmem>>, vector<10x64xf32>
    %cst_41 = arith.constant dense<0.000000e+00> : vector<20x64xf32>
    %45 = tpu.matmul %43, %44, %cst_41 {dimension_numbers = #tpu.dot_dimension_numbers<[1], [0], [0], [1], [0, 0, 1, 1], [], []>} : vector<20x10xf32>, vector<10x64xf32>, vector<20x64xf32> -> vector<20x64xf32>
    %46 = arith.addf %41, %45 : vector<20x64xf32>
    %c5 = arith.constant 5 : index
    %c0_42 = arith.constant 0 : index
    %c0_43 = arith.constant 0 : index
    %47 = vector.load %arg4[%c5, %c0_42, %c0_43] : memref<25x20x10xf32, #tpu.memory_space<vmem>>, vector<1x20x10xf32>
    %48 = vector.shape_cast %47 : vector<1x20x10xf32> to vector<20x10xf32>
    %c0_44 = arith.constant 0 : index
    %c320 = arith.constant 320 : index
    %49 = vector.load %arg12[%c0_44, %c320] : memref<10x1600xf32, #tpu.memory_space<vmem>>, vector<10x64xf32>
    %cst_45 = arith.constant dense<0.000000e+00> : vector<20x64xf32>
    %50 = tpu.matmul %48, %49, %cst_45 {dimension_numbers = #tpu.dot_dimension_numbers<[1], [0], [0], [1], [0, 0, 1, 1], [], []>} : vector<20x10xf32>, vector<10x64xf32>, vector<20x64xf32> -> vector<20x64xf32>
    %51 = arith.addf %46, %50 : vector<20x64xf32>
    %c6 = arith.constant 6 : index
    %c0_46 = arith.constant 0 : index
    %c0_47 = arith.constant 0 : index
    %52 = vector.load %arg4[%c6, %c0_46, %c0_47] : memref<25x20x10xf32, #tpu.memory_space<vmem>>, vector<1x20x10xf32>
    %53 = vector.shape_cast %52 : vector<1x20x10xf32> to vector<20x10xf32>
    %c0_48 = arith.constant 0 : index
    %c384 = arith.constant 384 : index
    %54 = vector.load %arg12[%c0_48, %c384] : memref<10x1600xf32, #tpu.memory_space<vmem>>, vector<10x64xf32>
    %cst_49 = arith.constant dense<0.000000e+00> : vector<20x64xf32>
    %55 = tpu.matmul %53, %54, %cst_49 {dimension_numbers = #tpu.dot_dimension_numbers<[1], [0], [0], [1], [0, 0, 1, 1], [], []>} : vector<20x10xf32>, vector<10x64xf32>, vector<20x64xf32> -> vector<20x64xf32>
    %56 = arith.addf %51, %55 : vector<20x64xf32>
    %c7 = arith.constant 7 : index
    %c0_50 = arith.constant 0 : index
    %c0_51 = arith.constant 0 : index
    %57 = vector.load %arg4[%c7, %c0_50, %c0_51] : memref<25x20x10xf32, #tpu.memory_space<vmem>>, vector<1x20x10xf32>
    %58 = vector.shape_cast %57 : vector<1x20x10xf32> to vector<20x10xf32>
    %c0_52 = arith.constant 0 : index
    %c448 = arith.constant 448 : index
    %59 = vector.load %arg12[%c0_52, %c448] : memref<10x1600xf32, #tpu.memory_space<vmem>>, vector<10x64xf32>
    %cst_53 = arith.constant dense<0.000000e+00> : vector<20x64xf32>
    %60 = tpu.matmul %58, %59, %cst_53 {dimension_numbers = #tpu.dot_dimension_numbers<[1], [0], [0], [1], [0, 0, 1, 1], [], []>} : vector<20x10xf32>, vector<10x64xf32>, vector<20x64xf32> -> vector<20x64xf32>
    %61 = arith.addf %56, %60 : vector<20x64xf32>
    %c8 = arith.constant 8 : index
    %c0_54 = arith.constant 0 : index
    %c0_55 = arith.constant 0 : index
    %62 = vector.load %arg4[%c8, %c0_54, %c0_55] : memref<25x20x10xf32, #tpu.memory_space<vmem>>, vector<1x20x10xf32>
    %63 = vector.shape_cast %62 : vector<1x20x10xf32> to vector<20x10xf32>
    %c0_56 = arith.constant 0 : index
    %c512 = arith.constant 512 : index
    %64 = vector.load %arg12[%c0_56, %c512] : memref<10x1600xf32, #tpu.memory_space<vmem>>, vector<10x64xf32>
    %cst_57 = arith.constant dense<0.000000e+00> : vector<20x64xf32>
    %65 = tpu.matmul %63, %64, %cst_57 {dimension_numbers = #tpu.dot_dimension_numbers<[1], [0], [0], [1], [0, 0, 1, 1], [], []>} : vector<20x10xf32>, vector<10x64xf32>, vector<20x64xf32> -> vector<20x64xf32>
    %66 = arith.addf %61, %65 : vector<20x64xf32>
    %c9 = arith.constant 9 : index
    %c0_58 = arith.constant 0 : index
    %c0_59 = arith.constant 0 : index
    %67 = vector.load %arg4[%c9, %c0_58, %c0_59] : memref<25x20x10xf32, #tpu.memory_space<vmem>>, vector<1x20x10xf32>
    %68 = vector.shape_cast %67 : vector<1x20x10xf32> to vector<20x10xf32>
    %c0_60 = arith.constant 0 : index
    %c576_61 = arith.constant 576 : index
    %69 = vector.load %arg12[%c0_60, %c576_61] : memref<10x1600xf32, #tpu.memory_space<vmem>>, vector<10x64xf32>
    %cst_62 = arith.constant dense<0.000000e+00> : vector<20x64xf32>
    %70 = tpu.matmul %68, %69, %cst_62 {dimension_numbers = #tpu.dot_dimension_numbers<[1], [0], [0], [1], [0, 0, 1, 1], [], []>} : vector<20x10xf32>, vector<10x64xf32>, vector<20x64xf32> -> vector<20x64xf32>
    %71 = arith.addf %66, %70 : vector<20x64xf32>
    %c10 = arith.constant 10 : index
    %c0_63 = arith.constant 0 : index
    %c0_64 = arith.constant 0 : index
    %72 = vector.load %arg4[%c10, %c0_63, %c0_64] : memref<25x20x10xf32, #tpu.memory_space<vmem>>, vector<1x20x10xf32>
    %73 = vector.shape_cast %72 : vector<1x20x10xf32> to vector<20x10xf32>
    %c0_65 = arith.constant 0 : index
    %c640 = arith.constant 640 : index
    %74 = vector.load %arg12[%c0_65, %c640] : memref<10x1600xf32, #tpu.memory_space<vmem>>, vector<10x64xf32>
    %cst_66 = arith.constant dense<0.000000e+00> : vector<20x64xf32>
    %75 = tpu.matmul %73, %74, %cst_66 {dimension_numbers = #tpu.dot_dimension_numbers<[1], [0], [0], [1], [0, 0, 1, 1], [], []>} : vector<20x10xf32>, vector<10x64xf32>, vector<20x64xf32> -> vector<20x64xf32>
    %76 = arith.addf %71, %75 : vector<20x64xf32>
    %c11 = arith.constant 11 : index
    %c0_67 = arith.constant 0 : index
    %c0_68 = arith.constant 0 : index
    %77 = vector.load %arg4[%c11, %c0_67, %c0_68] : memref<25x20x10xf32, #tpu.memory_space<vmem>>, vector<1x20x10xf32>
    %78 = vector.shape_cast %77 : vector<1x20x10xf32> to vector<20x10xf32>
    %c0_69 = arith.constant 0 : index
    %c704 = arith.constant 704 : index
    %79 = vector.load %arg12[%c0_69, %c704] : memref<10x1600xf32, #tpu.memory_space<vmem>>, vector<10x64xf32>
    %cst_70 = arith.constant dense<0.000000e+00> : vector<20x64xf32>
    %80 = tpu.matmul %78, %79, %cst_70 {dimension_numbers = #tpu.dot_dimension_numbers<[1], [0], [0], [1], [0, 0, 1, 1], [], []>} : vector<20x10xf32>, vector<10x64xf32>, vector<20x64xf32> -> vector<20x64xf32>
    %81 = arith.addf %76, %80 : vector<20x64xf32>
    %c12 = arith.constant 12 : index
    %c0_71 = arith.constant 0 : index
    %c0_72 = arith.constant 0 : index
    %82 = vector.load %arg4[%c12, %c0_71, %c0_72] : memref<25x20x10xf32, #tpu.memory_space<vmem>>, vector<1x20x10xf32>
    %83 = vector.shape_cast %82 : vector<1x20x10xf32> to vector<20x10xf32>
    %c0_73 = arith.constant 0 : index
    %c768 = arith.constant 768 : index
    %84 = vector.load %arg12[%c0_73, %c768] : memref<10x1600xf32, #tpu.memory_space<vmem>>, vector<10x64xf32>
    %cst_74 = arith.constant dense<0.000000e+00> : vector<20x64xf32>
    %85 = tpu.matmul %83, %84, %cst_74 {dimension_numbers = #tpu.dot_dimension_numbers<[1], [0], [0], [1], [0, 0, 1, 1], [], []>} : vector<20x10xf32>, vector<10x64xf32>, vector<20x64xf32> -> vector<20x64xf32>
    %86 = arith.addf %81, %85 : vector<20x64xf32>
    %c13 = arith.constant 13 : index
    %c0_75 = arith.constant 0 : index
    %c0_76 = arith.constant 0 : index
    %87 = vector.load %arg4[%c13, %c0_75, %c0_76] : memref<25x20x10xf32, #tpu.memory_space<vmem>>, vector<1x20x10xf32>
    %88 = vector.shape_cast %87 : vector<1x20x10xf32> to vector<20x10xf32>
    %c0_77 = arith.constant 0 : index
    %c832 = arith.constant 832 : index
    %89 = vector.load %arg12[%c0_77, %c832] : memref<10x1600xf32, #tpu.memory_space<vmem>>, vector<10x64xf32>
    %cst_78 = arith.constant dense<0.000000e+00> : vector<20x64xf32>
    %90 = tpu.matmul %88, %89, %cst_78 {dimension_numbers = #tpu.dot_dimension_numbers<[1], [0], [0], [1], [0, 0, 1, 1], [], []>} : vector<20x10xf32>, vector<10x64xf32>, vector<20x64xf32> -> vector<20x64xf32>
    %91 = arith.addf %86, %90 : vector<20x64xf32>
    %c14 = arith.constant 14 : index
    %c0_79 = arith.constant 0 : index
    %c0_80 = arith.constant 0 : index
    %92 = vector.load %arg4[%c14, %c0_79, %c0_80] : memref<25x20x10xf32, #tpu.memory_space<vmem>>, vector<1x20x10xf32>
    %93 = vector.shape_cast %92 : vector<1x20x10xf32> to vector<20x10xf32>
    %c0_81 = arith.constant 0 : index
    %c896 = arith.constant 896 : index
    %94 = vector.load %arg12[%c0_81, %c896] : memref<10x1600xf32, #tpu.memory_space<vmem>>, vector<10x64xf32>
    %cst_82 = arith.constant dense<0.000000e+00> : vector<20x64xf32>
    %95 = tpu.matmul %93, %94, %cst_82 {dimension_numbers = #tpu.dot_dimension_numbers<[1], [0], [0], [1], [0, 0, 1, 1], [], []>} : vector<20x10xf32>, vector<10x64xf32>, vector<20x64xf32> -> vector<20x64xf32>
    %96 = arith.addf %91, %95 : vector<20x64xf32>
    %c15 = arith.constant 15 : index
    %c0_83 = arith.constant 0 : index
    %c0_84 = arith.constant 0 : index
    %97 = vector.load %arg4[%c15, %c0_83, %c0_84] : memref<25x20x10xf32, #tpu.memory_space<vmem>>, vector<1x20x10xf32>
    %98 = vector.shape_cast %97 : vector<1x20x10xf32> to vector<20x10xf32>
    %c0_85 = arith.constant 0 : index
    %c960 = arith.constant 960 : index
    %99 = vector.load %arg12[%c0_85, %c960] : memref<10x1600xf32, #tpu.memory_space<vmem>>, vector<10x64xf32>
    %cst_86 = arith.constant dense<0.000000e+00> : vector<20x64xf32>
    %100 = tpu.matmul %98, %99, %cst_86 {dimension_numbers = #tpu.dot_dimension_numbers<[1], [0], [0], [1], [0, 0, 1, 1], [], []>} : vector<20x10xf32>, vector<10x64xf32>, vector<20x64xf32> -> vector<20x64xf32>
    %101 = arith.addf %96, %100 : vector<20x64xf32>
    %c16 = arith.constant 16 : index
    %c0_87 = arith.constant 0 : index
    %c0_88 = arith.constant 0 : index
    %102 = vector.load %arg4[%c16, %c0_87, %c0_88] : memref<25x20x10xf32, #tpu.memory_space<vmem>>, vector<1x20x10xf32>
    %103 = vector.shape_cast %102 : vector<1x20x10xf32> to vector<20x10xf32>
    %c0_89 = arith.constant 0 : index
    %c1024 = arith.constant 1024 : index
    %104 = vector.load %arg12[%c0_89, %c1024] : memref<10x1600xf32, #tpu.memory_space<vmem>>, vector<10x64xf32>
    %cst_90 = arith.constant dense<0.000000e+00> : vector<20x64xf32>
    %105 = tpu.matmul %103, %104, %cst_90 {dimension_numbers = #tpu.dot_dimension_numbers<[1], [0], [0], [1], [0, 0, 1, 1], [], []>} : vector<20x10xf32>, vector<10x64xf32>, vector<20x64xf32> -> vector<20x64xf32>
    %106 = arith.addf %101, %105 : vector<20x64xf32>
    %c17 = arith.constant 17 : index
    %c0_91 = arith.constant 0 : index
    %c0_92 = arith.constant 0 : index
    %107 = vector.load %arg4[%c17, %c0_91, %c0_92] : memref<25x20x10xf32, #tpu.memory_space<vmem>>, vector<1x20x10xf32>
    %108 = vector.shape_cast %107 : vector<1x20x10xf32> to vector<20x10xf32>
    %c0_93 = arith.constant 0 : index
    %c1088 = arith.constant 1088 : index
    %109 = vector.load %arg12[%c0_93, %c1088] : memref<10x1600xf32, #tpu.memory_space<vmem>>, vector<10x64xf32>
    %cst_94 = arith.constant dense<0.000000e+00> : vector<20x64xf32>
    %110 = tpu.matmul %108, %109, %cst_94 {dimension_numbers = #tpu.dot_dimension_numbers<[1], [0], [0], [1], [0, 0, 1, 1], [], []>} : vector<20x10xf32>, vector<10x64xf32>, vector<20x64xf32> -> vector<20x64xf32>
    %111 = arith.addf %106, %110 : vector<20x64xf32>
    %c18 = arith.constant 18 : index
    %c0_95 = arith.constant 0 : index
    %c0_96 = arith.constant 0 : index
    %112 = vector.load %arg4[%c18, %c0_95, %c0_96] : memref<25x20x10xf32, #tpu.memory_space<vmem>>, vector<1x20x10xf32>
    %113 = vector.shape_cast %112 : vector<1x20x10xf32> to vector<20x10xf32>
    %c0_97 = arith.constant 0 : index
    %c1152 = arith.constant 1152 : index
    %114 = vector.load %arg12[%c0_97, %c1152] : memref<10x1600xf32, #tpu.memory_space<vmem>>, vector<10x64xf32>
    %cst_98 = arith.constant dense<0.000000e+00> : vector<20x64xf32>
    %115 = tpu.matmul %113, %114, %cst_98 {dimension_numbers = #tpu.dot_dimension_numbers<[1], [0], [0], [1], [0, 0, 1, 1], [], []>} : vector<20x10xf32>, vector<10x64xf32>, vector<20x64xf32> -> vector<20x64xf32>
    %116 = arith.addf %111, %115 : vector<20x64xf32>
    %c19 = arith.constant 19 : index
    %c0_99 = arith.constant 0 : index
    %c0_100 = arith.constant 0 : index
    %117 = vector.load %arg4[%c19, %c0_99, %c0_100] : memref<25x20x10xf32, #tpu.memory_space<vmem>>, vector<1x20x10xf32>
    %118 = vector.shape_cast %117 : vector<1x20x10xf32> to vector<20x10xf32>
    %c0_101 = arith.constant 0 : index
    %c1216 = arith.constant 1216 : index
    %119 = vector.load %arg12[%c0_101, %c1216] : memref<10x1600xf32, #tpu.memory_space<vmem>>, vector<10x64xf32>
    %cst_102 = arith.constant dense<0.000000e+00> : vector<20x64xf32>
    %120 = tpu.matmul %118, %119, %cst_102 {dimension_numbers = #tpu.dot_dimension_numbers<[1], [0], [0], [1], [0, 0, 1, 1], [], []>} : vector<20x10xf32>, vector<10x64xf32>, vector<20x64xf32> -> vector<20x64xf32>
    %121 = arith.addf %116, %120 : vector<20x64xf32>
    %c20 = arith.constant 20 : index
    %c0_103 = arith.constant 0 : index
    %c0_104 = arith.constant 0 : index
    %122 = vector.load %arg4[%c20, %c0_103, %c0_104] : memref<25x20x10xf32, #tpu.memory_space<vmem>>, vector<1x20x10xf32>
    %123 = vector.shape_cast %122 : vector<1x20x10xf32> to vector<20x10xf32>
    %c0_105 = arith.constant 0 : index
    %c1280 = arith.constant 1280 : index
    %124 = vector.load %arg12[%c0_105, %c1280] : memref<10x1600xf32, #tpu.memory_space<vmem>>, vector<10x64xf32>
    %cst_106 = arith.constant dense<0.000000e+00> : vector<20x64xf32>
    %125 = tpu.matmul %123, %124, %cst_106 {dimension_numbers = #tpu.dot_dimension_numbers<[1], [0], [0], [1], [0, 0, 1, 1], [], []>} : vector<20x10xf32>, vector<10x64xf32>, vector<20x64xf32> -> vector<20x64xf32>
    %126 = arith.addf %121, %125 : vector<20x64xf32>
    %c21 = arith.constant 21 : index
    %c0_107 = arith.constant 0 : index
    %c0_108 = arith.constant 0 : index
    %127 = vector.load %arg4[%c21, %c0_107, %c0_108] : memref<25x20x10xf32, #tpu.memory_space<vmem>>, vector<1x20x10xf32>
    %128 = vector.shape_cast %127 : vector<1x20x10xf32> to vector<20x10xf32>
    %c0_109 = arith.constant 0 : index
    %c1344 = arith.constant 1344 : index
    %129 = vector.load %arg12[%c0_109, %c1344] : memref<10x1600xf32, #tpu.memory_space<vmem>>, vector<10x64xf32>
    %cst_110 = arith.constant dense<0.000000e+00> : vector<20x64xf32>
    %130 = tpu.matmul %128, %129, %cst_110 {dimension_numbers = #tpu.dot_dimension_numbers<[1], [0], [0], [1], [0, 0, 1, 1], [], []>} : vector<20x10xf32>, vector<10x64xf32>, vector<20x64xf32> -> vector<20x64xf32>
    %131 = arith.addf %126, %130 : vector<20x64xf32>
    %c22 = arith.constant 22 : index
    %c0_111 = arith.constant 0 : index
    %c0_112 = arith.constant 0 : index
    %132 = vector.load %arg4[%c22, %c0_111, %c0_112] : memref<25x20x10xf32, #tpu.memory_space<vmem>>, vector<1x20x10xf32>
    %133 = vector.shape_cast %132 : vector<1x20x10xf32> to vector<20x10xf32>
    %c0_113 = arith.constant 0 : index
    %c1408 = arith.constant 1408 : index
    %134 = vector.load %arg12[%c0_113, %c1408] : memref<10x1600xf32, #tpu.memory_space<vmem>>, vector<10x64xf32>
    %cst_114 = arith.constant dense<0.000000e+00> : vector<20x64xf32>
    %135 = tpu.matmul %133, %134, %cst_114 {dimension_numbers = #tpu.dot_dimension_numbers<[1], [0], [0], [1], [0, 0, 1, 1], [], []>} : vector<20x10xf32>, vector<10x64xf32>, vector<20x64xf32> -> vector<20x64xf32>
    %136 = arith.addf %131, %135 : vector<20x64xf32>
    %c23 = arith.constant 23 : index
    %c0_115 = arith.constant 0 : index
    %c0_116 = arith.constant 0 : index
    %137 = vector.load %arg4[%c23, %c0_115, %c0_116] : memref<25x20x10xf32, #tpu.memory_space<vmem>>, vector<1x20x10xf32>
    %138 = vector.shape_cast %137 : vector<1x20x10xf32> to vector<20x10xf32>
    %c0_117 = arith.constant 0 : index
    %c1472 = arith.constant 1472 : index
    %139 = vector.load %arg12[%c0_117, %c1472] : memref<10x1600xf32, #tpu.memory_space<vmem>>, vector<10x64xf32>
    %cst_118 = arith.constant dense<0.000000e+00> : vector<20x64xf32>
    %140 = tpu.matmul %138, %139, %cst_118 {dimension_numbers = #tpu.dot_dimension_numbers<[1], [0], [0], [1], [0, 0, 1, 1], [], []>} : vector<20x10xf32>, vector<10x64xf32>, vector<20x64xf32> -> vector<20x64xf32>
    %141 = arith.addf %136, %140 : vector<20x64xf32>
    %c24 = arith.constant 24 : index
    %c0_119 = arith.constant 0 : index
    %c0_120 = arith.constant 0 : index
    %142 = vector.load %arg4[%c24, %c0_119, %c0_120] : memref<25x20x10xf32, #tpu.memory_space<vmem>>, vector<1x20x10xf32>
    %143 = vector.shape_cast %142 : vector<1x20x10xf32> to vector<20x10xf32>
    %c0_121 = arith.constant 0 : index
    %c1536 = arith.constant 1536 : index
    %144 = vector.load %arg12[%c0_121, %c1536] : memref<10x1600xf32, #tpu.memory_space<vmem>>, vector<10x64xf32>
    %cst_122 = arith.constant dense<0.000000e+00> : vector<20x64xf32>
    %145 = tpu.matmul %143, %144, %cst_122 {dimension_numbers = #tpu.dot_dimension_numbers<[1], [0], [0], [1], [0, 0, 1, 1], [], []>} : vector<20x10xf32>, vector<10x64xf32>, vector<20x64xf32> -> vector<20x64xf32>
    %146 = arith.addf %141, %145 : vector<20x64xf32>
    %c0_123 = arith.constant 0 : index
    %c0_124 = arith.constant 0 : index
    %147 = vector.load %arg13[%c0_123, %c0_124] : memref<20x64xf32, #tpu.memory_space<vmem>>, vector<20x64xf32>
    tpu.vector_store %arg13[%c0_123, %c0_124], %146 {strides = array<i32>} : memref<20x64xf32, #tpu.memory_space<vmem>>, vector<20x64xf32>,
    %c0_125 = arith.constant 0 : index
    %c0_126 = arith.constant 0 : index
    %148 = vector.load %arg13[%c0_125, %c0_126] : memref<20x64xf32, #tpu.memory_space<vmem>>, vector<20x16xf32>
    %c0_127 = arith.constant 0 : index
    %c16_128 = arith.constant 16 : index
    %149 = vector.load %arg13[%c0_127, %c16_128] : memref<20x64xf32, #tpu.memory_space<vmem>>, vector<20x16xf32>
    %150 = arith.maximumf %148, %149 : vector<20x16xf32>
    %c0_129 = arith.constant 0 : index
    %c32 = arith.constant 32 : index
    %151 = vector.load %arg13[%c0_129, %c32] : memref<20x64xf32, #tpu.memory_space<vmem>>, vector<20x16xf32>
    %152 = arith.maximumf %150, %151 : vector<20x16xf32>
    %c0_130 = arith.constant 0 : index
    %c48 = arith.constant 48 : index
    %153 = vector.load %arg13[%c0_130, %c48] : memref<20x64xf32, #tpu.memory_space<vmem>>, vector<20x16xf32>
    %154 = arith.maximumf %152, %153 : vector<20x16xf32>
    %cst_131 = arith.constant 0.000000e+00 : f32
    %155 = vector.broadcast %cst_131 : f32 to vector<20x16xf32>
    %156 = arith.maximumf %154, %155 : vector<20x16xf32>
    %c0_132 = arith.constant 0 : index
    %c0_133 = arith.constant 0 : index
    %157 = vector.load %arg14[%c0_132, %c0_133] : memref<20x16xf32, #tpu.memory_space<vmem>>, vector<20x16xf32>
    tpu.vector_store %arg14[%c0_132, %c0_133], %156 {strides = array<i32>} : memref<20x16xf32, #tpu.memory_space<vmem>>, vector<20x16xf32>,
    %c0_134 = arith.constant 0 : index
    %c0_135 = arith.constant 0 : index
    %158 = vector.load %arg14[%c0_134, %c0_135] : memref<20x16xf32, #tpu.memory_space<vmem>>, vector<1x16xf32>
    %c0_136 = arith.constant 0 : index
    %c0_137 = arith.constant 0 : index
    %159 = vector.load %arg15[%c0_136, %c0_137] : memref<2x320xf32, #tpu.memory_space<vmem>>, vector<1x16xf32>
    tpu.vector_store %arg15[%c0_136, %c0_137], %158 {strides = array<i32>} : memref<2x320xf32, #tpu.memory_space<vmem>>, vector<1x16xf32>,
    %c1_138 = arith.constant 1 : index
    %c0_139 = arith.constant 0 : index
    %160 = vector.load %arg14[%c1_138, %c0_139] : memref<20x16xf32, #tpu.memory_space<vmem>>, vector<1x16xf32>
    %c0_140 = arith.constant 0 : index
    %c16_141 = arith.constant 16 : index
    %161 = vector.load %arg15[%c0_140, %c16_141] : memref<2x320xf32, #tpu.memory_space<vmem>>, vector<1x16xf32>
    tpu.vector_store %arg15[%c0_140, %c16_141], %160 {strides = array<i32>} : memref<2x320xf32, #tpu.memory_space<vmem>>, vector<1x16xf32>,
    %c2_142 = arith.constant 2 : index
    %c0_143 = arith.constant 0 : index
    %162 = vector.load %arg14[%c2_142, %c0_143] : memref<20x16xf32, #tpu.memory_space<vmem>>, vector<1x16xf32>
    %c0_144 = arith.constant 0 : index
    %c32_145 = arith.constant 32 : index
    %163 = vector.load %arg15[%c0_144, %c32_145] : memref<2x320xf32, #tpu.memory_space<vmem>>, vector<1x16xf32>
    tpu.vector_store %arg15[%c0_144, %c32_145], %162 {strides = array<i32>} : memref<2x320xf32, #tpu.memory_space<vmem>>, vector<1x16xf32>,
    %c3_146 = arith.constant 3 : index
    %c0_147 = arith.constant 0 : index
    %164 = vector.load %arg14[%c3_146, %c0_147] : memref<20x16xf32, #tpu.memory_space<vmem>>, vector<1x16xf32>
    %c0_148 = arith.constant 0 : index
    %c48_149 = arith.constant 48 : index
    %165 = vector.load %arg15[%c0_148, %c48_149] : memref<2x320xf32, #tpu.memory_space<vmem>>, vector<1x16xf32>
    tpu.vector_store %arg15[%c0_148, %c48_149], %164 {strides = array<i32>} : memref<2x320xf32, #tpu.memory_space<vmem>>, vector<1x16xf32>,
    %c4_150 = arith.constant 4 : index
    %c0_151 = arith.constant 0 : index
    %166 = vector.load %arg14[%c4_150, %c0_151] : memref<20x16xf32, #tpu.memory_space<vmem>>, vector<1x16xf32>
    %c0_152 = arith.constant 0 : index
    %c64_153 = arith.constant 64 : index
    %167 = vector.load %arg15[%c0_152, %c64_153] : memref<2x320xf32, #tpu.memory_space<vmem>>, vector<1x16xf32>
    tpu.vector_store %arg15[%c0_152, %c64_153], %166 {strides = array<i32>} : memref<2x320xf32, #tpu.memory_space<vmem>>, vector<1x16xf32>,
    %c5_154 = arith.constant 5 : index
    %c0_155 = arith.constant 0 : index
    %168 = vector.load %arg14[%c5_154, %c0_155] : memref<20x16xf32, #tpu.memory_space<vmem>>, vector<1x16xf32>
    %c0_156 = arith.constant 0 : index
    %c80 = arith.constant 80 : index
    %169 = vector.load %arg15[%c0_156, %c80] : memref<2x320xf32, #tpu.memory_space<vmem>>, vector<1x16xf32>
    tpu.vector_store %arg15[%c0_156, %c80], %168 {strides = array<i32>} : memref<2x320xf32, #tpu.memory_space<vmem>>, vector<1x16xf32>,
    %c6_157 = arith.constant 6 : index
    %c0_158 = arith.constant 0 : index
    %170 = vector.load %arg14[%c6_157, %c0_158] : memref<20x16xf32, #tpu.memory_space<vmem>>, vector<1x16xf32>
    %c0_159 = arith.constant 0 : index
    %c96 = arith.constant 96 : index
    %171 = vector.load %arg15[%c0_159, %c96] : memref<2x320xf32, #tpu.memory_space<vmem>>, vector<1x16xf32>
    tpu.vector_store %arg15[%c0_159, %c96], %170 {strides = array<i32>} : memref<2x320xf32, #tpu.memory_space<vmem>>, vector<1x16xf32>,
    %c7_160 = arith.constant 7 : index
    %c0_161 = arith.constant 0 : index
    %172 = vector.load %arg14[%c7_160, %c0_161] : memref<20x16xf32, #tpu.memory_space<vmem>>, vector<1x16xf32>
    %c0_162 = arith.constant 0 : index
    %c112 = arith.constant 112 : index
    %173 = vector.load %arg15[%c0_162, %c112] : memref<2x320xf32, #tpu.memory_space<vmem>>, vector<1x16xf32>
    tpu.vector_store %arg15[%c0_162, %c112], %172 {strides = array<i32>} : memref<2x320xf32, #tpu.memory_space<vmem>>, vector<1x16xf32>,
    %c8_163 = arith.constant 8 : index
    %c0_164 = arith.constant 0 : index
    %174 = vector.load %arg14[%c8_163, %c0_164] : memref<20x16xf32, #tpu.memory_space<vmem>>, vector<1x16xf32>
    %c0_165 = arith.constant 0 : index
    %c128_166 = arith.constant 128 : index
    %175 = vector.load %arg15[%c0_165, %c128_166] : memref<2x320xf32, #tpu.memory_space<vmem>>, vector<1x16xf32>
    tpu.vector_store %arg15[%c0_165, %c128_166], %174 {strides = array<i32>} : memref<2x320xf32, #tpu.memory_space<vmem>>, vector<1x16xf32>,
    %c9_167 = arith.constant 9 : index
    %c0_168 = arith.constant 0 : index
    %176 = vector.load %arg14[%c9_167, %c0_168] : memref<20x16xf32, #tpu.memory_space<vmem>>, vector<1x16xf32>
    %c0_169 = arith.constant 0 : index
    %c144 = arith.constant 144 : index
    %177 = vector.load %arg15[%c0_169, %c144] : memref<2x320xf32, #tpu.memory_space<vmem>>, vector<1x16xf32>
    tpu.vector_store %arg15[%c0_169, %c144], %176 {strides = array<i32>} : memref<2x320xf32, #tpu.memory_space<vmem>>, vector<1x16xf32>,
    %c10_170 = arith.constant 10 : index
    %c0_171 = arith.constant 0 : index
    %178 = vector.load %arg14[%c10_170, %c0_171] : memref<20x16xf32, #tpu.memory_space<vmem>>, vector<1x16xf32>
    %c0_172 = arith.constant 0 : index
    %c160 = arith.constant 160 : index
    %179 = vector.load %arg15[%c0_172, %c160] : memref<2x320xf32, #tpu.memory_space<vmem>>, vector<1x16xf32>
    tpu.vector_store %arg15[%c0_172, %c160], %178 {strides = array<i32>} : memref<2x320xf32, #tpu.memory_space<vmem>>, vector<1x16xf32>,
    %c11_173 = arith.constant 11 : index
    %c0_174 = arith.constant 0 : index
    %180 = vector.load %arg14[%c11_173, %c0_174] : memref<20x16xf32, #tpu.memory_space<vmem>>, vector<1x16xf32>
    %c0_175 = arith.constant 0 : index
    %c176 = arith.constant 176 : index
    %181 = vector.load %arg15[%c0_175, %c176] : memref<2x320xf32, #tpu.memory_space<vmem>>, vector<1x16xf32>
    tpu.vector_store %arg15[%c0_175, %c176], %180 {strides = array<i32>} : memref<2x320xf32, #tpu.memory_space<vmem>>, vector<1x16xf32>,
    %c12_176 = arith.constant 12 : index
    %c0_177 = arith.constant 0 : index
    %182 = vector.load %arg14[%c12_176, %c0_177] : memref<20x16xf32, #tpu.memory_space<vmem>>, vector<1x16xf32>
    %c0_178 = arith.constant 0 : index
    %c192_179 = arith.constant 192 : index
    %183 = vector.load %arg15[%c0_178, %c192_179] : memref<2x320xf32, #tpu.memory_space<vmem>>, vector<1x16xf32>
    tpu.vector_store %arg15[%c0_178, %c192_179], %182 {strides = array<i32>} : memref<2x320xf32, #tpu.memory_space<vmem>>, vector<1x16xf32>,
    %c13_180 = arith.constant 13 : index
    %c0_181 = arith.constant 0 : index
    %184 = vector.load %arg14[%c13_180, %c0_181] : memref<20x16xf32, #tpu.memory_space<vmem>>, vector<1x16xf32>
    %c0_182 = arith.constant 0 : index
    %c208 = arith.constant 208 : index
    %185 = vector.load %arg15[%c0_182, %c208] : memref<2x320xf32, #tpu.memory_space<vmem>>, vector<1x16xf32>
    tpu.vector_store %arg15[%c0_182, %c208], %184 {strides = array<i32>} : memref<2x320xf32, #tpu.memory_space<vmem>>, vector<1x16xf32>,
    %c14_183 = arith.constant 14 : index
    %c0_184 = arith.constant 0 : index
    %186 = vector.load %arg14[%c14_183, %c0_184] : memref<20x16xf32, #tpu.memory_space<vmem>>, vector<1x16xf32>
    %c0_185 = arith.constant 0 : index
    %c224 = arith.constant 224 : index
    %187 = vector.load %arg15[%c0_185, %c224] : memref<2x320xf32, #tpu.memory_space<vmem>>, vector<1x16xf32>
    tpu.vector_store %arg15[%c0_185, %c224], %186 {strides = array<i32>} : memref<2x320xf32, #tpu.memory_space<vmem>>, vector<1x16xf32>,
    %c15_186 = arith.constant 15 : index
    %c0_187 = arith.constant 0 : index
    %188 = vector.load %arg14[%c15_186, %c0_187] : memref<20x16xf32, #tpu.memory_space<vmem>>, vector<1x16xf32>
    %c0_188 = arith.constant 0 : index
    %c240 = arith.constant 240 : index
    %189 = vector.load %arg15[%c0_188, %c240] : memref<2x320xf32, #tpu.memory_space<vmem>>, vector<1x16xf32>
    tpu.vector_store %arg15[%c0_188, %c240], %188 {strides = array<i32>} : memref<2x320xf32, #tpu.memory_space<vmem>>, vector<1x16xf32>,
    %c16_189 = arith.constant 16 : index
    %c0_190 = arith.constant 0 : index
    %190 = vector.load %arg14[%c16_189, %c0_190] : memref<20x16xf32, #tpu.memory_space<vmem>>, vector<1x16xf32>
    %c0_191 = arith.constant 0 : index
    %c256_192 = arith.constant 256 : index
    %191 = vector.load %arg15[%c0_191, %c256_192] : memref<2x320xf32, #tpu.memory_space<vmem>>, vector<1x16xf32>
    tpu.vector_store %arg15[%c0_191, %c256_192], %190 {strides = array<i32>} : memref<2x320xf32, #tpu.memory_space<vmem>>, vector<1x16xf32>,
    %c17_193 = arith.constant 17 : index
    %c0_194 = arith.constant 0 : index
    %192 = vector.load %arg14[%c17_193, %c0_194] : memref<20x16xf32, #tpu.memory_space<vmem>>, vector<1x16xf32>
    %c0_195 = arith.constant 0 : index
    %c272 = arith.constant 272 : index
    %193 = vector.load %arg15[%c0_195, %c272] : memref<2x320xf32, #tpu.memory_space<vmem>>, vector<1x16xf32>
    tpu.vector_store %arg15[%c0_195, %c272], %192 {strides = array<i32>} : memref<2x320xf32, #tpu.memory_space<vmem>>, vector<1x16xf32>,
    %c18_196 = arith.constant 18 : index
    %c0_197 = arith.constant 0 : index
    %194 = vector.load %arg14[%c18_196, %c0_197] : memref<20x16xf32, #tpu.memory_space<vmem>>, vector<1x16xf32>
    %c0_198 = arith.constant 0 : index
    %c288_199 = arith.constant 288 : index
    %195 = vector.load %arg15[%c0_198, %c288_199] : memref<2x320xf32, #tpu.memory_space<vmem>>, vector<1x16xf32>
    tpu.vector_store %arg15[%c0_198, %c288_199], %194 {strides = array<i32>} : memref<2x320xf32, #tpu.memory_space<vmem>>, vector<1x16xf32>,
    %c19_200 = arith.constant 19 : index
    %c0_201 = arith.constant 0 : index
    %196 = vector.load %arg14[%c19_200, %c0_201] : memref<20x16xf32, #tpu.memory_space<vmem>>, vector<1x16xf32>
    %c0_202 = arith.constant 0 : index
    %c304 = arith.constant 304 : index
    %197 = vector.load %arg15[%c0_202, %c304] : memref<2x320xf32, #tpu.memory_space<vmem>>, vector<1x16xf32>
    tpu.vector_store %arg15[%c0_202, %c304], %196 {strides = array<i32>} : memref<2x320xf32, #tpu.memory_space<vmem>>, vector<1x16xf32>,
    %c0_203 = arith.constant 0 : index
    %c144_204 = arith.constant 144 : index
    %198 = vector.load %arg11[%c0_203, %c144_204] : memref<10x1152xf32, #tpu.memory_space<vmem>>, vector<10x144xf32>
    %c0_205 = arith.constant 0 : index
    %c432 = arith.constant 432 : index
    %199 = vector.load %arg11[%c0_205, %c432] : memref<10x1152xf32, #tpu.memory_space<vmem>>, vector<10x144xf32>
    %200 = arith.maximumf %198, %199 : vector<10x144xf32>
    %c0_206 = arith.constant 0 : index
    %c720 = arith.constant 720 : index
    %201 = vector.load %arg11[%c0_206, %c720] : memref<10x1152xf32, #tpu.memory_space<vmem>>, vector<10x144xf32>
    %202 = arith.maximumf %200, %201 : vector<10x144xf32>
    %c0_207 = arith.constant 0 : index
    %c1008 = arith.constant 1008 : index
    %203 = vector.load %arg11[%c0_207, %c1008] : memref<10x1152xf32, #tpu.memory_space<vmem>>, vector<10x144xf32>
    %204 = arith.maximumf %202, %203 : vector<10x144xf32>
    %cst_208 = arith.constant 0.000000e+00 : f32
    %205 = vector.broadcast %cst_208 : f32 to vector<10x144xf32>
    %206 = arith.maximumf %204, %205 : vector<10x144xf32>
    %cst_209 = arith.constant dense<0.000000e+00> : vector<10x1600xf32>
    %207 = tpu.matmul %206, %7, %cst_209 {dimension_numbers = #tpu.dot_dimension_numbers<[1], [0], [0], [1], [0, 0, 1, 1], [], []>} : vector<10x144xf32>, vector<144x1600xf32>, vector<10x1600xf32> -> vector<10x1600xf32>
    %c0_210 = arith.constant 0 : index
    %c0_211 = arith.constant 0 : index
    %208 = vector.load %arg12[%c0_210, %c0_211] : memref<10x1600xf32, #tpu.memory_space<vmem>>, vector<10x1600xf32>
    tpu.vector_store %arg12[%c0_210, %c0_211], %207 {strides = array<i32>} : memref<10x1600xf32, #tpu.memory_space<vmem>>, vector<10x1600xf32>,
    %c0_212 = arith.constant 0 : index
    %c0_213 = arith.constant 0 : index
    %209 = vector.load %arg5[%c0_212, %c0_213] : memref<20x1xf32, #tpu.memory_space<vmem>>, vector<20x1xf32>
    %210 = vector.shape_cast %209 : vector<20x1xf32> to vector<20x1xf32>
    %211 = vector.broadcast %210 : vector<20x1xf32> to vector<20x64xf32>
    %c0_214 = arith.constant 0 : index
    %c0_215 = arith.constant 0 : index
    %c0_216 = arith.constant 0 : index
    %212 = vector.load %arg4[%c0_214, %c0_215, %c0_216] : memref<25x20x10xf32, #tpu.memory_space<vmem>>, vector<1x20x10xf32>
    %213 = vector.shape_cast %212 : vector<1x20x10xf32> to vector<20x10xf32>
    %c0_217 = arith.constant 0 : index
    %c0_218 = arith.constant 0 : index
    %214 = vector.load %arg12[%c0_217, %c0_218] : memref<10x1600xf32, #tpu.memory_space<vmem>>, vector<10x64xf32>
    %cst_219 = arith.constant dense<0.000000e+00> : vector<20x64xf32>
    %215 = tpu.matmul %213, %214, %cst_219 {dimension_numbers = #tpu.dot_dimension_numbers<[1], [0], [0], [1], [0, 0, 1, 1], [], []>} : vector<20x10xf32>, vector<10x64xf32>, vector<20x64xf32> -> vector<20x64xf32>
    %216 = arith.addf %211, %215 : vector<20x64xf32>
    %c1_220 = arith.constant 1 : index
    %c0_221 = arith.constant 0 : index
    %c0_222 = arith.constant 0 : index
    %217 = vector.load %arg4[%c1_220, %c0_221, %c0_222] : memref<25x20x10xf32, #tpu.memory_space<vmem>>, vector<1x20x10xf32>
    %218 = vector.shape_cast %217 : vector<1x20x10xf32> to vector<20x10xf32>
    %c0_223 = arith.constant 0 : index
    %c64_224 = arith.constant 64 : index
    %219 = vector.load %arg12[%c0_223, %c64_224] : memref<10x1600xf32, #tpu.memory_space<vmem>>, vector<10x64xf32>
    %cst_225 = arith.constant dense<0.000000e+00> : vector<20x64xf32>
    %220 = tpu.matmul %218, %219, %cst_225 {dimension_numbers = #tpu.dot_dimension_numbers<[1], [0], [0], [1], [0, 0, 1, 1], [], []>} : vector<20x10xf32>, vector<10x64xf32>, vector<20x64xf32> -> vector<20x64xf32>
    %221 = arith.addf %216, %220 : vector<20x64xf32>
    %c2_226 = arith.constant 2 : index
    %c0_227 = arith.constant 0 : index
    %c0_228 = arith.constant 0 : index
    %222 = vector.load %arg4[%c2_226, %c0_227, %c0_228] : memref<25x20x10xf32, #tpu.memory_space<vmem>>, vector<1x20x10xf32>
    %223 = vector.shape_cast %222 : vector<1x20x10xf32> to vector<20x10xf32>
    %c0_229 = arith.constant 0 : index
    %c128_230 = arith.constant 128 : index
    %224 = vector.load %arg12[%c0_229, %c128_230] : memref<10x1600xf32, #tpu.memory_space<vmem>>, vector<10x64xf32>
    %cst_231 = arith.constant dense<0.000000e+00> : vector<20x64xf32>
    %225 = tpu.matmul %223, %224, %cst_231 {dimension_numbers = #tpu.dot_dimension_numbers<[1], [0], [0], [1], [0, 0, 1, 1], [], []>} : vector<20x10xf32>, vector<10x64xf32>, vector<20x64xf32> -> vector<20x64xf32>
    %226 = arith.addf %221, %225 : vector<20x64xf32>
    %c3_232 = arith.constant 3 : index
    %c0_233 = arith.constant 0 : index
    %c0_234 = arith.constant 0 : index
    %227 = vector.load %arg4[%c3_232, %c0_233, %c0_234] : memref<25x20x10xf32, #tpu.memory_space<vmem>>, vector<1x20x10xf32>
    %228 = vector.shape_cast %227 : vector<1x20x10xf32> to vector<20x10xf32>
    %c0_235 = arith.constant 0 : index
    %c192_236 = arith.constant 192 : index
    %229 = vector.load %arg12[%c0_235, %c192_236] : memref<10x1600xf32, #tpu.memory_space<vmem>>, vector<10x64xf32>
    %cst_237 = arith.constant dense<0.000000e+00> : vector<20x64xf32>
    %230 = tpu.matmul %228, %229, %cst_237 {dimension_numbers = #tpu.dot_dimension_numbers<[1], [0], [0], [1], [0, 0, 1, 1], [], []>} : vector<20x10xf32>, vector<10x64xf32>, vector<20x64xf32> -> vector<20x64xf32>
    %231 = arith.addf %226, %230 : vector<20x64xf32>
    %c4_238 = arith.constant 4 : index
    %c0_239 = arith.constant 0 : index
    %c0_240 = arith.constant 0 : index
    %232 = vector.load %arg4[%c4_238, %c0_239, %c0_240] : memref<25x20x10xf32, #tpu.memory_space<vmem>>, vector<1x20x10xf32>
    %233 = vector.shape_cast %232 : vector<1x20x10xf32> to vector<20x10xf32>
    %c0_241 = arith.constant 0 : index
    %c256_242 = arith.constant 256 : index
    %234 = vector.load %arg12[%c0_241, %c256_242] : memref<10x1600xf32, #tpu.memory_space<vmem>>, vector<10x64xf32>
    %cst_243 = arith.constant dense<0.000000e+00> : vector<20x64xf32>
    %235 = tpu.matmul %233, %234, %cst_243 {dimension_numbers = #tpu.dot_dimension_numbers<[1], [0], [0], [1], [0, 0, 1, 1], [], []>} : vector<20x10xf32>, vector<10x64xf32>, vector<20x64xf32> -> vector<20x64xf32>
    %236 = arith.addf %231, %235 : vector<20x64xf32>
    %c5_244 = arith.constant 5 : index
    %c0_245 = arith.constant 0 : index
    %c0_246 = arith.constant 0 : index
    %237 = vector.load %arg4[%c5_244, %c0_245, %c0_246] : memref<25x20x10xf32, #tpu.memory_space<vmem>>, vector<1x20x10xf32>
    %238 = vector.shape_cast %237 : vector<1x20x10xf32> to vector<20x10xf32>
    %c0_247 = arith.constant 0 : index
    %c320_248 = arith.constant 320 : index
    %239 = vector.load %arg12[%c0_247, %c320_248] : memref<10x1600xf32, #tpu.memory_space<vmem>>, vector<10x64xf32>
    %cst_249 = arith.constant dense<0.000000e+00> : vector<20x64xf32>
    %240 = tpu.matmul %238, %239, %cst_249 {dimension_numbers = #tpu.dot_dimension_numbers<[1], [0], [0], [1], [0, 0, 1, 1], [], []>} : vector<20x10xf32>, vector<10x64xf32>, vector<20x64xf32> -> vector<20x64xf32>
    %241 = arith.addf %236, %240 : vector<20x64xf32>
    %c6_250 = arith.constant 6 : index
    %c0_251 = arith.constant 0 : index
    %c0_252 = arith.constant 0 : index
    %242 = vector.load %arg4[%c6_250, %c0_251, %c0_252] : memref<25x20x10xf32, #tpu.memory_space<vmem>>, vector<1x20x10xf32>
    %243 = vector.shape_cast %242 : vector<1x20x10xf32> to vector<20x10xf32>
    %c0_253 = arith.constant 0 : index
    %c384_254 = arith.constant 384 : index
    %244 = vector.load %arg12[%c0_253, %c384_254] : memref<10x1600xf32, #tpu.memory_space<vmem>>, vector<10x64xf32>
    %cst_255 = arith.constant dense<0.000000e+00> : vector<20x64xf32>
    %245 = tpu.matmul %243, %244, %cst_255 {dimension_numbers = #tpu.dot_dimension_numbers<[1], [0], [0], [1], [0, 0, 1, 1], [], []>} : vector<20x10xf32>, vector<10x64xf32>, vector<20x64xf32> -> vector<20x64xf32>
    %246 = arith.addf %241, %245 : vector<20x64xf32>
    %c7_256 = arith.constant 7 : index
    %c0_257 = arith.constant 0 : index
    %c0_258 = arith.constant 0 : index
    %247 = vector.load %arg4[%c7_256, %c0_257, %c0_258] : memref<25x20x10xf32, #tpu.memory_space<vmem>>, vector<1x20x10xf32>
    %248 = vector.shape_cast %247 : vector<1x20x10xf32> to vector<20x10xf32>
    %c0_259 = arith.constant 0 : index
    %c448_260 = arith.constant 448 : index
    %249 = vector.load %arg12[%c0_259, %c448_260] : memref<10x1600xf32, #tpu.memory_space<vmem>>, vector<10x64xf32>
    %cst_261 = arith.constant dense<0.000000e+00> : vector<20x64xf32>
    %250 = tpu.matmul %248, %249, %cst_261 {dimension_numbers = #tpu.dot_dimension_numbers<[1], [0], [0], [1], [0, 0, 1, 1], [], []>} : vector<20x10xf32>, vector<10x64xf32>, vector<20x64xf32> -> vector<20x64xf32>
    %251 = arith.addf %246, %250 : vector<20x64xf32>
    %c8_262 = arith.constant 8 : index
    %c0_263 = arith.constant 0 : index
    %c0_264 = arith.constant 0 : index
    %252 = vector.load %arg4[%c8_262, %c0_263, %c0_264] : memref<25x20x10xf32, #tpu.memory_space<vmem>>, vector<1x20x10xf32>
    %253 = vector.shape_cast %252 : vector<1x20x10xf32> to vector<20x10xf32>
    %c0_265 = arith.constant 0 : index
    %c512_266 = arith.constant 512 : index
    %254 = vector.load %arg12[%c0_265, %c512_266] : memref<10x1600xf32, #tpu.memory_space<vmem>>, vector<10x64xf32>
    %cst_267 = arith.constant dense<0.000000e+00> : vector<20x64xf32>
    %255 = tpu.matmul %253, %254, %cst_267 {dimension_numbers = #tpu.dot_dimension_numbers<[1], [0], [0], [1], [0, 0, 1, 1], [], []>} : vector<20x10xf32>, vector<10x64xf32>, vector<20x64xf32> -> vector<20x64xf32>
    %256 = arith.addf %251, %255 : vector<20x64xf32>
    %c9_268 = arith.constant 9 : index
    %c0_269 = arith.constant 0 : index
    %c0_270 = arith.constant 0 : index
    %257 = vector.load %arg4[%c9_268, %c0_269, %c0_270] : memref<25x20x10xf32, #tpu.memory_space<vmem>>, vector<1x20x10xf32>
    %258 = vector.shape_cast %257 : vector<1x20x10xf32> to vector<20x10xf32>
    %c0_271 = arith.constant 0 : index
    %c576_272 = arith.constant 576 : index
    %259 = vector.load %arg12[%c0_271, %c576_272] : memref<10x1600xf32, #tpu.memory_space<vmem>>, vector<10x64xf32>
    %cst_273 = arith.constant dense<0.000000e+00> : vector<20x64xf32>
    %260 = tpu.matmul %258, %259, %cst_273 {dimension_numbers = #tpu.dot_dimension_numbers<[1], [0], [0], [1], [0, 0, 1, 1], [], []>} : vector<20x10xf32>, vector<10x64xf32>, vector<20x64xf32> -> vector<20x64xf32>
    %261 = arith.addf %256, %260 : vector<20x64xf32>
    %c10_274 = arith.constant 10 : index
    %c0_275 = arith.constant 0 : index
    %c0_276 = arith.constant 0 : index
    %262 = vector.load %arg4[%c10_274, %c0_275, %c0_276] : memref<25x20x10xf32, #tpu.memory_space<vmem>>, vector<1x20x10xf32>
    %263 = vector.shape_cast %262 : vector<1x20x10xf32> to vector<20x10xf32>
    %c0_277 = arith.constant 0 : index
    %c640_278 = arith.constant 640 : index
    %264 = vector.load %arg12[%c0_277, %c640_278] : memref<10x1600xf32, #tpu.memory_space<vmem>>, vector<10x64xf32>
    %cst_279 = arith.constant dense<0.000000e+00> : vector<20x64xf32>
    %265 = tpu.matmul %263, %264, %cst_279 {dimension_numbers = #tpu.dot_dimension_numbers<[1], [0], [0], [1], [0, 0, 1, 1], [], []>} : vector<20x10xf32>, vector<10x64xf32>, vector<20x64xf32> -> vector<20x64xf32>
    %266 = arith.addf %261, %265 : vector<20x64xf32>
    %c11_280 = arith.constant 11 : index
    %c0_281 = arith.constant 0 : index
    %c0_282 = arith.constant 0 : index
    %267 = vector.load %arg4[%c11_280, %c0_281, %c0_282] : memref<25x20x10xf32, #tpu.memory_space<vmem>>, vector<1x20x10xf32>
    %268 = vector.shape_cast %267 : vector<1x20x10xf32> to vector<20x10xf32>
    %c0_283 = arith.constant 0 : index
    %c704_284 = arith.constant 704 : index
    %269 = vector.load %arg12[%c0_283, %c704_284] : memref<10x1600xf32, #tpu.memory_space<vmem>>, vector<10x64xf32>
    %cst_285 = arith.constant dense<0.000000e+00> : vector<20x64xf32>
    %270 = tpu.matmul %268, %269, %cst_285 {dimension_numbers = #tpu.dot_dimension_numbers<[1], [0], [0], [1], [0, 0, 1, 1], [], []>} : vector<20x10xf32>, vector<10x64xf32>, vector<20x64xf32> -> vector<20x64xf32>
    %271 = arith.addf %266, %270 : vector<20x64xf32>
    %c12_286 = arith.constant 12 : index
    %c0_287 = arith.constant 0 : index
    %c0_288 = arith.constant 0 : index
    %272 = vector.load %arg4[%c12_286, %c0_287, %c0_288] : memref<25x20x10xf32, #tpu.memory_space<vmem>>, vector<1x20x10xf32>
    %273 = vector.shape_cast %272 : vector<1x20x10xf32> to vector<20x10xf32>
    %c0_289 = arith.constant 0 : index
    %c768_290 = arith.constant 768 : index
    %274 = vector.load %arg12[%c0_289, %c768_290] : memref<10x1600xf32, #tpu.memory_space<vmem>>, vector<10x64xf32>
    %cst_291 = arith.constant dense<0.000000e+00> : vector<20x64xf32>
    %275 = tpu.matmul %273, %274, %cst_291 {dimension_numbers = #tpu.dot_dimension_numbers<[1], [0], [0], [1], [0, 0, 1, 1], [], []>} : vector<20x10xf32>, vector<10x64xf32>, vector<20x64xf32> -> vector<20x64xf32>
    %276 = arith.addf %271, %275 : vector<20x64xf32>
    %c13_292 = arith.constant 13 : index
    %c0_293 = arith.constant 0 : index
    %c0_294 = arith.constant 0 : index
    %277 = vector.load %arg4[%c13_292, %c0_293, %c0_294] : memref<25x20x10xf32, #tpu.memory_space<vmem>>, vector<1x20x10xf32>
    %278 = vector.shape_cast %277 : vector<1x20x10xf32> to vector<20x10xf32>
    %c0_295 = arith.constant 0 : index
    %c832_296 = arith.constant 832 : index
    %279 = vector.load %arg12[%c0_295, %c832_296] : memref<10x1600xf32, #tpu.memory_space<vmem>>, vector<10x64xf32>
    %cst_297 = arith.constant dense<0.000000e+00> : vector<20x64xf32>
    %280 = tpu.matmul %278, %279, %cst_297 {dimension_numbers = #tpu.dot_dimension_numbers<[1], [0], [0], [1], [0, 0, 1, 1], [], []>} : vector<20x10xf32>, vector<10x64xf32>, vector<20x64xf32> -> vector<20x64xf32>
    %281 = arith.addf %276, %280 : vector<20x64xf32>
    %c14_298 = arith.constant 14 : index
    %c0_299 = arith.constant 0 : index
    %c0_300 = arith.constant 0 : index
    %282 = vector.load %arg4[%c14_298, %c0_299, %c0_300] : memref<25x20x10xf32, #tpu.memory_space<vmem>>, vector<1x20x10xf32>
    %283 = vector.shape_cast %282 : vector<1x20x10xf32> to vector<20x10xf32>
    %c0_301 = arith.constant 0 : index
    %c896_302 = arith.constant 896 : index
    %284 = vector.load %arg12[%c0_301, %c896_302] : memref<10x1600xf32, #tpu.memory_space<vmem>>, vector<10x64xf32>
    %cst_303 = arith.constant dense<0.000000e+00> : vector<20x64xf32>
    %285 = tpu.matmul %283, %284, %cst_303 {dimension_numbers = #tpu.dot_dimension_numbers<[1], [0], [0], [1], [0, 0, 1, 1], [], []>} : vector<20x10xf32>, vector<10x64xf32>, vector<20x64xf32> -> vector<20x64xf32>
    %286 = arith.addf %281, %285 : vector<20x64xf32>
    %c15_304 = arith.constant 15 : index
    %c0_305 = arith.constant 0 : index
    %c0_306 = arith.constant 0 : index
    %287 = vector.load %arg4[%c15_304, %c0_305, %c0_306] : memref<25x20x10xf32, #tpu.memory_space<vmem>>, vector<1x20x10xf32>
    %288 = vector.shape_cast %287 : vector<1x20x10xf32> to vector<20x10xf32>
    %c0_307 = arith.constant 0 : index
    %c960_308 = arith.constant 960 : index
    %289 = vector.load %arg12[%c0_307, %c960_308] : memref<10x1600xf32, #tpu.memory_space<vmem>>, vector<10x64xf32>
    %cst_309 = arith.constant dense<0.000000e+00> : vector<20x64xf32>
    %290 = tpu.matmul %288, %289, %cst_309 {dimension_numbers = #tpu.dot_dimension_numbers<[1], [0], [0], [1], [0, 0, 1, 1], [], []>} : vector<20x10xf32>, vector<10x64xf32>, vector<20x64xf32> -> vector<20x64xf32>
    %291 = arith.addf %286, %290 : vector<20x64xf32>
    %c16_310 = arith.constant 16 : index
    %c0_311 = arith.constant 0 : index
    %c0_312 = arith.constant 0 : index
    %292 = vector.load %arg4[%c16_310, %c0_311, %c0_312] : memref<25x20x10xf32, #tpu.memory_space<vmem>>, vector<1x20x10xf32>
    %293 = vector.shape_cast %292 : vector<1x20x10xf32> to vector<20x10xf32>
    %c0_313 = arith.constant 0 : index
    %c1024_314 = arith.constant 1024 : index
    %294 = vector.load %arg12[%c0_313, %c1024_314] : memref<10x1600xf32, #tpu.memory_space<vmem>>, vector<10x64xf32>
    %cst_315 = arith.constant dense<0.000000e+00> : vector<20x64xf32>
    %295 = tpu.matmul %293, %294, %cst_315 {dimension_numbers = #tpu.dot_dimension_numbers<[1], [0], [0], [1], [0, 0, 1, 1], [], []>} : vector<20x10xf32>, vector<10x64xf32>, vector<20x64xf32> -> vector<20x64xf32>
    %296 = arith.addf %291, %295 : vector<20x64xf32>
    %c17_316 = arith.constant 17 : index
    %c0_317 = arith.constant 0 : index
    %c0_318 = arith.constant 0 : index
    %297 = vector.load %arg4[%c17_316, %c0_317, %c0_318] : memref<25x20x10xf32, #tpu.memory_space<vmem>>, vector<1x20x10xf32>
    %298 = vector.shape_cast %297 : vector<1x20x10xf32> to vector<20x10xf32>
    %c0_319 = arith.constant 0 : index
    %c1088_320 = arith.constant 1088 : index
    %299 = vector.load %arg12[%c0_319, %c1088_320] : memref<10x1600xf32, #tpu.memory_space<vmem>>, vector<10x64xf32>
    %cst_321 = arith.constant dense<0.000000e+00> : vector<20x64xf32>
    %300 = tpu.matmul %298, %299, %cst_321 {dimension_numbers = #tpu.dot_dimension_numbers<[1], [0], [0], [1], [0, 0, 1, 1], [], []>} : vector<20x10xf32>, vector<10x64xf32>, vector<20x64xf32> -> vector<20x64xf32>
    %301 = arith.addf %296, %300 : vector<20x64xf32>
    %c18_322 = arith.constant 18 : index
    %c0_323 = arith.constant 0 : index
    %c0_324 = arith.constant 0 : index
    %302 = vector.load %arg4[%c18_322, %c0_323, %c0_324] : memref<25x20x10xf32, #tpu.memory_space<vmem>>, vector<1x20x10xf32>
    %303 = vector.shape_cast %302 : vector<1x20x10xf32> to vector<20x10xf32>
    %c0_325 = arith.constant 0 : index
    %c1152_326 = arith.constant 1152 : index
    %304 = vector.load %arg12[%c0_325, %c1152_326] : memref<10x1600xf32, #tpu.memory_space<vmem>>, vector<10x64xf32>
    %cst_327 = arith.constant dense<0.000000e+00> : vector<20x64xf32>
    %305 = tpu.matmul %303, %304, %cst_327 {dimension_numbers = #tpu.dot_dimension_numbers<[1], [0], [0], [1], [0, 0, 1, 1], [], []>} : vector<20x10xf32>, vector<10x64xf32>, vector<20x64xf32> -> vector<20x64xf32>
    %306 = arith.addf %301, %305 : vector<20x64xf32>
    %c19_328 = arith.constant 19 : index
    %c0_329 = arith.constant 0 : index
    %c0_330 = arith.constant 0 : index
    %307 = vector.load %arg4[%c19_328, %c0_329, %c0_330] : memref<25x20x10xf32, #tpu.memory_space<vmem>>, vector<1x20x10xf32>
    %308 = vector.shape_cast %307 : vector<1x20x10xf32> to vector<20x10xf32>
    %c0_331 = arith.constant 0 : index
    %c1216_332 = arith.constant 1216 : index
    %309 = vector.load %arg12[%c0_331, %c1216_332] : memref<10x1600xf32, #tpu.memory_space<vmem>>, vector<10x64xf32>
    %cst_333 = arith.constant dense<0.000000e+00> : vector<20x64xf32>
    %310 = tpu.matmul %308, %309, %cst_333 {dimension_numbers = #tpu.dot_dimension_numbers<[1], [0], [0], [1], [0, 0, 1, 1], [], []>} : vector<20x10xf32>, vector<10x64xf32>, vector<20x64xf32> -> vector<20x64xf32>
    %311 = arith.addf %306, %310 : vector<20x64xf32>
    %c20_334 = arith.constant 20 : index
    %c0_335 = arith.constant 0 : index
    %c0_336 = arith.constant 0 : index
    %312 = vector.load %arg4[%c20_334, %c0_335, %c0_336] : memref<25x20x10xf32, #tpu.memory_space<vmem>>, vector<1x20x10xf32>
    %313 = vector.shape_cast %312 : vector<1x20x10xf32> to vector<20x10xf32>
    %c0_337 = arith.constant 0 : index
    %c1280_338 = arith.constant 1280 : index
    %314 = vector.load %arg12[%c0_337, %c1280_338] : memref<10x1600xf32, #tpu.memory_space<vmem>>, vector<10x64xf32>
    %cst_339 = arith.constant dense<0.000000e+00> : vector<20x64xf32>
    %315 = tpu.matmul %313, %314, %cst_339 {dimension_numbers = #tpu.dot_dimension_numbers<[1], [0], [0], [1], [0, 0, 1, 1], [], []>} : vector<20x10xf32>, vector<10x64xf32>, vector<20x64xf32> -> vector<20x64xf32>
    %316 = arith.addf %311, %315 : vector<20x64xf32>
    %c21_340 = arith.constant 21 : index
    %c0_341 = arith.constant 0 : index
    %c0_342 = arith.constant 0 : index
    %317 = vector.load %arg4[%c21_340, %c0_341, %c0_342] : memref<25x20x10xf32, #tpu.memory_space<vmem>>, vector<1x20x10xf32>
    %318 = vector.shape_cast %317 : vector<1x20x10xf32> to vector<20x10xf32>
    %c0_343 = arith.constant 0 : index
    %c1344_344 = arith.constant 1344 : index
    %319 = vector.load %arg12[%c0_343, %c1344_344] : memref<10x1600xf32, #tpu.memory_space<vmem>>, vector<10x64xf32>
    %cst_345 = arith.constant dense<0.000000e+00> : vector<20x64xf32>
    %320 = tpu.matmul %318, %319, %cst_345 {dimension_numbers = #tpu.dot_dimension_numbers<[1], [0], [0], [1], [0, 0, 1, 1], [], []>} : vector<20x10xf32>, vector<10x64xf32>, vector<20x64xf32> -> vector<20x64xf32>
    %321 = arith.addf %316, %320 : vector<20x64xf32>
    %c22_346 = arith.constant 22 : index
    %c0_347 = arith.constant 0 : index
    %c0_348 = arith.constant 0 : index
    %322 = vector.load %arg4[%c22_346, %c0_347, %c0_348] : memref<25x20x10xf32, #tpu.memory_space<vmem>>, vector<1x20x10xf32>
    %323 = vector.shape_cast %322 : vector<1x20x10xf32> to vector<20x10xf32>
    %c0_349 = arith.constant 0 : index
    %c1408_350 = arith.constant 1408 : index
    %324 = vector.load %arg12[%c0_349, %c1408_350] : memref<10x1600xf32, #tpu.memory_space<vmem>>, vector<10x64xf32>
    %cst_351 = arith.constant dense<0.000000e+00> : vector<20x64xf32>
    %325 = tpu.matmul %323, %324, %cst_351 {dimension_numbers = #tpu.dot_dimension_numbers<[1], [0], [0], [1], [0, 0, 1, 1], [], []>} : vector<20x10xf32>, vector<10x64xf32>, vector<20x64xf32> -> vector<20x64xf32>
    %326 = arith.addf %321, %325 : vector<20x64xf32>
    %c23_352 = arith.constant 23 : index
    %c0_353 = arith.constant 0 : index
    %c0_354 = arith.constant 0 : index
    %327 = vector.load %arg4[%c23_352, %c0_353, %c0_354] : memref<25x20x10xf32, #tpu.memory_space<vmem>>, vector<1x20x10xf32>
    %328 = vector.shape_cast %327 : vector<1x20x10xf32> to vector<20x10xf32>
    %c0_355 = arith.constant 0 : index
    %c1472_356 = arith.constant 1472 : index
    %329 = vector.load %arg12[%c0_355, %c1472_356] : memref<10x1600xf32, #tpu.memory_space<vmem>>, vector<10x64xf32>
    %cst_357 = arith.constant dense<0.000000e+00> : vector<20x64xf32>
    %330 = tpu.matmul %328, %329, %cst_357 {dimension_numbers = #tpu.dot_dimension_numbers<[1], [0], [0], [1], [0, 0, 1, 1], [], []>} : vector<20x10xf32>, vector<10x64xf32>, vector<20x64xf32> -> vector<20x64xf32>
    %331 = arith.addf %326, %330 : vector<20x64xf32>
    %c24_358 = arith.constant 24 : index
    %c0_359 = arith.constant 0 : index
    %c0_360 = arith.constant 0 : index
    %332 = vector.load %arg4[%c24_358, %c0_359, %c0_360] : memref<25x20x10xf32, #tpu.memory_space<vmem>>, vector<1x20x10xf32>
    %333 = vector.shape_cast %332 : vector<1x20x10xf32> to vector<20x10xf32>
    %c0_361 = arith.constant 0 : index
    %c1536_362 = arith.constant 1536 : index
    %334 = vector.load %arg12[%c0_361, %c1536_362] : memref<10x1600xf32, #tpu.memory_space<vmem>>, vector<10x64xf32>
    %cst_363 = arith.constant dense<0.000000e+00> : vector<20x64xf32>
    %335 = tpu.matmul %333, %334, %cst_363 {dimension_numbers = #tpu.dot_dimension_numbers<[1], [0], [0], [1], [0, 0, 1, 1], [], []>} : vector<20x10xf32>, vector<10x64xf32>, vector<20x64xf32> -> vector<20x64xf32>
    %336 = arith.addf %331, %335 : vector<20x64xf32>
    %c0_364 = arith.constant 0 : index
    %c0_365 = arith.constant 0 : index
    %337 = vector.load %arg13[%c0_364, %c0_365] : memref<20x64xf32, #tpu.memory_space<vmem>>, vector<20x64xf32>
    tpu.vector_store %arg13[%c0_364, %c0_365], %336 {strides = array<i32>} : memref<20x64xf32, #tpu.memory_space<vmem>>, vector<20x64xf32>,
    %c0_366 = arith.constant 0 : index
    %c0_367 = arith.constant 0 : index
    %338 = vector.load %arg13[%c0_366, %c0_367] : memref<20x64xf32, #tpu.memory_space<vmem>>, vector<20x16xf32>
    %c0_368 = arith.constant 0 : index
    %c16_369 = arith.constant 16 : index
    %339 = vector.load %arg13[%c0_368, %c16_369] : memref<20x64xf32, #tpu.memory_space<vmem>>, vector<20x16xf32>
    %340 = arith.maximumf %338, %339 : vector<20x16xf32>
    %c0_370 = arith.constant 0 : index
    %c32_371 = arith.constant 32 : index
    %341 = vector.load %arg13[%c0_370, %c32_371] : memref<20x64xf32, #tpu.memory_space<vmem>>, vector<20x16xf32>
    %342 = arith.maximumf %340, %341 : vector<20x16xf32>
    %c0_372 = arith.constant 0 : index
    %c48_373 = arith.constant 48 : index
    %343 = vector.load %arg13[%c0_372, %c48_373] : memref<20x64xf32, #tpu.memory_space<vmem>>, vector<20x16xf32>
    %344 = arith.maximumf %342, %343 : vector<20x16xf32>
    %cst_374 = arith.constant 0.000000e+00 : f32
    %345 = vector.broadcast %cst_374 : f32 to vector<20x16xf32>
    %346 = arith.maximumf %344, %345 : vector<20x16xf32>
    %c0_375 = arith.constant 0 : index
    %c0_376 = arith.constant 0 : index
    %347 = vector.load %arg14[%c0_375, %c0_376] : memref<20x16xf32, #tpu.memory_space<vmem>>, vector<20x16xf32>
    tpu.vector_store %arg14[%c0_375, %c0_376], %346 {strides = array<i32>} : memref<20x16xf32, #tpu.memory_space<vmem>>, vector<20x16xf32>,
    %c0_377 = arith.constant 0 : index
    %c0_378 = arith.constant 0 : index
    %348 = vector.load %arg14[%c0_377, %c0_378] : memref<20x16xf32, #tpu.memory_space<vmem>>, vector<1x16xf32>
    %c1_379 = arith.constant 1 : index
    %c0_380 = arith.constant 0 : index
    %349 = vector.load %arg15[%c1_379, %c0_380] : memref<2x320xf32, #tpu.memory_space<vmem>>, vector<1x16xf32>
    tpu.vector_store %arg15[%c1_379, %c0_380], %348 {strides = array<i32>} : memref<2x320xf32, #tpu.memory_space<vmem>>, vector<1x16xf32>,
    %c1_381 = arith.constant 1 : index
    %c0_382 = arith.constant 0 : index
    %350 = vector.load %arg14[%c1_381, %c0_382] : memref<20x16xf32, #tpu.memory_space<vmem>>, vector<1x16xf32>
    %c1_383 = arith.constant 1 : index
    %c16_384 = arith.constant 16 : index
    %351 = vector.load %arg15[%c1_383, %c16_384] : memref<2x320xf32, #tpu.memory_space<vmem>>, vector<1x16xf32>
    tpu.vector_store %arg15[%c1_383, %c16_384], %350 {strides = array<i32>} : memref<2x320xf32, #tpu.memory_space<vmem>>, vector<1x16xf32>,
    %c2_385 = arith.constant 2 : index
    %c0_386 = arith.constant 0 : index
    %352 = vector.load %arg14[%c2_385, %c0_386] : memref<20x16xf32, #tpu.memory_space<vmem>>, vector<1x16xf32>
    %c1_387 = arith.constant 1 : index
    %c32_388 = arith.constant 32 : index
    %353 = vector.load %arg15[%c1_387, %c32_388] : memref<2x320xf32, #tpu.memory_space<vmem>>, vector<1x16xf32>
    tpu.vector_store %arg15[%c1_387, %c32_388], %352 {strides = array<i32>} : memref<2x320xf32, #tpu.memory_space<vmem>>, vector<1x16xf32>,
    %c3_389 = arith.constant 3 : index
    %c0_390 = arith.constant 0 : index
    %354 = vector.load %arg14[%c3_389, %c0_390] : memref<20x16xf32, #tpu.memory_space<vmem>>, vector<1x16xf32>
    %c1_391 = arith.constant 1 : index
    %c48_392 = arith.constant 48 : index
    %355 = vector.load %arg15[%c1_391, %c48_392] : memref<2x320xf32, #tpu.memory_space<vmem>>, vector<1x16xf32>
    tpu.vector_store %arg15[%c1_391, %c48_392], %354 {strides = array<i32>} : memref<2x320xf32, #tpu.memory_space<vmem>>, vector<1x16xf32>,
    %c4_393 = arith.constant 4 : index
    %c0_394 = arith.constant 0 : index
    %356 = vector.load %arg14[%c4_393, %c0_394] : memref<20x16xf32, #tpu.memory_space<vmem>>, vector<1x16xf32>
    %c1_395 = arith.constant 1 : index
    %c64_396 = arith.constant 64 : index
    %357 = vector.load %arg15[%c1_395, %c64_396] : memref<2x320xf32, #tpu.memory_space<vmem>>, vector<1x16xf32>
    tpu.vector_store %arg15[%c1_395, %c64_396], %356 {strides = array<i32>} : memref<2x320xf32, #tpu.memory_space<vmem>>, vector<1x16xf32>,
    %c5_397 = arith.constant 5 : index
    %c0_398 = arith.constant 0 : index
    %358 = vector.load %arg14[%c5_397, %c0_398] : memref<20x16xf32, #tpu.memory_space<vmem>>, vector<1x16xf32>
    %c1_399 = arith.constant 1 : index
    %c80_400 = arith.constant 80 : index
    %359 = vector.load %arg15[%c1_399, %c80_400] : memref<2x320xf32, #tpu.memory_space<vmem>>, vector<1x16xf32>
    tpu.vector_store %arg15[%c1_399, %c80_400], %358 {strides = array<i32>} : memref<2x320xf32, #tpu.memory_space<vmem>>, vector<1x16xf32>,
    %c6_401 = arith.constant 6 : index
    %c0_402 = arith.constant 0 : index
    %360 = vector.load %arg14[%c6_401, %c0_402] : memref<20x16xf32, #tpu.memory_space<vmem>>, vector<1x16xf32>
    %c1_403 = arith.constant 1 : index
    %c96_404 = arith.constant 96 : index
    %361 = vector.load %arg15[%c1_403, %c96_404] : memref<2x320xf32, #tpu.memory_space<vmem>>, vector<1x16xf32>
    tpu.vector_store %arg15[%c1_403, %c96_404], %360 {strides = array<i32>} : memref<2x320xf32, #tpu.memory_space<vmem>>, vector<1x16xf32>,
    %c7_405 = arith.constant 7 : index
    %c0_406 = arith.constant 0 : index
    %362 = vector.load %arg14[%c7_405, %c0_406] : memref<20x16xf32, #tpu.memory_space<vmem>>, vector<1x16xf32>
    %c1_407 = arith.constant 1 : index
    %c112_408 = arith.constant 112 : index
    %363 = vector.load %arg15[%c1_407, %c112_408] : memref<2x320xf32, #tpu.memory_space<vmem>>, vector<1x16xf32>
    tpu.vector_store %arg15[%c1_407, %c112_408], %362 {strides = array<i32>} : memref<2x320xf32, #tpu.memory_space<vmem>>, vector<1x16xf32>,
    %c8_409 = arith.constant 8 : index
    %c0_410 = arith.constant 0 : index
    %364 = vector.load %arg14[%c8_409, %c0_410] : memref<20x16xf32, #tpu.memory_space<vmem>>, vector<1x16xf32>
    %c1_411 = arith.constant 1 : index
    %c128_412 = arith.constant 128 : index
    %365 = vector.load %arg15[%c1_411, %c128_412] : memref<2x320xf32, #tpu.memory_space<vmem>>, vector<1x16xf32>
    tpu.vector_store %arg15[%c1_411, %c128_412], %364 {strides = array<i32>} : memref<2x320xf32, #tpu.memory_space<vmem>>, vector<1x16xf32>,
    %c9_413 = arith.constant 9 : index
    %c0_414 = arith.constant 0 : index
    %366 = vector.load %arg14[%c9_413, %c0_414] : memref<20x16xf32, #tpu.memory_space<vmem>>, vector<1x16xf32>
    %c1_415 = arith.constant 1 : index
    %c144_416 = arith.constant 144 : index
    %367 = vector.load %arg15[%c1_415, %c144_416] : memref<2x320xf32, #tpu.memory_space<vmem>>, vector<1x16xf32>
    tpu.vector_store %arg15[%c1_415, %c144_416], %366 {strides = array<i32>} : memref<2x320xf32, #tpu.memory_space<vmem>>, vector<1x16xf32>,
    %c10_417 = arith.constant 10 : index
    %c0_418 = arith.constant 0 : index
    %368 = vector.load %arg14[%c10_417, %c0_418] : memref<20x16xf32, #tpu.memory_space<vmem>>, vector<1x16xf32>
    %c1_419 = arith.constant 1 : index
    %c160_420 = arith.constant 160 : index
    %369 = vector.load %arg15[%c1_419, %c160_420] : memref<2x320xf32, #tpu.memory_space<vmem>>, vector<1x16xf32>
    tpu.vector_store %arg15[%c1_419, %c160_420], %368 {strides = array<i32>} : memref<2x320xf32, #tpu.memory_space<vmem>>, vector<1x16xf32>,
    %c11_421 = arith.constant 11 : index
    %c0_422 = arith.constant 0 : index
    %370 = vector.load %arg14[%c11_421, %c0_422] : memref<20x16xf32, #tpu.memory_space<vmem>>, vector<1x16xf32>
    %c1_423 = arith.constant 1 : index
    %c176_424 = arith.constant 176 : index
    %371 = vector.load %arg15[%c1_423, %c176_424] : memref<2x320xf32, #tpu.memory_space<vmem>>, vector<1x16xf32>
    tpu.vector_store %arg15[%c1_423, %c176_424], %370 {strides = array<i32>} : memref<2x320xf32, #tpu.memory_space<vmem>>, vector<1x16xf32>,
    %c12_425 = arith.constant 12 : index
    %c0_426 = arith.constant 0 : index
    %372 = vector.load %arg14[%c12_425, %c0_426] : memref<20x16xf32, #tpu.memory_space<vmem>>, vector<1x16xf32>
    %c1_427 = arith.constant 1 : index
    %c192_428 = arith.constant 192 : index
    %373 = vector.load %arg15[%c1_427, %c192_428] : memref<2x320xf32, #tpu.memory_space<vmem>>, vector<1x16xf32>
    tpu.vector_store %arg15[%c1_427, %c192_428], %372 {strides = array<i32>} : memref<2x320xf32, #tpu.memory_space<vmem>>, vector<1x16xf32>,
    %c13_429 = arith.constant 13 : index
    %c0_430 = arith.constant 0 : index
    %374 = vector.load %arg14[%c13_429, %c0_430] : memref<20x16xf32, #tpu.memory_space<vmem>>, vector<1x16xf32>
    %c1_431 = arith.constant 1 : index
    %c208_432 = arith.constant 208 : index
    %375 = vector.load %arg15[%c1_431, %c208_432] : memref<2x320xf32, #tpu.memory_space<vmem>>, vector<1x16xf32>
    tpu.vector_store %arg15[%c1_431, %c208_432], %374 {strides = array<i32>} : memref<2x320xf32, #tpu.memory_space<vmem>>, vector<1x16xf32>,
    %c14_433 = arith.constant 14 : index
    %c0_434 = arith.constant 0 : index
    %376 = vector.load %arg14[%c14_433, %c0_434] : memref<20x16xf32, #tpu.memory_space<vmem>>, vector<1x16xf32>
    %c1_435 = arith.constant 1 : index
    %c224_436 = arith.constant 224 : index
    %377 = vector.load %arg15[%c1_435, %c224_436] : memref<2x320xf32, #tpu.memory_space<vmem>>, vector<1x16xf32>
    tpu.vector_store %arg15[%c1_435, %c224_436], %376 {strides = array<i32>} : memref<2x320xf32, #tpu.memory_space<vmem>>, vector<1x16xf32>,
    %c15_437 = arith.constant 15 : index
    %c0_438 = arith.constant 0 : index
    %378 = vector.load %arg14[%c15_437, %c0_438] : memref<20x16xf32, #tpu.memory_space<vmem>>, vector<1x16xf32>
    %c1_439 = arith.constant 1 : index
    %c240_440 = arith.constant 240 : index
    %379 = vector.load %arg15[%c1_439, %c240_440] : memref<2x320xf32, #tpu.memory_space<vmem>>, vector<1x16xf32>
    tpu.vector_store %arg15[%c1_439, %c240_440], %378 {strides = array<i32>} : memref<2x320xf32, #tpu.memory_space<vmem>>, vector<1x16xf32>,
    %c16_441 = arith.constant 16 : index
    %c0_442 = arith.constant 0 : index
    %380 = vector.load %arg14[%c16_441, %c0_442] : memref<20x16xf32, #tpu.memory_space<vmem>>, vector<1x16xf32>
    %c1_443 = arith.constant 1 : index
    %c256_444 = arith.constant 256 : index
    %381 = vector.load %arg15[%c1_443, %c256_444] : memref<2x320xf32, #tpu.memory_space<vmem>>, vector<1x16xf32>
    tpu.vector_store %arg15[%c1_443, %c256_444], %380 {strides = array<i32>} : memref<2x320xf32, #tpu.memory_space<vmem>>, vector<1x16xf32>,
    %c17_445 = arith.constant 17 : index
    %c0_446 = arith.constant 0 : index
    %382 = vector.load %arg14[%c17_445, %c0_446] : memref<20x16xf32, #tpu.memory_space<vmem>>, vector<1x16xf32>
    %c1_447 = arith.constant 1 : index
    %c272_448 = arith.constant 272 : index
    %383 = vector.load %arg15[%c1_447, %c272_448] : memref<2x320xf32, #tpu.memory_space<vmem>>, vector<1x16xf32>
    tpu.vector_store %arg15[%c1_447, %c272_448], %382 {strides = array<i32>} : memref<2x320xf32, #tpu.memory_space<vmem>>, vector<1x16xf32>,
    %c18_449 = arith.constant 18 : index
    %c0_450 = arith.constant 0 : index
    %384 = vector.load %arg14[%c18_449, %c0_450] : memref<20x16xf32, #tpu.memory_space<vmem>>, vector<1x16xf32>
    %c1_451 = arith.constant 1 : index
    %c288_452 = arith.constant 288 : index
    %385 = vector.load %arg15[%c1_451, %c288_452] : memref<2x320xf32, #tpu.memory_space<vmem>>, vector<1x16xf32>
    tpu.vector_store %arg15[%c1_451, %c288_452], %384 {strides = array<i32>} : memref<2x320xf32, #tpu.memory_space<vmem>>, vector<1x16xf32>,
    %c19_453 = arith.constant 19 : index
    %c0_454 = arith.constant 0 : index
    %386 = vector.load %arg14[%c19_453, %c0_454] : memref<20x16xf32, #tpu.memory_space<vmem>>, vector<1x16xf32>
    %c1_455 = arith.constant 1 : index
    %c304_456 = arith.constant 304 : index
    %387 = vector.load %arg15[%c1_455, %c304_456] : memref<2x320xf32, #tpu.memory_space<vmem>>, vector<1x16xf32>
    tpu.vector_store %arg15[%c1_455, %c304_456], %386 {strides = array<i32>} : memref<2x320xf32, #tpu.memory_space<vmem>>, vector<1x16xf32>,
    %c0_457 = arith.constant 0 : index
    %c0_458 = arith.constant 0 : index
    %388 = vector.load %arg15[%c0_457, %c0_458] : memref<2x320xf32, #tpu.memory_space<vmem>>, vector<2x320xf32>
    %c0_459 = arith.constant 0 : index
    %c0_460 = arith.constant 0 : index
    %389 = vector.load %arg6[%c0_459, %c0_460] : memref<320x50xf32, #tpu.memory_space<vmem>>, vector<320x50xf32>
    %cst_461 = arith.constant dense<0.000000e+00> : vector<2x50xf32>
    %390 = tpu.matmul %388, %389, %cst_461 {dimension_numbers = #tpu.dot_dimension_numbers<[1], [0], [0], [1], [0, 0, 1, 1], [], []>} : vector<2x320xf32>, vector<320x50xf32>, vector<2x50xf32> -> vector<2x50xf32>
    %c0_462 = arith.constant 0 : index
    %c0_463 = arith.constant 0 : index
    %391 = vector.load %arg7[%c0_462, %c0_463] : memref<1x50xf32, #tpu.memory_space<vmem>>, vector<1x50xf32>
    %392 = vector.broadcast %391 : vector<1x50xf32> to vector<2x50xf32>
    %393 = arith.addf %390, %392 : vector<2x50xf32>
    %cst_464 = arith.constant 0.000000e+00 : f32
    %394 = vector.broadcast %cst_464 : f32 to vector<2x50xf32>
    %395 = arith.maximumf %393, %394 : vector<2x50xf32>
    %c0_465 = arith.constant 0 : index
    %c0_466 = arith.constant 0 : index
    %396 = vector.load %arg8[%c0_465, %c0_466] : memref<50x10xf32, #tpu.memory_space<vmem>>, vector<50x10xf32>
    %cst_467 = arith.constant dense<0.000000e+00> : vector<2x10xf32>
    %397 = tpu.matmul %395, %396, %cst_467 {dimension_numbers = #tpu.dot_dimension_numbers<[1], [0], [0], [1], [0, 0, 1, 1], [], []>} : vector<2x50xf32>, vector<50x10xf32>, vector<2x10xf32> -> vector<2x10xf32>
    %c0_468 = arith.constant 0 : index
    %c0_469 = arith.constant 0 : index
    %398 = vector.load %arg9[%c0_468, %c0_469] : memref<1x10xf32, #tpu.memory_space<vmem>>, vector<1x10xf32>
    %399 = vector.broadcast %398 : vector<1x10xf32> to vector<2x10xf32>
    %400 = arith.addf %397, %399 : vector<2x10xf32>
    %cst_470 = arith.constant dense<0xFF800000> : vector<2xf32>
    %401 = vector.multi_reduction <maximumf>, %400, %cst_470 [1] : vector<2x10xf32> to vector<2xf32>
    %402 = vector.shape_cast %401 : vector<2xf32> to vector<2x1xf32>
    %403 = vector.broadcast %402 : vector<2x1xf32> to vector<2x10xf32>
    %404 = arith.subf %400, %403 : vector<2x10xf32>
    %405 = math.exp %404 : vector<2x10xf32>
    %cst_471 = arith.constant dense<0.000000e+00> : vector<2xf32>
    %406 = vector.multi_reduction <add>, %405, %cst_471 [1] : vector<2x10xf32> to vector<2xf32>
    %407 = vector.shape_cast %406 : vector<2xf32> to vector<2x1xf32>
    %408 = tpu.reciprocal %407 {approx = true} : vector<2x1xf32> -> vector<2x1xf32>
    %409 = vector.broadcast %408 : vector<2x1xf32> to vector<2x10xf32>
    %410 = arith.mulf %405, %409 : vector<2x10xf32>
    %cst_472 = arith.constant dense<0xFF800000> : vector<2xf32>
    %411 = vector.multi_reduction <maximumf>, %410, %cst_472 [1] : vector<2x10xf32> to vector<2xf32>
    %412 = vector.shape_cast %411 : vector<2xf32> to vector<2x1xf32>
    %413 = vector.broadcast %412 : vector<2x1xf32> to vector<2x10xf32>
    %414 = arith.subf %410, %413 : vector<2x10xf32>
    %415 = math.exp %414 : vector<2x10xf32>
    %416 = vector.broadcast %412 : vector<2x1xf32> to vector<2x10xf32>
    %417 = arith.subf %410, %416 : vector<2x10xf32>
    %cst_473 = arith.constant dense<0.000000e+00> : vector<2xf32>
    %418 = vector.multi_reduction <add>, %415, %cst_473 [1] : vector<2x10xf32> to vector<2xf32>
    %419 = vector.shape_cast %418 : vector<2xf32> to vector<2x1xf32>
    %420 = math.log %419 : vector<2x1xf32>
    %421 = vector.broadcast %420 : vector<2x1xf32> to vector<2x10xf32>
    %422 = arith.subf %417, %421 : vector<2x10xf32>
    %c0_474 = arith.constant 0 : index
    %c0_475 = arith.constant 0 : index
    %423 = vector.load %arg10[%c0_474, %c0_475] : memref<2x10xf32, #tpu.memory_space<vmem>>, vector<2x10xf32>
    tpu.vector_store %arg10[%c0_474, %c0_475], %422 {strides = array<i32>} : memref<2x10xf32, #tpu.memory_space<vmem>>, vector<2x10xf32>,
    return
  }
}

</mosaic_0001>

<llo_original>
// kernel: cnn_soft_forward.1
$region0: #{cnn_soft_forward.1}
  #allocation0 [shape = 'u32[]', space=smem, size = 0x4, offset = 0x4, fixed_abs, tag = 'smem constant byte address 0x4 - core index']
  #allocation1 [shape = 'u32[72,128]{1,0:T(1,128)}', space=vmem, size = 0x9000, scoped, tag = 'internal scratch']
  #allocation2 [shape = 'f32[10,1152]{1,0:T(8,128)}', space=vmem, size = 0x12000, scoped, tag = 'scratch operand']
  #allocation3 [shape = 'f32[10,1600]{1,0:T(8,128)}', space=vmem, size = 0x1a000, scoped, tag = 'scratch operand']
  #allocation4 [shape = 'f32[20,64]{1,0:T(8,128)}', space=vmem, size = 0x3000, scoped, tag = 'scratch operand']
  #allocation5 [shape = 'f32[20,16]{1,0:T(8,128)}', space=vmem, size = 0x3000, scoped, tag = 'scratch operand']
  #allocation6 [shape = 'f32[2,320]{1,0:T(2,128)}', space=vmem, size = 0xc00, scoped, tag = 'scratch operand']
  %s0 = inlined_call_operand.vmem [shape: f32[25,1152], index: 0, kind: input, shape index: {}]
  %s1 = inlined_call_operand.vmem [shape: f32[10,25], index: 1, kind: input, shape index: {}]
  %s2 = inlined_call_operand.vmem [shape: f32[10,1], index: 2, kind: input, shape index: {}]
  %s3 = inlined_call_operand.vmem [shape: f32[144,1600], index: 3, kind: input, shape index: {}]
  %s4 = inlined_call_operand.vmem [shape: f32[25,20,10], index: 4, kind: input, shape index: {}]
  %s5 = inlined_call_operand.vmem [shape: f32[20,1], index: 5, kind: input, shape index: {}]
  %s6 = inlined_call_operand.vmem [shape: f32[320,50], index: 6, kind: input, shape index: {}]
  %s7 = inlined_call_operand.vmem [shape: f32[1,50], index: 7, kind: input, shape index: {}]
  %s8 = inlined_call_operand.vmem [shape: f32[50,10], index: 8, kind: input, shape index: {}]
  %s9 = inlined_call_operand.vmem [shape: f32[1,10], index: 9, kind: input, shape index: {}]
  %s10 = inlined_call_operand.hbm [shape: f32[2,10], index: 10, kind: output, shape index: {}]
  %s11 = sld [smem:[#allocation0]]
  $region50: #{cnn_soft_forward.1} parent=0
    _
  %s13 = ssub.s32 1, %s11
  %s14 = scalar_select 0, %s13, %s11
  $region1: #{cnn_soft_forward.1} parent=0
    #allocation7 [shape = 'u8[1024]{0}', space=vmem, size = 0x400, scoped, tag = 'output window, operand 0, single buffered']
    #allocation8 [shape = 's32[1]{0}', space=sflag, size = 0x4, scoped, tag = 'scoped memory for cnn_soft_forward.1']
    %15 = vsyncpa [#allocation8], 0
    // Predicated region
    $region2: #{cnn_soft_forward.1} parent=1 // pred_check
      _
    $region3: #{cnn_soft_forward.1} parent=1 // pred_check_branch
      %17 = sbr.rel (0) target = $region5
    $region4: #{cnn_soft_forward.1} parent=1 // pred_region
      _
    $region5: #{cnn_soft_forward.1} parent=1 // pred_fallthru
      _
    // Predicated region
    $region6: #{cnn_soft_forward.1} parent=1 // pred_check
      _
    $region7: #{cnn_soft_forward.1} parent=1 // pred_check_branch
      %19 = sbr.rel (0) target = $region9
    $region8: #{cnn_soft_forward.1} parent=1 // pred_region
      _
    $region9: #{cnn_soft_forward.1} parent=1 // pred_fallthru
      _
    // Predicated region
    $region10: #{cnn_soft_forward.1} parent=1 // pred_check
      _
    $region11: #{cnn_soft_forward.1} parent=1 // pred_check_branch
      %21 = sbr.rel (0) target = $region13
    $region12: #{cnn_soft_forward.1} parent=1 // pred_region
      _
    $region13: #{cnn_soft_forward.1} parent=1 // pred_fallthru
      _
    // Predicated region
    $region14: #{cnn_soft_forward.1} parent=1 // pred_check
      _
    $region15: #{cnn_soft_forward.1} parent=1 // pred_check_branch
      %23 = sbr.rel (0) target = $region17
    $region16: #{cnn_soft_forward.1} parent=1 // pred_region
      _
    $region17: #{cnn_soft_forward.1} parent=1 // pred_fallthru
      _
    // Predicated region
    $region18: #{cnn_soft_forward.1} parent=1 // pred_check
      _
    $region19: #{cnn_soft_forward.1} parent=1 // pred_check_branch
      %25 = sbr.rel (0) target = $region21
    $region20: #{cnn_soft_forward.1} parent=1 // pred_region
      _
    $region21: #{cnn_soft_forward.1} parent=1 // pred_fallthru
      _
    // Predicated region
    $region22: #{cnn_soft_forward.1} parent=1 // pred_check
      _
    $region23: #{cnn_soft_forward.1} parent=1 // pred_check_branch
      %27 = sbr.rel (0) target = $region25
    $region24: #{cnn_soft_forward.1} parent=1 // pred_region
      _
    $region25: #{cnn_soft_forward.1} parent=1 // pred_fallthru
      _
    // Predicated region
    $region26: #{cnn_soft_forward.1} parent=1 // pred_check
      _
    $region27: #{cnn_soft_forward.1} parent=1 // pred_check_branch
      %29 = sbr.rel (0) target = $region29
    $region28: #{cnn_soft_forward.1} parent=1 // pred_region
      _
    $region29: #{cnn_soft_forward.1} parent=1 // pred_fallthru
      _
    // Predicated region
    $region30: #{cnn_soft_forward.1} parent=1 // pred_check
      _
    $region31: #{cnn_soft_forward.1} parent=1 // pred_check_branch
      %31 = sbr.rel (0) target = $region33
    $region32: #{cnn_soft_forward.1} parent=1 // pred_region
      _
    $region33: #{cnn_soft_forward.1} parent=1 // pred_fallthru
      _
    // Predicated region
    $region34: #{cnn_soft_forward.1} parent=1 // pred_check
      _
    $region35: #{cnn_soft_forward.1} parent=1 // pred_check_branch
      %33 = sbr.rel (0) target = $region37
    $region36: #{cnn_soft_forward.1} parent=1 // pred_region
      _
    $region37: #{cnn_soft_forward.1} parent=1 // pred_fallthru
      _
    // Predicated region
    $region38: #{cnn_soft_forward.1} parent=1 // pred_check
      _
    $region39: #{cnn_soft_forward.1} parent=1 // pred_check_branch
      %35 = sbr.rel (0) target = $region41
    $region40: #{cnn_soft_forward.1} parent=1 // pred_region
      _
    $region41: #{cnn_soft_forward.1} parent=1 // pred_fallthru
      _
    %v36 = vld [vmem:[%s1] sm:$0xff]
    %v37 = vld [vmem:[%s1 + $0x8] sm:$0x3]
    %v38 = vld [vmem:[%s0] sm:$0xff]
    %v39 = vld [vmem:[%s0 + $0x8] sm:$0xff]
    %v40 = vld [vmem:[%s0 + $0x10] sm:$0xff]
    %v41 = vld [vmem:[%s0 + $0x18] sm:$0xff]
    %v42 = vld [vmem:[%s0 + $0x20] sm:$0xff]
    %v43 = vld [vmem:[%s0 + $0x28] sm:$0xff]
    %v44 = vld [vmem:[%s0 + $0x30] sm:$0xff]
    %v45 = vld [vmem:[%s0 + $0x38] sm:$0xff]
    %v46 = vld [vmem:[%s0 + $0x40] sm:$0xff]
    %v47 = vld [vmem:[%s0 + $0x48] sm:$0xff]
    %v48 = vld [vmem:[%s0 + $0x50] sm:$0xff]
    %v49 = vld [vmem:[%s0 + $0x58] sm:$0xff]
    %v50 = vld [vmem:[%s0 + $0x60] sm:$0xff]
    %v51 = vld [vmem:[%s0 + $0x68] sm:$0xff]
    %v52 = vld [vmem:[%s0 + $0x70] sm:$0xff]
    %v53 = vld [vmem:[%s0 + $0x78] sm:$0xff]
    %v54 = vld [vmem:[%s0 + $0x80] sm:$0xff]
    %v55 = vld [vmem:[%s0 + $0x88] sm:$0xff]
    %v56 = vld [vmem:[%s0 + $0x90] sm:$0xff]
    %v57 = vld [vmem:[%s0 + $0x98] sm:$0xff]
    %v58 = vld [vmem:[%s0 + $0xa0] sm:$0xff]
    %v59 = vld [vmem:[%s0 + $0xa8] sm:$0xff]
    %v60 = vld [vmem:[%s0 + $0xb0] sm:$0xff]
    %v61 = vld [vmem:[%s0 + $0xb8] sm:$0xff]
    %v62 = vld [vmem:[%s0 + $0xc0] sm:$0xff]
    %v63 = vld [vmem:[%s0 + $0xc8] sm:$0xff]
    %v64 = vld [vmem:[%s0 + $0xd0] sm:$0xff]
    %v65 = vld [vmem:[%s0 + $0xd8] sm:$0x1]
    %v66 = vld [vmem:[%s0 + $0xe0] sm:$0x1]
    %v67 = vld [vmem:[%s0 + $0xe8] sm:$0x1]
    %v68 = vld [vmem:[%s0 + $0xf0] sm:$0x1]
    %v69 = vld [vmem:[%s0 + $0xf8] sm:$0x1]
    %v70 = vld [vmem:[%s0 + $0x100] sm:$0x1]
    %v71 = vld [vmem:[%s0 + $0x108] sm:$0x1]
    %v72 = vld [vmem:[%s0 + $0x110] sm:$0x1]
    %v73 = vld [vmem:[%s0 + $0x118] sm:$0x1]
    %v74 = vld [vmem:[%s2] sm:$0xff]
    %v75 = vld [vmem:[%s2 + $0x8] sm:$0x3]
    %77 = vset.pattern.permute.xlu0 0
    %78 = vperm.xlu0 %77, %v74
    %v79 = vpop.permute.xlu0 %78
    %82 = vset.pattern.permute.xlu0 0
    %83 = vperm.xlu0 %82, %v75
    %v84 = vpop.permute.xlu0 %83
    %vm86 = vcmask 203776
    %v88 = vsel %vm86, %v36, 0
    %v91 = vsel %vm86, %v37, 0
    %vm93 = vcmask 1040384
    %v95 = vsel %vm93, %v65, 0
    %v98 = vsel %vm93, %v66, 0
    %v101 = vsel %vm93, %v67, 0
    %v104 = vsel %vm93, %v68, 0
    %v107 = vsel %vm93, %v69, 0
    %v110 = vsel %vm93, %v70, 0
    %v113 = vsel %vm93, %v71, 0
    %v116 = vsel %vm93, %v72, 0
    %v119 = vsel %vm93, %v73, 0
    %121 = vmatpush.msra.mxu0 0.0
    %122 = vmatpush.msra.mxu0 0.0
    %123 = vmatpush.msra.mxu0 0.0
    %124 = vmatpush.msra.mxu0 0.0
    %125 = vmatpush.msra.mxu0 0.0
    %126 = vmatpush.msra.mxu0 0.0
    %127 = vmatpush.msra.mxu0 0.0
    %128 = vmatpush.msra.mxu0 0.0
    %129 = vmatpush.msra.mxu0 0.0
    %130 = vmatpush.msra.mxu0 0.0
    %131 = vmatpush.msra.mxu0 0.0
    %132 = vmatpush.msra.mxu0 0.0
    %133 = vmatpush.msra.mxu0 %v95
    %134 = vmatpush.msra.mxu0 %v56
    %135 = vmatpush.msra.mxu0 %v47
    %136 = vmatpush.msra.mxu0 %v38
    %137 = vmatmul.f32.gmra.mxu0 %v88
    %v138 = vpop.f32.mrf.mxu0
    %v139 = vadd.f32 %v79, %v138
    %140 = vmatmul.f32.gmra.mxu0 %v91
    %v141 = vpop.f32.mrf.mxu0
    %v142 = vadd.f32 %v84, %v141
    %143 = vdwg.mxu0
    %144 = vmatpush.msra.mxu0 0.0
    %145 = vmatpush.msra.mxu0 0.0
    %146 = vmatpush.msra.mxu0 0.0
    %147 = vmatpush.msra.mxu0 0.0
    %148 = vmatpush.msra.mxu0 0.0
    %149 = vmatpush.msra.mxu0 0.0
    %150 = vmatpush.msra.mxu0 0.0
    %151 = vmatpush.msra.mxu0 0.0
    %152 = vmatpush.msra.mxu0 0.0
    %153 = vmatpush.msra.mxu0 0.0
    %154 = vmatpush.msra.mxu0 0.0
    %155 = vmatpush.msra.mxu0 0.0
    %156 = vmatpush.msra.mxu0 %v98
    %157 = vmatpush.msra.mxu0 %v57
    %158 = vmatpush.msra.mxu0 %v48
    %159 = vmatpush.msra.mxu0 %v39
    %160 = vmatmul.f32.gmra.mxu0 %v88
    %v161 = vpop.f32.mrf.mxu0
    %v162 = vadd.f32 %v79, %v161
    %163 = vmatmul.f32.gmra.mxu0 %v91
    %v164 = vpop.f32.mrf.mxu0
    %v165 = vadd.f32 %v84, %v164
    %166 = vdwg.mxu0
    %167 = vmatpush.msra.mxu0 0.0
    %168 = vmatpush.msra.mxu0 0.0
    %169 = vmatpush.msra.mxu0 0.0
    %170 = vmatpush.msra.mxu0 0.0
    %171 = vmatpush.msra.mxu0 0.0
    %172 = vmatpush.msra.mxu0 0.0
    %173 = vmatpush.msra.mxu0 0.0
    %174 = vmatpush.msra.mxu0 0.0
    %175 = vmatpush.msra.mxu0 0.0
    %176 = vmatpush.msra.mxu0 0.0
    %177 = vmatpush.msra.mxu0 0.0
    %178 = vmatpush.msra.mxu0 0.0
    %179 = vmatpush.msra.mxu0 %v101
    %180 = vmatpush.msra.mxu0 %v58
    %181 = vmatpush.msra.mxu0 %v49
    %182 = vmatpush.msra.mxu0 %v40
    %183 = vmatmul.f32.gmra.mxu0 %v88
    %v184 = vpop.f32.mrf.mxu0
    %v185 = vadd.f32 %v79, %v184
    %186 = vmatmul.f32.gmra.mxu0 %v91
    %v187 = vpop.f32.mrf.mxu0
    %v188 = vadd.f32 %v84, %v187
    %189 = vdwg.mxu0
    %190 = vmatpush.msra.mxu0 0.0
    %191 = vmatpush.msra.mxu0 0.0
    %192 = vmatpush.msra.mxu0 0.0
    %193 = vmatpush.msra.mxu0 0.0
    %194 = vmatpush.msra.mxu0 0.0
    %195 = vmatpush.msra.mxu0 0.0
    %196 = vmatpush.msra.mxu0 0.0
    %197 = vmatpush.msra.mxu0 0.0
    %198 = vmatpush.msra.mxu0 0.0
    %199 = vmatpush.msra.mxu0 0.0
    %200 = vmatpush.msra.mxu0 0.0
    %201 = vmatpush.msra.mxu0 0.0
    %202 = vmatpush.msra.mxu0 %v104
    %203 = vmatpush.msra.mxu0 %v59
    %204 = vmatpush.msra.mxu0 %v50
    %205 = vmatpush.msra.mxu0 %v41
    %206 = vmatmul.f32.gmra.mxu0 %v88
    %v207 = vpop.f32.mrf.mxu0
    %v208 = vadd.f32 %v79, %v207
    %209 = vmatmul.f32.gmra.mxu0 %v91
    %v210 = vpop.f32.mrf.mxu0
    %v211 = vadd.f32 %v84, %v210
    %212 = vdwg.mxu0
    %213 = vmatpush.msra.mxu0 0.0
    %214 = vmatpush.msra.mxu0 0.0
    %215 = vmatpush.msra.mxu0 0.0
    %216 = vmatpush.msra.mxu0 0.0
    %217 = vmatpush.msra.mxu0 0.0
    %218 = vmatpush.msra.mxu0 0.0
    %219 = vmatpush.msra.mxu0 0.0
    %220 = vmatpush.msra.mxu0 0.0
    %221 = vmatpush.msra.mxu0 0.0
    %222 = vmatpush.msra.mxu0 0.0
    %223 = vmatpush.msra.mxu0 0.0
    %224 = vmatpush.msra.mxu0 0.0
    %225 = vmatpush.msra.mxu0 %v107
    %226 = vmatpush.msra.mxu0 %v60
    %227 = vmatpush.msra.mxu0 %v51
    %228 = vmatpush.msra.mxu0 %v42
    %229 = vmatmul.f32.gmra.mxu0 %v88
    %v230 = vpop.f32.mrf.mxu0
    %v231 = vadd.f32 %v79, %v230
    %232 = vmatmul.f32.gmra.mxu0 %v91
    %v233 = vpop.f32.mrf.mxu0
    %v234 = vadd.f32 %v84, %v233
    %235 = vdwg.mxu0
    %236 = vmatpush.msra.mxu0 0.0
    %237 = vmatpush.msra.mxu0 0.0
    %238 = vmatpush.msra.mxu0 0.0
    %239 = vmatpush.msra.mxu0 0.0
    %240 = vmatpush.msra.mxu0 0.0
    %241 = vmatpush.msra.mxu0 0.0
    %242 = vmatpush.msra.mxu0 0.0
    %243 = vmatpush.msra.mxu0 0.0
    %244 = vmatpush.msra.mxu0 0.0
    %245 = vmatpush.msra.mxu0 0.0
    %246 = vmatpush.msra.mxu0 0.0
    %247 = vmatpush.msra.mxu0 0.0
    %248 = vmatpush.msra.mxu0 %v110
    %249 = vmatpush.msra.mxu0 %v61
    %250 = vmatpush.msra.mxu0 %v52
    %251 = vmatpush.msra.mxu0 %v43
    %252 = vmatmul.f32.gmra.mxu0 %v88
    %v253 = vpop.f32.mrf.mxu0
    %v254 = vadd.f32 %v79, %v253
    %255 = vmatmul.f32.gmra.mxu0 %v91
    %v256 = vpop.f32.mrf.mxu0
    %v257 = vadd.f32 %v84, %v256
    %258 = vdwg.mxu0
    %259 = vmatpush.msra.mxu0 0.0
    %260 = vmatpush.msra.mxu0 0.0
    %261 = vmatpush.msra.mxu0 0.0
    %262 = vmatpush.msra.mxu0 0.0
    %263 = vmatpush.msra.mxu0 0.0
    %264 = vmatpush.msra.mxu0 0.0
    %265 = vmatpush.msra.mxu0 0.0
    %266 = vmatpush.msra.mxu0 0.0
    %267 = vmatpush.msra.mxu0 0.0
    %268 = vmatpush.msra.mxu0 0.0
    %269 = vmatpush.msra.mxu0 0.0
    %270 = vmatpush.msra.mxu0 0.0
    %271 = vmatpush.msra.mxu0 %v113
    %272 = vmatpush.msra.mxu0 %v62
    %273 = vmatpush.msra.mxu0 %v53
    %274 = vmatpush.msra.mxu0 %v44
    %275 = vmatmul.f32.gmra.mxu0 %v88
    %v276 = vpop.f32.mrf.mxu0
    %v277 = vadd.f32 %v79, %v276
    %278 = vmatmul.f32.gmra.mxu0 %v91
    %v279 = vpop.f32.mrf.mxu0
    %v280 = vadd.f32 %v84, %v279
    %281 = vdwg.mxu0
    %282 = vmatpush.msra.mxu0 0.0
    %283 = vmatpush.msra.mxu0 0.0
    %284 = vmatpush.msra.mxu0 0.0
    %285 = vmatpush.msra.mxu0 0.0
    %286 = vmatpush.msra.mxu0 0.0
    %287 = vmatpush.msra.mxu0 0.0
    %288 = vmatpush.msra.mxu0 0.0
    %289 = vmatpush.msra.mxu0 0.0
    %290 = vmatpush.msra.mxu0 0.0
    %291 = vmatpush.msra.mxu0 0.0
    %292 = vmatpush.msra.mxu0 0.0
    %293 = vmatpush.msra.mxu0 0.0
    %294 = vmatpush.msra.mxu0 %v116
    %295 = vmatpush.msra.mxu0 %v63
    %296 = vmatpush.msra.mxu0 %v54
    %297 = vmatpush.msra.mxu0 %v45
    %298 = vmatmul.f32.gmra.mxu0 %v88
    %v299 = vpop.f32.mrf.mxu0
    %v300 = vadd.f32 %v79, %v299
    %301 = vmatmul.f32.gmra.mxu0 %v91
    %v302 = vpop.f32.mrf.mxu0
    %v303 = vadd.f32 %v84, %v302
    %304 = vdwg.mxu0
    %305 = vmatpush.msra.mxu0 0.0
    %306 = vmatpush.msra.mxu0 0.0
    %307 = vmatpush.msra.mxu0 0.0
    %308 = vmatpush.msra.mxu0 0.0
    %309 = vmatpush.msra.mxu0 0.0
    %310 = vmatpush.msra.mxu0 0.0
    %311 = vmatpush.msra.mxu0 0.0
    %312 = vmatpush.msra.mxu0 0.0
    %313 = vmatpush.msra.mxu0 0.0
    %314 = vmatpush.msra.mxu0 0.0
    %315 = vmatpush.msra.mxu0 0.0
    %316 = vmatpush.msra.mxu0 0.0
    %317 = vmatpush.msra.mxu0 %v119
    %318 = vmatpush.msra.mxu0 %v64
    %319 = vmatpush.msra.mxu0 %v55
    %320 = vmatpush.msra.mxu0 %v46
    %321 = vmatmul.f32.gmra.mxu0 %v88
    %v322 = vpop.f32.mrf.mxu0
    %v323 = vadd.f32 %v79, %v322
    %324 = vmatmul.f32.gmra.mxu0 %v91
    %v325 = vpop.f32.mrf.mxu0
    %v326 = vadd.f32 %v84, %v325
    %327 = vdwg.mxu0
    %328 = vst [vmem:[#allocation2] sm:$0xff] %v139
    %329 = vst [vmem:[#allocation2 + $0x8] sm:$0xff] %v162
    %330 = vst [vmem:[#allocation2 + $0x10] sm:$0xff] %v185
    %331 = vst [vmem:[#allocation2 + $0x18] sm:$0xff] %v208
    %332 = vst [vmem:[#allocation2 + $0x20] sm:$0xff] %v231
    %333 = vst [vmem:[#allocation2 + $0x28] sm:$0xff] %v254
    %334 = vst [vmem:[#allocation2 + $0x30] sm:$0xff] %v277
    %335 = vst [vmem:[#allocation2 + $0x38] sm:$0xff] %v300
    %336 = vst [vmem:[#allocation2 + $0x40] sm:$0xff] %v323
    %337 = vst [vmem:[#allocation2 + $0x48] sm:$0x3] %v142
    %338 = vst [vmem:[#allocation2 + $0x50] sm:$0x3] %v165
    %339 = vst [vmem:[#allocation2 + $0x58] sm:$0x3] %v188
    %340 = vst [vmem:[#allocation2 + $0x60] sm:$0x3] %v211
    %341 = vst [vmem:[#allocation2 + $0x68] sm:$0x3] %v234
    %342 = vst [vmem:[#allocation2 + $0x70] sm:$0x3] %v257
    %343 = vst [vmem:[#allocation2 + $0x78] sm:$0x3] %v280
    %344 = vst [vmem:[#allocation2 + $0x80] sm:$0x3] %v303
    %345 = vst [vmem:[#allocation2 + $0x88] sm:$0x3] %v326
    %v346 = vld [vmem:[%s3] sm:$0xff]
    %v347 = vld [vmem:[%s3 + $0x8] sm:$0xff]
    %v348 = vld [vmem:[%s3 + $0x10] sm:$0xff]
    %v349 = vld [vmem:[%s3 + $0x18] sm:$0xff]
    %v350 = vld [vmem:[%s3 + $0x20] sm:$0xff]
    %v351 = vld [vmem:[%s3 + $0x28] sm:$0xff]
    %v352 = vld [vmem:[%s3 + $0x30] sm:$0xff]
    %v353 = vld [vmem:[%s3 + $0x38] sm:$0xff]
    %v354 = vld [vmem:[%s3 + $0x40] sm:$0xff]
    %v355 = vld [vmem:[%s3 + $0x48] sm:$0xff]
    %v356 = vld [vmem:[%s3 + $0x50] sm:$0xff]
    %v357 = vld [vmem:[%s3 + $0x58] sm:$0xff]
    %v358 = vld [vmem:[%s3 + $0x60] sm:$0xff]
    %v359 = vld [vmem:[%s3 + $0x68] sm:$0xff]
    %v360 = vld [vmem:[%s3 + $0x70] sm:$0xff]
    %v361 = vld [vmem:[%s3 + $0x78] sm:$0xff]
    %v362 = vld [vmem:[%s3 + $0x80] sm:$0xff]
    %v363 = vld [vmem:[%s3 + $0x88] sm:$0xff]
    %v364 = vld [vmem:[%s3 + $0x90] sm:$0xff]
    %v365 = vld [vmem:[%s3 + $0x98] sm:$0xff]
    %v366 = vld [vmem:[%s3 + $0xa0] sm:$0xff]
    %v367 = vld [vmem:[%s3 + $0xa8] sm:$0xff]
    %v368 = vld [vmem:[%s3 + $0xb0] sm:$0xff]
    %v369 = vld [vmem:[%s3 + $0xb8] sm:$0xff]
    %v370 = vld [vmem:[%s3 + $0xc0] sm:$0xff]
    %v371 = vld [vmem:[%s3 + $0xc8] sm:$0xff]
    %v372 = vld [vmem:[%s3 + $0xd0] sm:$0xff]
    %v373 = vld [vmem:[%s3 + $0xd8] sm:$0xff]
    %v374 = vld [vmem:[%s3 + $0xe0] sm:$0xff]
    %v375 = vld [vmem:[%s3 + $0xe8] sm:$0xff]
    %v376 = vld [vmem:[%s3 + $0xf0] sm:$0xff]
    %v377 = vld [vmem:[%s3 + $0xf8] sm:$0xff]
    %v378 = vld [vmem:[%s3 + $0x100] sm:$0xff]
    %v379 = vld [vmem:[%s3 + $0x108] sm:$0xff]
    %v380 = vld [vmem:[%s3 + $0x110] sm:$0xff]
    %v381 = vld [vmem:[%s3 + $0x118] sm:$0xff]
    %v382 = vld [vmem:[%s3 + $0x120] sm:$0xff]
    %v383 = vld [vmem:[%s3 + $0x128] sm:$0xff]
    %v384 = vld [vmem:[%s3 + $0x130] sm:$0xff]
    %v385 = vld [vmem:[%s3 + $0x138] sm:$0xff]
    %v386 = vld [vmem:[%s3 + $0x140] sm:$0xff]
    %v387 = vld [vmem:[%s3 + $0x148] sm:$0xff]
    %v388 = vld [vmem:[%s3 + $0x150] sm:$0xff]
    %v389 = vld [vmem:[%s3 + $0x158] sm:$0xff]
    %v390 = vld [vmem:[%s3 + $0x160] sm:$0xff]
    %v391 = vld [vmem:[%s3 + $0x168] sm:$0xff]
    %v392 = vld [vmem:[%s3 + $0x170] sm:$0xff]
    %v393 = vld [vmem:[%s3 + $0x178] sm:$0xff]
    %v394 = vld [vmem:[%s3 + $0x180] sm:$0xff]
    %v395 = vld [vmem:[%s3 + $0x188] sm:$0xff]
    %v396 = vld [vmem:[%s3 + $0x190] sm:$0xff]
    %v397 = vld [vmem:[%s3 + $0x198] sm:$0xff]
    %v398 = vld [vmem:[%s3 + $0x1a0] sm:$0xff]
    %v399 = vld [vmem:[%s3 + $0x1a8] sm:$0xff]
    %v400 = vld [vmem:[%s3 + $0x1b0] sm:$0xff]
    %v401 = vld [vmem:[%s3 + $0x1b8] sm:$0xff]
    %v402 = vld [vmem:[%s3 + $0x1c0] sm:$0xff]
    %v403 = vld [vmem:[%s3 + $0x1c8] sm:$0xff]
    %v404 = vld [vmem:[%s3 + $0x1d0] sm:$0xff]
    %v405 = vld [vmem:[%s3 + $0x1d8] sm:$0xff]
    %v406 = vld [vmem:[%s3 + $0x1e0] sm:$0xff]
    %v407 = vld [vmem:[%s3 + $0x1e8] sm:$0xff]
    %v408 = vld [vmem:[%s3 + $0x1f0] sm:$0xff]
    %v409 = vld [vmem:[%s3 + $0x1f8] sm:$0xff]
    %v410 = vld [vmem:[%s3 + $0x200] sm:$0xff]
    %v411 = vld [vmem:[%s3 + $0x208] sm:$0xff]
    %v412 = vld [vmem:[%s3 + $0x210] sm:$0xff]
    %v413 = vld [vmem:[%s3 + $0x218] sm:$0xff]
    %v414 = vld [vmem:[%s3 + $0x220] sm:$0xff]
    %v415 = vld [vmem:[%s3 + $0x228] sm:$0xff]
    %v416 = vld [vmem:[%s3 + $0x230] sm:$0xff]
    %v417 = vld [vmem:[%s3 + $0x238] sm:$0xff]
    %v418 = vld [vmem:[%s3 + $0x240] sm:$0xff]
    %v419 = vld [vmem:[%s3 + $0x248] sm:$0xff]
    %v420 = vld [vmem:[%s3 + $0x250] sm:$0xff]
    %v421 = vld [vmem:[%s3 + $0x258] sm:$0xff]
    %v422 = vld [vmem:[%s3 + $0x260] sm:$0xff]
    %v423 = vld [vmem:[%s3 + $0x268] sm:$0xff]
    %v424 = vld [vmem:[%s3 + $0x270] sm:$0xff]
    %v425 = vld [vmem:[%s3 + $0x278] sm:$0xff]
    %v426 = vld [vmem:[%s3 + $0x280] sm:$0xff]
    %v427 = vld [vmem:[%s3 + $0x288] sm:$0xff]
    %v428 = vld [vmem:[%s3 + $0x290] sm:$0xff]
    %v429 = vld [vmem:[%s3 + $0x298] sm:$0xff]
    %v430 = vld [vmem:[%s3 + $0x2a0] sm:$0xff]
    %v431 = vld [vmem:[%s3 + $0x2a8] sm:$0xff]
    %v432 = vld [vmem:[%s3 + $0x2b0] sm:$0xff]
    %v433 = vld [vmem:[%s3 + $0x2b8] sm:$0xff]
    %v434 = vld [vmem:[%s3 + $0x2c0] sm:$0xff]
    %v435 = vld [vmem:[%s3 + $0x2c8] sm:$0xff]
    %v436 = vld [vmem:[%s3 + $0x2d0] sm:$0xff]
    %v437 = vld [vmem:[%s3 + $0x2d8] sm:$0xff]
    %v438 = vld [vmem:[%s3 + $0x2e0] sm:$0xff]
    %v439 = vld [vmem:[%s3 + $0x2e8] sm:$0xff]
    %v440 = vld [vmem:[%s3 + $0x2f0] sm:$0xff]
    %v441 = vld [vmem:[%s3 + $0x2f8] sm:$0xff]
    %v442 = vld [vmem:[%s3 + $0x300] sm:$0xff]
    %v443 = vld [vmem:[%s3 + $0x308] sm:$0xff]
    %v444 = vld [vmem:[%s3 + $0x310] sm:$0xff]
    %v445 = vld [vmem:[%s3 + $0x318] sm:$0xff]
    %v446 = vld [vmem:[%s3 + $0x320] sm:$0xff]
    %v447 = vld [vmem:[%s3 + $0x328] sm:$0xff]
    %v448 = vld [vmem:[%s3 + $0x330] sm:$0xff]
    %v449 = vld [vmem:[%s3 + $0x338] sm:$0xff]
    %v450 = vld [vmem:[%s3 + $0x340] sm:$0xff]
    %v451 = vld [vmem:[%s3 + $0x348] sm:$0xff]
    %v452 = vld [vmem:[%s3 + $0x350] sm:$0xff]
    %v453 = vld [vmem:[%s3 + $0x358] sm:$0xff]
    %v454 = vld [vmem:[%s3 + $0x360] sm:$0xff]
    %v455 = vld [vmem:[%s3 + $0x368] sm:$0xff]
    %v456 = vld [vmem:[%s3 + $0x370] sm:$0xff]
    %v457 = vld [vmem:[%s3 + $0x378] sm:$0xff]
    %v458 = vld [vmem:[%s3 + $0x380] sm:$0xff]
    %v459 = vld [vmem:[%s3 + $0x388] sm:$0xff]
    %v460 = vld [vmem:[%s3 + $0x390] sm:$0xff]
    %v461 = vld [vmem:[%s3 + $0x398] sm:$0xff]
    %v462 = vld [vmem:[%s3 + $0x3a0] sm:$0xff]
    %v463 = vld [vmem:[%s3 + $0x3a8] sm:$0xff]
    %v464 = vld [vmem:[%s3 + $0x3b0] sm:$0xff]
    %v465 = vld [vmem:[%s3 + $0x3b8] sm:$0xff]
    %v466 = vld [vmem:[%s3 + $0x3c0] sm:$0xff]
    %v467 = vld [vmem:[%s3 + $0x3c8] sm:$0xff]
    %v468 = vld [vmem:[%s3 + $0x3d0] sm:$0xff]
    %v469 = vld [vmem:[%s3 + $0x3d8] sm:$0xff]
    %v470 = vld [vmem:[%s3 + $0x3e0] sm:$0xff]
    %v471 = vld [vmem:[%s3 + $0x3e8] sm:$0xff]
    %v472 = vld [vmem:[%s3 + $0x3f0] sm:$0xff]
    %v473 = vld [vmem:[%s3 + $0x3f8] sm:$0xff]
    %v474 = vld [vmem:[%s3 + $0x400] sm:$0xff]
    %v475 = vld [vmem:[%s3 + $0x408] sm:$0xff]
    %v476 = vld [vmem:[%s3 + $0x410] sm:$0xff]
    %v477 = vld [vmem:[%s3 + $0x418] sm:$0xff]
    %v478 = vld [vmem:[%s3 + $0x420] sm:$0xff]
    %v479 = vld [vmem:[%s3 + $0x428] sm:$0xff]
    %v480 = vld [vmem:[%s3 + $0x430] sm:$0xff]
    %v481 = vld [vmem:[%s3 + $0x438] sm:$0xff]
    %v482 = vld [vmem:[%s3 + $0x440] sm:$0xff]
    %v483 = vld [vmem:[%s3 + $0x448] sm:$0xff]
    %v484 = vld [vmem:[%s3 + $0x450] sm:$0xff]
    %v485 = vld [vmem:[%s3 + $0x458] sm:$0xff]
    %v486 = vld [vmem:[%s3 + $0x460] sm:$0xff]
    %v487 = vld [vmem:[%s3 + $0x468] sm:$0xff]
    %v488 = vld [vmem:[%s3 + $0x470] sm:$0xff]
    %v489 = vld [vmem:[%s3 + $0x478] sm:$0xff]
    %v490 = vld [vmem:[%s3 + $0x480] sm:$0xff]
    %v491 = vld [vmem:[%s3 + $0x488] sm:$0xff]
    %v492 = vld [vmem:[%s3 + $0x490] sm:$0xff]
    %v493 = vld [vmem:[%s3 + $0x498] sm:$0xff]
    %v494 = vld [vmem:[%s3 + $0x4a0] sm:$0xff]
    %v495 = vld [vmem:[%s3 + $0x4a8] sm:$0xff]
    %v496 = vld [vmem:[%s3 + $0x4b0] sm:$0xff]
    %v497 = vld [vmem:[%s3 + $0x4b8] sm:$0xff]
    %v498 = vld [vmem:[%s3 + $0x4c0] sm:$0xff]
    %v499 = vld [vmem:[%s3 + $0x4c8] sm:$0xff]
    %v500 = vld [vmem:[%s3 + $0x4d0] sm:$0xff]
    %v501 = vld [vmem:[%s3 + $0x4d8] sm:$0xff]
    %v502 = vld [vmem:[%s3 + $0x4e0] sm:$0xff]
    %v503 = vld [vmem:[%s3 + $0x4e8] sm:$0xff]
    %v504 = vld [vmem:[%s3 + $0x4f0] sm:$0xff]
    %v505 = vld [vmem:[%s3 + $0x4f8] sm:$0xff]
    %v506 = vld [vmem:[%s3 + $0x500] sm:$0xff]
    %v507 = vld [vmem:[%s3 + $0x508] sm:$0xff]
    %v508 = vld [vmem:[%s3 + $0x510] sm:$0xff]
    %v509 = vld [vmem:[%s3 + $0x518] sm:$0xff]
    %v510 = vld [vmem:[%s3 + $0x520] sm:$0xff]
    %v511 = vld [vmem:[%s3 + $0x528] sm:$0xff]
    %v512 = vld [vmem:[%s3 + $0x530] sm:$0xff]
    %v513 = vld [vmem:[%s3 + $0x538] sm:$0xff]
    %v514 = vld [vmem:[%s3 + $0x540] sm:$0xff]
    %v515 = vld [vmem:[%s3 + $0x548] sm:$0xff]
    %v516 = vld [vmem:[%s3 + $0x550] sm:$0xff]
    %v517 = vld [vmem:[%s3 + $0x558] sm:$0xff]
    %v518 = vld [vmem:[%s3 + $0x560] sm:$0xff]
    %v519 = vld [vmem:[%s3 + $0x568] sm:$0xff]
    %v520 = vld [vmem:[%s3 + $0x570] sm:$0xff]
    %v521 = vld [vmem:[%s3 + $0x578] sm:$0xff]
    %v522 = vld [vmem:[%s3 + $0x580] sm:$0xff]
    %v523 = vld [vmem:[%s3 + $0x588] sm:$0xff]
    %v524 = vld [vmem:[%s3 + $0x590] sm:$0xff]
    %v525 = vld [vmem:[%s3 + $0x598] sm:$0xff]
    %v526 = vld [vmem:[%s3 + $0x5a0] sm:$0xff]
    %v527 = vld [vmem:[%s3 + $0x5a8] sm:$0xff]
    %v528 = vld [vmem:[%s3 + $0x5b0] sm:$0xff]
    %v529 = vld [vmem:[%s3 + $0x5b8] sm:$0xff]
    %v530 = vld [vmem:[%s3 + $0x5c0] sm:$0xff]
    %v531 = vld [vmem:[%s3 + $0x5c8] sm:$0xff]
    %v532 = vld [vmem:[%s3 + $0x5d0] sm:$0xff]
    %v533 = vld [vmem:[%s3 + $0x5d8] sm:$0xff]
    %v534 = vld [vmem:[%s3 + $0x5e0] sm:$0xff]
    %v535 = vld [vmem:[%s3 + $0x5e8] sm:$0xff]
    %v536 = vld [vmem:[%s3 + $0x5f0] sm:$0xff]
    %v537 = vld [vmem:[%s3 + $0x5f8] sm:$0xff]
    %v538 = vld [vmem:[%s3 + $0x600] sm:$0xff]
    %v539 = vld [vmem:[%s3 + $0x608] sm:$0xff]
    %v540 = vld [vmem:[%s3 + $0x610] sm:$0xff]
    %v541 = vld [vmem:[%s3 + $0x618] sm:$0xff]
    %v542 = vld [vmem:[%s3 + $0x620] sm:$0xff]
    %v543 = vld [vmem:[%s3 + $0x628] sm:$0xff]
    %v544 = vld [vmem:[%s3 + $0x630] sm:$0xff]
    %v545 = vld [vmem:[%s3 + $0x638] sm:$0xff]
    %v546 = vld [vmem:[%s3 + $0x640] sm:$0xff]
    %v547 = vld [vmem:[%s3 + $0x648] sm:$0xff]
    %v548 = vld [vmem:[%s3 + $0x650] sm:$0xff]
    %v549 = vld [vmem:[%s3 + $0x658] sm:$0xff]
    %v550 = vld [vmem:[%s3 + $0x660] sm:$0xff]
    %v551 = vld [vmem:[%s3 + $0x668] sm:$0xff]
    %v552 = vld [vmem:[%s3 + $0x670] sm:$0xff]
    %v553 = vld [vmem:[%s3 + $0x678] sm:$0xff]
    %v554 = vld [vmem:[%s3 + $0x680] sm:$0xff]
    %v555 = vld [vmem:[%s3 + $0x688] sm:$0xff]
    %v556 = vld [vmem:[%s3 + $0x690] sm:$0xff]
    %v557 = vld [vmem:[%s3 + $0x698] sm:$0xff]
    %v558 = vld [vmem:[%s3 + $0x6a0] sm:$0xff]
    %v559 = vld [vmem:[%s3 + $0x6a8] sm:$0xff]
    %v560 = vld [vmem:[%s3 + $0x6b0] sm:$0xff]
    %v561 = vld [vmem:[%s3 + $0x6b8] sm:$0xff]
    %v562 = vld [vmem:[%s3 + $0x6c0] sm:$0xff]
    %v563 = vld [vmem:[%s3 + $0x6c8] sm:$0xff]
    %v564 = vld [vmem:[%s3 + $0x6d0] sm:$0xff]
    %v565 = vld [vmem:[%s3 + $0x6d8] sm:$0xff]
    %v566 = vld [vmem:[%s3 + $0x6e0] sm:$0xff]
    %v567 = vld [vmem:[%s3 + $0x6e8] sm:$0xff]
    %v568 = vld [vmem:[%s3 + $0x6f0] sm:$0xff]
    %v569 = vld [vmem:[%s3 + $0x6f8] sm:$0xff]
    %v570 = vld [vmem:[%s3 + $0x700] sm:$0xff]
    %v571 = vld [vmem:[%s3 + $0x708] sm:$0xff]
    %v572 = vld [vmem:[%s3 + $0x710] sm:$0xff]
    %v573 = vld [vmem:[%s3 + $0x718] sm:$0xff]
    %v574 = vld [vmem:[%s3 + $0x720] sm:$0xff]
    %v575 = vld [vmem:[%s3 + $0x728] sm:$0xff]
    %v576 = vld [vmem:[%s3 + $0x730] sm:$0xff]
    %v577 = vld [vmem:[%s3 + $0x738] sm:$0xff]
    %v578 = vld [vmem:[%s3 + $0x740] sm:$0xff]
    %v579 = vld [vmem:[%s3 + $0x748] sm:$0xff]
    %v580 = vld [vmem:[#allocation2] sm:$0xff]
    %v581 = vld [vmem:[#allocation2 + $0x8] sm:$0xff]
    %v582 = vld [vmem:[#allocation2 + $0x48] sm:$0x3]
    %v583 = vld [vmem:[#allocation2 + $0x50] sm:$0x3]
    %v584 = vld [vmem:[#allocation2 + $0x10] sm:$0xff]
    %v585 = vld [vmem:[#allocation2 + $0x18] sm:$0xff]
    %v586 = vld [vmem:[#allocation2 + $0x58] sm:$0x3]
    %v587 = vld [vmem:[#allocation2 + $0x60] sm:$0x3]
    %592 = vrot.lane.b32.xlu0 %v584, 96
    %v593 = vpop.permute.xlu0 %592
    %594 = vrot.lane.b32.xlu0 %v585, 96
    %v595 = vpop.permute.xlu0 %594
    %596 = vrot.lane.b32.xlu0 %v586, 96
    %v597 = vpop.permute.xlu0 %596
    %598 = vrot.lane.b32.xlu0 %v587, 96
    %v599 = vpop.permute.xlu0 %598
    %vm600 = vcmask 785408
    %v601 = vsel %vm600, %v593, %v595
    %v602 = vsel %vm600, %v597, %v599
    %v607 = vmax.f32 %v580, %v601
    %v608 = vmax.f32 %v581, %v595
    %v609 = vmax.f32 %v582, %v602
    %v610 = vmax.f32 %v583, %v599
    %v611 = vld [vmem:[#allocation2 + $0x20] sm:$0xff]
    %v612 = vld [vmem:[#allocation2 + $0x28] sm:$0xff]
    %v613 = vld [vmem:[#allocation2 + $0x68] sm:$0x3]
    %v614 = vld [vmem:[#allocation2 + $0x70] sm:$0x3]
    %619 = vrot.lane.b32.xlu0 %v611, 64
    %v620 = vpop.permute.xlu0 %619
    %621 = vrot.lane.b32.xlu0 %v612, 64
    %v622 = vpop.permute.xlu0 %621
    %623 = vrot.lane.b32.xlu0 %v613, 64
    %v624 = vpop.permute.xlu0 %623
    %625 = vrot.lane.b32.xlu0 %v614, 64
    %v626 = vpop.permute.xlu0 %625
    %vm627 = vcmask 523264
    %v628 = vsel %vm627, %v620, %v622
    %v629 = vsel %vm627, %v624, %v626
    %v634 = vmax.f32 %v607, %v628
    %v635 = vmax.f32 %v608, %v622
    %v636 = vmax.f32 %v609, %v629
    %v637 = vmax.f32 %v610, %v626
    %v638 = vld [vmem:[#allocation2 + $0x30] sm:$0xff]
    %v639 = vld [vmem:[#allocation2 + $0x38] sm:$0xff]
    %v640 = vld [vmem:[#allocation2 + $0x78] sm:$0x3]
    %v641 = vld [vmem:[#allocation2 + $0x80] sm:$0x3]
    %646 = vrot.lane.b32.xlu0 %v638, 32
    %v647 = vpop.permute.xlu0 %646
    %648 = vrot.lane.b32.xlu0 %v639, 32
    %v649 = vpop.permute.xlu0 %648
    %650 = vrot.lane.b32.xlu0 %v640, 32
    %v651 = vpop.permute.xlu0 %650
    %652 = vrot.lane.b32.xlu0 %v641, 32
    %v653 = vpop.permute.xlu0 %652
    %vm654 = vcmask 261120
    %v655 = vsel %vm654, %v647, %v649
    %v656 = vsel %vm654, %v651, %v653
    %v661 = vmax.f32 %v634, %v655
    %v662 = vmax.f32 %v635, %v649
    %v663 = vmax.f32 %v636, %v656
    %v664 = vmax.f32 %v637, %v653
    %v665 = vmax.f32 %v661, 0.0
    %v666 = vmax.f32 %v662, 0.0
    %v667 = vmax.f32 %v663, 0.0
    %v668 = vmax.f32 %v664, 0.0
    %vm669 = vcmask 130048
    %v671 = vsel %vm669, %v666, 0
    %v674 = vsel %vm669, %v668, 0
    %676 = vmatpush.msra.mxu0 %v541
    %677 = vmatpush.msra.mxu0 %v528
    %678 = vmatpush.msra.mxu0 %v515
    %679 = vmatpush.msra.mxu0 %v502
    %680 = vmatpush.msra.mxu0 %v489
    %681 = vmatpush.msra.mxu0 %v476
    %682 = vmatpush.msra.mxu0 %v463
    %683 = vmatpush.msra.mxu0 %v450
    %684 = vmatpush.msra.mxu0 %v437
    %685 = vmatpush.msra.mxu0 %v424
    %686 = vmatpush.msra.mxu0 %v411
    %687 = vmatpush.msra.mxu0 %v398
    %688 = vmatpush.msra.mxu0 %v385
    %689 = vmatpush.msra.mxu0 %v372
    %690 = vmatpush.msra.mxu0 %v359
    %691 = vmatpush.msra.mxu0 %v346
    %692 = vmatmul.f32.gmra.mxu0 %v665
    %v693 = vpop.f32.mrf.mxu0
    %v694 = vadd.f32 0.0, %v693
    %695 = vmatmul.f32.gmra.mxu0 %v667
    %v696 = vpop.f32.mrf.mxu0
    %v697 = vadd.f32 0.0, %v696
    %698 = vdwg.mxu0
    %699 = vmatpush.msra.mxu0 0.0
    %700 = vmatpush.msra.mxu0 0.0
    %701 = vmatpush.msra.mxu0 0.0
    %702 = vmatpush.msra.mxu0 0.0
    %703 = vmatpush.msra.mxu0 0.0
    %704 = vmatpush.msra.mxu0 0.0
    %705 = vmatpush.msra.mxu0 0.0
    %706 = vmatpush.msra.mxu0 0.0
    %707 = vmatpush.msra.mxu0 0.0
    %708 = vmatpush.msra.mxu0 0.0
    %709 = vmatpush.msra.mxu0 0.0
    %710 = vmatpush.msra.mxu0 0.0
    %711 = vmatpush.msra.mxu0 0.0
    %712 = vmatpush.msra.mxu0 0.0
    %713 = vmatpush.msra.mxu0 %v567
    %714 = vmatpush.msra.mxu0 %v554
    %715 = vmatmul.f32.gmra.mxu0 %v671
    %v716 = vpop.f32.mrf.mxu0
    %v717 = vadd.f32 %v694, %v716
    %718 = vmatmul.f32.gmra.mxu0 %v674
    %v719 = vpop.f32.mrf.mxu0
    %v720 = vadd.f32 %v697, %v719
    %721 = vdwg.mxu0
    %722 = vmatpush.msra.mxu0 %v542
    %723 = vmatpush.msra.mxu0 %v529
    %724 = vmatpush.msra.mxu0 %v516
    %725 = vmatpush.msra.mxu0 %v503
    %726 = vmatpush.msra.mxu0 %v490
    %727 = vmatpush.msra.mxu0 %v477
    %728 = vmatpush.msra.mxu0 %v464
    %729 = vmatpush.msra.mxu0 %v451
    %730 = vmatpush.msra.mxu0 %v438
    %731 = vmatpush.msra.mxu0 %v425
    %732 = vmatpush.msra.mxu0 %v412
    %733 = vmatpush.msra.mxu0 %v399
    %734 = vmatpush.msra.mxu0 %v386
    %735 = vmatpush.msra.mxu0 %v373
    %736 = vmatpush.msra.mxu0 %v360
    %737 = vmatpush.msra.mxu0 %v347
    %738 = vmatmul.f32.gmra.mxu0 %v665
    %v739 = vpop.f32.mrf.mxu0
    %v740 = vadd.f32 0.0, %v739
    %741 = vmatmul.f32.gmra.mxu0 %v667
    %v742 = vpop.f32.mrf.mxu0
    %v743 = vadd.f32 0.0, %v742
    %744 = vdwg.mxu0
    %745 = vmatpush.msra.mxu0 0.0
    %746 = vmatpush.msra.mxu0 0.0
    %747 = vmatpush.msra.mxu0 0.0
    %748 = vmatpush.msra.mxu0 0.0
    %749 = vmatpush.msra.mxu0 0.0
    %750 = vmatpush.msra.mxu0 0.0
    %751 = vmatpush.msra.mxu0 0.0
    %752 = vmatpush.msra.mxu0 0.0
    %753 = vmatpush.msra.mxu0 0.0
    %754 = vmatpush.msra.mxu0 0.0
    %755 = vmatpush.msra.mxu0 0.0
    %756 = vmatpush.msra.mxu0 0.0
    %757 = vmatpush.msra.mxu0 0.0
    %758 = vmatpush.msra.mxu0 0.0
    %759 = vmatpush.msra.mxu0 %v568
    %760 = vmatpush.msra.mxu0 %v555
    %761 = vmatmul.f32.gmra.mxu0 %v671
    %v762 = vpop.f32.mrf.mxu0
    %v763 = vadd.f32 %v740, %v762
    %764 = vmatmul.f32.gmra.mxu0 %v674
    %v765 = vpop.f32.mrf.mxu0
    %v766 = vadd.f32 %v743, %v765
    %767 = vdwg.mxu0
    %768 = vmatpush.msra.mxu0 %v543
    %769 = vmatpush.msra.mxu0 %v530
    %770 = vmatpush.msra.mxu0 %v517
    %771 = vmatpush.msra.mxu0 %v504
    %772 = vmatpush.msra.mxu0 %v491
    %773 = vmatpush.msra.mxu0 %v478
    %774 = vmatpush.msra.mxu0 %v465
    %775 = vmatpush.msra.mxu0 %v452
    %776 = vmatpush.msra.mxu0 %v439
    %777 = vmatpush.msra.mxu0 %v426
    %778 = vmatpush.msra.mxu0 %v413
    %779 = vmatpush.msra.mxu0 %v400
    %780 = vmatpush.msra.mxu0 %v387
    %781 = vmatpush.msra.mxu0 %v374
    %782 = vmatpush.msra.mxu0 %v361
    %783 = vmatpush.msra.mxu0 %v348
    %784 = vmatmul.f32.gmra.mxu0 %v665
    %v785 = vpop.f32.mrf.mxu0
    %v786 = vadd.f32 0.0, %v785
    %787 = vmatmul.f32.gmra.mxu0 %v667
    %v788 = vpop.f32.mrf.mxu0
    %v789 = vadd.f32 0.0, %v788
    %790 = vdwg.mxu0
    %791 = vmatpush.msra.mxu0 0.0
    %792 = vmatpush.msra.mxu0 0.0
    %793 = vmatpush.msra.mxu0 0.0
    %794 = vmatpush.msra.mxu0 0.0
    %795 = vmatpush.msra.mxu0 0.0
    %796 = vmatpush.msra.mxu0 0.0
    %797 = vmatpush.msra.mxu0 0.0
    %798 = vmatpush.msra.mxu0 0.0
    %799 = vmatpush.msra.mxu0 0.0
    %800 = vmatpush.msra.mxu0 0.0
    %801 = vmatpush.msra.mxu0 0.0
    %802 = vmatpush.msra.mxu0 0.0
    %803 = vmatpush.msra.mxu0 0.0
    %804 = vmatpush.msra.mxu0 0.0
    %805 = vmatpush.msra.mxu0 %v569
    %806 = vmatpush.msra.mxu0 %v556
    %807 = vmatmul.f32.gmra.mxu0 %v671
    %v808 = vpop.f32.mrf.mxu0
    %v809 = vadd.f32 %v786, %v808
    %810 = vmatmul.f32.gmra.mxu0 %v674
    %v811 = vpop.f32.mrf.mxu0
    %v812 = vadd.f32 %v789, %v811
    %813 = vdwg.mxu0
    %814 = vmatpush.msra.mxu0 %v544
    %815 = vmatpush.msra.mxu0 %v531
    %816 = vmatpush.msra.mxu0 %v518
    %817 = vmatpush.msra.mxu0 %v505
    %818 = vmatpush.msra.mxu0 %v492
    %819 = vmatpush.msra.mxu0 %v479
    %820 = vmatpush.msra.mxu0 %v466
    %821 = vmatpush.msra.mxu0 %v453
    %822 = vmatpush.msra.mxu0 %v440
    %823 = vmatpush.msra.mxu0 %v427
    %824 = vmatpush.msra.mxu0 %v414
    %825 = vmatpush.msra.mxu0 %v401
    %826 = vmatpush.msra.mxu0 %v388
    %827 = vmatpush.msra.mxu0 %v375
    %828 = vmatpush.msra.mxu0 %v362
    %829 = vmatpush.msra.mxu0 %v349
    %830 = vmatmul.f32.gmra.mxu0 %v665
    %v831 = vpop.f32.mrf.mxu0
    %v832 = vadd.f32 0.0, %v831
    %833 = vmatmul.f32.gmra.mxu0 %v667
    %v834 = vpop.f32.mrf.mxu0
    %v835 = vadd.f32 0.0, %v834
    %836 = vdwg.mxu0
    %837 = vmatpush.msra.mxu0 0.0
    %838 = vmatpush.msra.mxu0 0.0
    %839 = vmatpush.msra.mxu0 0.0
    %840 = vmatpush.msra.mxu0 0.0
    %841 = vmatpush.msra.mxu0 0.0
    %842 = vmatpush.msra.mxu0 0.0
    %843 = vmatpush.msra.mxu0 0.0
    %844 = vmatpush.msra.mxu0 0.0
    %845 = vmatpush.msra.mxu0 0.0
    %846 = vmatpush.msra.mxu0 0.0
    %847 = vmatpush.msra.mxu0 0.0
    %848 = vmatpush.msra.mxu0 0.0
    %849 = vmatpush.msra.mxu0 0.0
    %850 = vmatpush.msra.mxu0 0.0
    %851 = vmatpush.msra.mxu0 %v570
    %852 = vmatpush.msra.mxu0 %v557
    %853 = vmatmul.f32.gmra.mxu0 %v671
    %v854 = vpop.f32.mrf.mxu0
    %v855 = vadd.f32 %v832, %v854
    %856 = vmatmul.f32.gmra.mxu0 %v674
    %v857 = vpop.f32.mrf.mxu0
    %v858 = vadd.f32 %v835, %v857
    %859 = vdwg.mxu0
    %860 = vmatpush.msra.mxu0 %v545
    %861 = vmatpush.msra.mxu0 %v532
    %862 = vmatpush.msra.mxu0 %v519
    %863 = vmatpush.msra.mxu0 %v506
    %864 = vmatpush.msra.mxu0 %v493
    %865 = vmatpush.msra.mxu0 %v480
    %866 = vmatpush.msra.mxu0 %v467
    %867 = vmatpush.msra.mxu0 %v454
    %868 = vmatpush.msra.mxu0 %v441
    %869 = vmatpush.msra.mxu0 %v428
    %870 = vmatpush.msra.mxu0 %v415
    %871 = vmatpush.msra.mxu0 %v402
    %872 = vmatpush.msra.mxu0 %v389
    %873 = vmatpush.msra.mxu0 %v376
    %874 = vmatpush.msra.mxu0 %v363
    %875 = vmatpush.msra.mxu0 %v350
    %876 = vmatmul.f32.gmra.mxu0 %v665
    %v877 = vpop.f32.mrf.mxu0
    %v878 = vadd.f32 0.0, %v877
    %879 = vmatmul.f32.gmra.mxu0 %v667
    %v880 = vpop.f32.mrf.mxu0
    %v881 = vadd.f32 0.0, %v880
    %882 = vdwg.mxu0
    %883 = vmatpush.msra.mxu0 0.0
    %884 = vmatpush.msra.mxu0 0.0
    %885 = vmatpush.msra.mxu0 0.0
    %886 = vmatpush.msra.mxu0 0.0
    %887 = vmatpush.msra.mxu0 0.0
    %888 = vmatpush.msra.mxu0 0.0
    %889 = vmatpush.msra.mxu0 0.0
    %890 = vmatpush.msra.mxu0 0.0
    %891 = vmatpush.msra.mxu0 0.0
    %892 = vmatpush.msra.mxu0 0.0
    %893 = vmatpush.msra.mxu0 0.0
    %894 = vmatpush.msra.mxu0 0.0
    %895 = vmatpush.msra.mxu0 0.0
    %896 = vmatpush.msra.mxu0 0.0
    %897 = vmatpush.msra.mxu0 %v571
    %898 = vmatpush.msra.mxu0 %v558
    %899 = vmatmul.f32.gmra.mxu0 %v671
    %v900 = vpop.f32.mrf.mxu0
    %v901 = vadd.f32 %v878, %v900
    %902 = vmatmul.f32.gmra.mxu0 %v674
    %v903 = vpop.f32.mrf.mxu0
    %v904 = vadd.f32 %v881, %v903
    %905 = vdwg.mxu0
    %906 = vmatpush.msra.mxu0 %v546
    %907 = vmatpush.msra.mxu0 %v533
    %908 = vmatpush.msra.mxu0 %v520
    %909 = vmatpush.msra.mxu0 %v507
    %910 = vmatpush.msra.mxu0 %v494
    %911 = vmatpush.msra.mxu0 %v481
    %912 = vmatpush.msra.mxu0 %v468
    %913 = vmatpush.msra.mxu0 %v455
    %914 = vmatpush.msra.mxu0 %v442
    %915 = vmatpush.msra.mxu0 %v429
    %916 = vmatpush.msra.mxu0 %v416
    %917 = vmatpush.msra.mxu0 %v403
    %918 = vmatpush.msra.mxu0 %v390
    %919 = vmatpush.msra.mxu0 %v377
    %920 = vmatpush.msra.mxu0 %v364
    %921 = vmatpush.msra.mxu0 %v351
    %922 = vmatmul.f32.gmra.mxu0 %v665
    %v923 = vpop.f32.mrf.mxu0
    %v924 = vadd.f32 0.0, %v923
    %925 = vmatmul.f32.gmra.mxu0 %v667
    %v926 = vpop.f32.mrf.mxu0
    %v927 = vadd.f32 0.0, %v926
    %928 = vdwg.mxu0
    %929 = vmatpush.msra.mxu0 0.0
    %930 = vmatpush.msra.mxu0 0.0
    %931 = vmatpush.msra.mxu0 0.0
    %932 = vmatpush.msra.mxu0 0.0
    %933 = vmatpush.msra.mxu0 0.0
    %934 = vmatpush.msra.mxu0 0.0
    %935 = vmatpush.msra.mxu0 0.0
    %936 = vmatpush.msra.mxu0 0.0
    %937 = vmatpush.msra.mxu0 0.0
    %938 = vmatpush.msra.mxu0 0.0
    %939 = vmatpush.msra.mxu0 0.0
    %940 = vmatpush.msra.mxu0 0.0
    %941 = vmatpush.msra.mxu0 0.0
    %942 = vmatpush.msra.mxu0 0.0
    %943 = vmatpush.msra.mxu0 %v572
    %944 = vmatpush.msra.mxu0 %v559
    %945 = vmatmul.f32.gmra.mxu0 %v671
    %v946 = vpop.f32.mrf.mxu0
    %v947 = vadd.f32 %v924, %v946
    %948 = vmatmul.f32.gmra.mxu0 %v674
    %v949 = vpop.f32.mrf.mxu0
    %v950 = vadd.f32 %v927, %v949
    %951 = vdwg.mxu0
    %952 = vmatpush.msra.mxu0 %v547
    %953 = vmatpush.msra.mxu0 %v534
    %954 = vmatpush.msra.mxu0 %v521
    %955 = vmatpush.msra.mxu0 %v508
    %956 = vmatpush.msra.mxu0 %v495
    %957 = vmatpush.msra.mxu0 %v482
    %958 = vmatpush.msra.mxu0 %v469
    %959 = vmatpush.msra.mxu0 %v456
    %960 = vmatpush.msra.mxu0 %v443
    %961 = vmatpush.msra.mxu0 %v430
    %962 = vmatpush.msra.mxu0 %v417
    %963 = vmatpush.msra.mxu0 %v404
    %964 = vmatpush.msra.mxu0 %v391
    %965 = vmatpush.msra.mxu0 %v378
    %966 = vmatpush.msra.mxu0 %v365
    %967 = vmatpush.msra.mxu0 %v352
    %968 = vmatmul.f32.gmra.mxu0 %v665
    %v969 = vpop.f32.mrf.mxu0
    %v970 = vadd.f32 0.0, %v969
    %971 = vmatmul.f32.gmra.mxu0 %v667
    %v972 = vpop.f32.mrf.mxu0
    %v973 = vadd.f32 0.0, %v972
    %974 = vdwg.mxu0
    %975 = vmatpush.msra.mxu0 0.0
    %976 = vmatpush.msra.mxu0 0.0
    %977 = vmatpush.msra.mxu0 0.0
    %978 = vmatpush.msra.mxu0 0.0
    %979 = vmatpush.msra.mxu0 0.0
    %980 = vmatpush.msra.mxu0 0.0
    %981 = vmatpush.msra.mxu0 0.0
    %982 = vmatpush.msra.mxu0 0.0
    %983 = vmatpush.msra.mxu0 0.0
    %984 = vmatpush.msra.mxu0 0.0
    %985 = vmatpush.msra.mxu0 0.0
    %986 = vmatpush.msra.mxu0 0.0
    %987 = vmatpush.msra.mxu0 0.0
    %988 = vmatpush.msra.mxu0 0.0
    %989 = vmatpush.msra.mxu0 %v573
    %990 = vmatpush.msra.mxu0 %v560
    %991 = vmatmul.f32.gmra.mxu0 %v671
    %v992 = vpop.f32.mrf.mxu0
    %v993 = vadd.f32 %v970, %v992
    %994 = vmatmul.f32.gmra.mxu0 %v674
    %v995 = vpop.f32.mrf.mxu0
    %v996 = vadd.f32 %v973, %v995
    %997 = vdwg.mxu0
    %998 = vmatpush.msra.mxu0 %v548
    %999 = vmatpush.msra.mxu0 %v535
    %1000 = vmatpush.msra.mxu0 %v522
    %1001 = vmatpush.msra.mxu0 %v509
    %1002 = vmatpush.msra.mxu0 %v496
    %1003 = vmatpush.msra.mxu0 %v483
    %1004 = vmatpush.msra.mxu0 %v470
    %1005 = vmatpush.msra.mxu0 %v457
    %1006 = vmatpush.msra.mxu0 %v444
    %1007 = vmatpush.msra.mxu0 %v431
    %1008 = vmatpush.msra.mxu0 %v418
    %1009 = vmatpush.msra.mxu0 %v405
    %1010 = vmatpush.msra.mxu0 %v392
    %1011 = vmatpush.msra.mxu0 %v379
    %1012 = vmatpush.msra.mxu0 %v366
    %1013 = vmatpush.msra.mxu0 %v353
    %1014 = vmatmul.f32.gmra.mxu0 %v665
    %v1015 = vpop.f32.mrf.mxu0
    %v1016 = vadd.f32 0.0, %v1015
    %1017 = vmatmul.f32.gmra.mxu0 %v667
    %v1018 = vpop.f32.mrf.mxu0
    %v1019 = vadd.f32 0.0, %v1018
    %1020 = vdwg.mxu0
    %1021 = vmatpush.msra.mxu0 0.0
    %1022 = vmatpush.msra.mxu0 0.0
    %1023 = vmatpush.msra.mxu0 0.0
    %1024 = vmatpush.msra.mxu0 0.0
    %1025 = vmatpush.msra.mxu0 0.0
    %1026 = vmatpush.msra.mxu0 0.0
    %1027 = vmatpush.msra.mxu0 0.0
    %1028 = vmatpush.msra.mxu0 0.0
    %1029 = vmatpush.msra.mxu0 0.0
    %1030 = vmatpush.msra.mxu0 0.0
    %1031 = vmatpush.msra.mxu0 0.0
    %1032 = vmatpush.msra.mxu0 0.0
    %1033 = vmatpush.msra.mxu0 0.0
    %1034 = vmatpush.msra.mxu0 0.0
    %1035 = vmatpush.msra.mxu0 %v574
    %1036 = vmatpush.msra.mxu0 %v561
    %1037 = vmatmul.f32.gmra.mxu0 %v671
    %v1038 = vpop.f32.mrf.mxu0
    %v1039 = vadd.f32 %v1016, %v1038
    %1040 = vmatmul.f32.gmra.mxu0 %v674
    %v1041 = vpop.f32.mrf.mxu0
    %v1042 = vadd.f32 %v1019, %v1041
    %1043 = vdwg.mxu0
    %1044 = vmatpush.msra.mxu0 %v549
    %1045 = vmatpush.msra.mxu0 %v536
    %1046 = vmatpush.msra.mxu0 %v523
    %1047 = vmatpush.msra.mxu0 %v510
    %1048 = vmatpush.msra.mxu0 %v497
    %1049 = vmatpush.msra.mxu0 %v484
    %1050 = vmatpush.msra.mxu0 %v471
    %1051 = vmatpush.msra.mxu0 %v458
    %1052 = vmatpush.msra.mxu0 %v445
    %1053 = vmatpush.msra.mxu0 %v432
    %1054 = vmatpush.msra.mxu0 %v419
    %1055 = vmatpush.msra.mxu0 %v406
    %1056 = vmatpush.msra.mxu0 %v393
    %1057 = vmatpush.msra.mxu0 %v380
    %1058 = vmatpush.msra.mxu0 %v367
    %1059 = vmatpush.msra.mxu0 %v354
    %1060 = vmatmul.f32.gmra.mxu0 %v665
    %v1061 = vpop.f32.mrf.mxu0
    %v1062 = vadd.f32 0.0, %v1061
    %1063 = vmatmul.f32.gmra.mxu0 %v667
    %v1064 = vpop.f32.mrf.mxu0
    %v1065 = vadd.f32 0.0, %v1064
    %1066 = vdwg.mxu0
    %1067 = vmatpush.msra.mxu0 0.0
    %1068 = vmatpush.msra.mxu0 0.0
    %1069 = vmatpush.msra.mxu0 0.0
    %1070 = vmatpush.msra.mxu0 0.0
    %1071 = vmatpush.msra.mxu0 0.0
    %1072 = vmatpush.msra.mxu0 0.0
    %1073 = vmatpush.msra.mxu0 0.0
    %1074 = vmatpush.msra.mxu0 0.0
    %1075 = vmatpush.msra.mxu0 0.0
    %1076 = vmatpush.msra.mxu0 0.0
    %1077 = vmatpush.msra.mxu0 0.0
    %1078 = vmatpush.msra.mxu0 0.0
    %1079 = vmatpush.msra.mxu0 0.0
    %1080 = vmatpush.msra.mxu0 0.0
    %1081 = vmatpush.msra.mxu0 %v575
    %1082 = vmatpush.msra.mxu0 %v562
    %1083 = vmatmul.f32.gmra.mxu0 %v671
    %v1084 = vpop.f32.mrf.mxu0
    %v1085 = vadd.f32 %v1062, %v1084
    %1086 = vmatmul.f32.gmra.mxu0 %v674
    %v1087 = vpop.f32.mrf.mxu0
    %v1088 = vadd.f32 %v1065, %v1087
    %1089 = vdwg.mxu0
    %1090 = vmatpush.msra.mxu0 %v550
    %1091 = vmatpush.msra.mxu0 %v537
    %1092 = vmatpush.msra.mxu0 %v524
    %1093 = vmatpush.msra.mxu0 %v511
    %1094 = vmatpush.msra.mxu0 %v498
    %1095 = vmatpush.msra.mxu0 %v485
    %1096 = vmatpush.msra.mxu0 %v472
    %1097 = vmatpush.msra.mxu0 %v459
    %1098 = vmatpush.msra.mxu0 %v446
    %1099 = vmatpush.msra.mxu0 %v433
    %1100 = vmatpush.msra.mxu0 %v420
    %1101 = vmatpush.msra.mxu0 %v407
    %1102 = vmatpush.msra.mxu0 %v394
    %1103 = vmatpush.msra.mxu0 %v381
    %1104 = vmatpush.msra.mxu0 %v368
    %1105 = vmatpush.msra.mxu0 %v355
    %1106 = vmatmul.f32.gmra.mxu0 %v665
    %v1107 = vpop.f32.mrf.mxu0
    %v1108 = vadd.f32 0.0, %v1107
    %1109 = vmatmul.f32.gmra.mxu0 %v667
    %v1110 = vpop.f32.mrf.mxu0
    %v1111 = vadd.f32 0.0, %v1110
    %1112 = vdwg.mxu0
    %1113 = vmatpush.msra.mxu0 0.0
    %1114 = vmatpush.msra.mxu0 0.0
    %1115 = vmatpush.msra.mxu0 0.0
    %1116 = vmatpush.msra.mxu0 0.0
    %1117 = vmatpush.msra.mxu0 0.0
    %1118 = vmatpush.msra.mxu0 0.0
    %1119 = vmatpush.msra.mxu0 0.0
    %1120 = vmatpush.msra.mxu0 0.0
    %1121 = vmatpush.msra.mxu0 0.0
    %1122 = vmatpush.msra.mxu0 0.0
    %1123 = vmatpush.msra.mxu0 0.0
    %1124 = vmatpush.msra.mxu0 0.0
    %1125 = vmatpush.msra.mxu0 0.0
    %1126 = vmatpush.msra.mxu0 0.0
    %1127 = vmatpush.msra.mxu0 %v576
    %1128 = vmatpush.msra.mxu0 %v563
    %1129 = vmatmul.f32.gmra.mxu0 %v671
    %v1130 = vpop.f32.mrf.mxu0
    %v1131 = vadd.f32 %v1108, %v1130
    %1132 = vmatmul.f32.gmra.mxu0 %v674
    %v1133 = vpop.f32.mrf.mxu0
    %v1134 = vadd.f32 %v1111, %v1133
    %1135 = vdwg.mxu0
    %1136 = vmatpush.msra.mxu0 %v551
    %1137 = vmatpush.msra.mxu0 %v538
    %1138 = vmatpush.msra.mxu0 %v525
    %1139 = vmatpush.msra.mxu0 %v512
    %1140 = vmatpush.msra.mxu0 %v499
    %1141 = vmatpush.msra.mxu0 %v486
    %1142 = vmatpush.msra.mxu0 %v473
    %1143 = vmatpush.msra.mxu0 %v460
    %1144 = vmatpush.msra.mxu0 %v447
    %1145 = vmatpush.msra.mxu0 %v434
    %1146 = vmatpush.msra.mxu0 %v421
    %1147 = vmatpush.msra.mxu0 %v408
    %1148 = vmatpush.msra.mxu0 %v395
    %1149 = vmatpush.msra.mxu0 %v382
    %1150 = vmatpush.msra.mxu0 %v369
    %1151 = vmatpush.msra.mxu0 %v356
    %1152 = vmatmul.f32.gmra.mxu0 %v665
    %v1153 = vpop.f32.mrf.mxu0
    %v1154 = vadd.f32 0.0, %v1153
    %1155 = vmatmul.f32.gmra.mxu0 %v667
    %v1156 = vpop.f32.mrf.mxu0
    %v1157 = vadd.f32 0.0, %v1156
    %1158 = vdwg.mxu0
    %1159 = vmatpush.msra.mxu0 0.0
    %1160 = vmatpush.msra.mxu0 0.0
    %1161 = vmatpush.msra.mxu0 0.0
    %1162 = vmatpush.msra.mxu0 0.0
    %1163 = vmatpush.msra.mxu0 0.0
    %1164 = vmatpush.msra.mxu0 0.0
    %1165 = vmatpush.msra.mxu0 0.0
    %1166 = vmatpush.msra.mxu0 0.0
    %1167 = vmatpush.msra.mxu0 0.0
    %1168 = vmatpush.msra.mxu0 0.0
    %1169 = vmatpush.msra.mxu0 0.0
    %1170 = vmatpush.msra.mxu0 0.0
    %1171 = vmatpush.msra.mxu0 0.0
    %1172 = vmatpush.msra.mxu0 0.0
    %1173 = vmatpush.msra.mxu0 %v577
    %1174 = vmatpush.msra.mxu0 %v564
    %1175 = vmatmul.f32.gmra.mxu0 %v671
    %v1176 = vpop.f32.mrf.mxu0
    %v1177 = vadd.f32 %v1154, %v1176
    %1178 = vmatmul.f32.gmra.mxu0 %v674
    %v1179 = vpop.f32.mrf.mxu0
    %v1180 = vadd.f32 %v1157, %v1179
    %1181 = vdwg.mxu0
    %1182 = vmatpush.msra.mxu0 %v552
    %1183 = vmatpush.msra.mxu0 %v539
    %1184 = vmatpush.msra.mxu0 %v526
    %1185 = vmatpush.msra.mxu0 %v513
    %1186 = vmatpush.msra.mxu0 %v500
    %1187 = vmatpush.msra.mxu0 %v487
    %1188 = vmatpush.msra.mxu0 %v474
    %1189 = vmatpush.msra.mxu0 %v461
    %1190 = vmatpush.msra.mxu0 %v448
    %1191 = vmatpush.msra.mxu0 %v435
    %1192 = vmatpush.msra.mxu0 %v422
    %1193 = vmatpush.msra.mxu0 %v409
    %1194 = vmatpush.msra.mxu0 %v396
    %1195 = vmatpush.msra.mxu0 %v383
    %1196 = vmatpush.msra.mxu0 %v370
    %1197 = vmatpush.msra.mxu0 %v357
    %1198 = vmatmul.f32.gmra.mxu0 %v665
    %v1199 = vpop.f32.mrf.mxu0
    %v1200 = vadd.f32 0.0, %v1199
    %1201 = vmatmul.f32.gmra.mxu0 %v667
    %v1202 = vpop.f32.mrf.mxu0
    %v1203 = vadd.f32 0.0, %v1202
    %1204 = vdwg.mxu0
    %1205 = vmatpush.msra.mxu0 0.0
    %1206 = vmatpush.msra.mxu0 0.0
    %1207 = vmatpush.msra.mxu0 0.0
    %1208 = vmatpush.msra.mxu0 0.0
    %1209 = vmatpush.msra.mxu0 0.0
    %1210 = vmatpush.msra.mxu0 0.0
    %1211 = vmatpush.msra.mxu0 0.0
    %1212 = vmatpush.msra.mxu0 0.0
    %1213 = vmatpush.msra.mxu0 0.0
    %1214 = vmatpush.msra.mxu0 0.0
    %1215 = vmatpush.msra.mxu0 0.0
    %1216 = vmatpush.msra.mxu0 0.0
    %1217 = vmatpush.msra.mxu0 0.0
    %1218 = vmatpush.msra.mxu0 0.0
    %1219 = vmatpush.msra.mxu0 %v578
    %1220 = vmatpush.msra.mxu0 %v565
    %1221 = vmatmul.f32.gmra.mxu0 %v671
    %v1222 = vpop.f32.mrf.mxu0
    %v1223 = vadd.f32 %v1200, %v1222
    %1224 = vmatmul.f32.gmra.mxu0 %v674
    %v1225 = vpop.f32.mrf.mxu0
    %v1226 = vadd.f32 %v1203, %v1225
    %1227 = vdwg.mxu0
    %1228 = vmatpush.msra.mxu0 %v553
    %1229 = vmatpush.msra.mxu0 %v540
    %1230 = vmatpush.msra.mxu0 %v527
    %1231 = vmatpush.msra.mxu0 %v514
    %1232 = vmatpush.msra.mxu0 %v501
    %1233 = vmatpush.msra.mxu0 %v488
    %1234 = vmatpush.msra.mxu0 %v475
    %1235 = vmatpush.msra.mxu0 %v462
    %1236 = vmatpush.msra.mxu0 %v449
    %1237 = vmatpush.msra.mxu0 %v436
    %1238 = vmatpush.msra.mxu0 %v423
    %1239 = vmatpush.msra.mxu0 %v410
    %1240 = vmatpush.msra.mxu0 %v397
    %1241 = vmatpush.msra.mxu0 %v384
    %1242 = vmatpush.msra.mxu0 %v371
    %1243 = vmatpush.msra.mxu0 %v358
    %1244 = vmatmul.f32.gmra.mxu0 %v665
    %v1245 = vpop.f32.mrf.mxu0
    %v1246 = vadd.f32 0.0, %v1245
    %1247 = vmatmul.f32.gmra.mxu0 %v667
    %v1248 = vpop.f32.mrf.mxu0
    %v1249 = vadd.f32 0.0, %v1248
    %1250 = vdwg.mxu0
    %1251 = vmatpush.msra.mxu0 0.0
    %1252 = vmatpush.msra.mxu0 0.0
    %1253 = vmatpush.msra.mxu0 0.0
    %1254 = vmatpush.msra.mxu0 0.0
    %1255 = vmatpush.msra.mxu0 0.0
    %1256 = vmatpush.msra.mxu0 0.0
    %1257 = vmatpush.msra.mxu0 0.0
    %1258 = vmatpush.msra.mxu0 0.0
    %1259 = vmatpush.msra.mxu0 0.0
    %1260 = vmatpush.msra.mxu0 0.0
    %1261 = vmatpush.msra.mxu0 0.0
    %1262 = vmatpush.msra.mxu0 0.0
    %1263 = vmatpush.msra.mxu0 0.0
    %1264 = vmatpush.msra.mxu0 0.0
    %1265 = vmatpush.msra.mxu0 %v579
    %1266 = vmatpush.msra.mxu0 %v566
    %1267 = vmatmul.f32.gmra.mxu0 %v671
    %v1268 = vpop.f32.mrf.mxu0
    %v1269 = vadd.f32 %v1246, %v1268
    %1270 = vmatmul.f32.gmra.mxu0 %v674
    %v1271 = vpop.f32.mrf.mxu0
    %v1272 = vadd.f32 %v1249, %v1271
    %1273 = vdwg.mxu0
    %1274 = vst [vmem:[#allocation3] sm:$0xff] %v717
    %1275 = vst [vmem:[#allocation3 + $0x8] sm:$0xff] %v763
    %1276 = vst [vmem:[#allocation3 + $0x10] sm:$0xff] %v809
    %1277 = vst [vmem:[#allocation3 + $0x18] sm:$0xff] %v855
    %1278 = vst [vmem:[#allocation3 + $0x20] sm:$0xff] %v901
    %1279 = vst [vmem:[#allocation3 + $0x28] sm:$0xff] %v947
    %1280 = vst [vmem:[#allocation3 + $0x30] sm:$0xff] %v993
    %1281 = vst [vmem:[#allocation3 + $0x38] sm:$0xff] %v1039
    %1282 = vst [vmem:[#allocation3 + $0x40] sm:$0xff] %v1085
    %1283 = vst [vmem:[#allocation3 + $0x48] sm:$0xff] %v1131
    %1284 = vst [vmem:[#allocation3 + $0x50] sm:$0xff] %v1177
    %1285 = vst [vmem:[#allocation3 + $0x58] sm:$0xff] %v1223
    %1286 = vst.msk [vmem:[#allocation3 + $0x60] sm:$0xff] %vm627, %v1269
    %1287 = vst [vmem:[#allocation3 + $0x68] sm:$0x3] %v720
    %1288 = vst [vmem:[#allocation3 + $0x70] sm:$0x3] %v766
    %1289 = vst [vmem:[#allocation3 + $0x78] sm:$0x3] %v812
    %1290 = vst [vmem:[#allocation3 + $0x80] sm:$0x3] %v858
    %1291 = vst [vmem:[#allocation3 + $0x88] sm:$0x3] %v904
    %1292 = vst [vmem:[#allocation3 + $0x90] sm:$0x3] %v950
    %1293 = vst [vmem:[#allocation3 + $0x98] sm:$0x3] %v996
    %1294 = vst [vmem:[#allocation3 + $0xa0] sm:$0x3] %v1042
    %1295 = vst [vmem:[#allocation3 + $0xa8] sm:$0x3] %v1088
    %1296 = vst [vmem:[#allocation3 + $0xb0] sm:$0x3] %v1134
    %1297 = vst [vmem:[#allocation3 + $0xb8] sm:$0x3] %v1180
    %1298 = vst [vmem:[#allocation3 + $0xc0] sm:$0x3] %v1226
    %vm1299 = vcmask 517120
    %1300 = vst.msk [vmem:[#allocation3 + $0xc8] sm:$0x3] %vm1299, %v1272
    %v1301 = vld [vmem:[%s5] sm:$0xff]
    %v1302 = vld [vmem:[%s5 + $0x8] sm:$0xff]
    %v1303 = vld [vmem:[%s5 + $0x10] sm:$0xf]
    %1305 = vset.pattern.permute.xlu0 0
    %1306 = vperm.xlu0 %1305, %v1301
    %v1307 = vpop.permute.xlu0 %1306
    %1310 = vset.pattern.permute.xlu0 0
    %1311 = vperm.xlu0 %1310, %v1302
    %v1312 = vpop.permute.xlu0 %1311
    %1315 = vset.pattern.permute.xlu0 0
    %1316 = vperm.xlu0 %1315, %v1303
    %v1317 = vpop.permute.xlu0 %1316
    %v1319 = vld [vmem:[%s4] sm:$0xff]
    %v1320 = vld [vmem:[%s4 + $0x8] sm:$0xff]
    %v1321 = vld [vmem:[%s4 + $0x10] sm:$0xf]
    %v1322 = vld [vmem:[#allocation3] sm:$0xff]
    %v1323 = vld [vmem:[#allocation3 + $0x68] sm:$0x3]
    %vm1324 = vcmask 80896
    %v1326 = vsel %vm1324, %v1319, 0
    %v1329 = vsel %vm1324, %v1320, 0
    %v1332 = vsel %vm1324, %v1321, 0
    %vm1334 = vcmask 1041408
    %v1336 = vsel %vm1334, %v1323, 0
    %1338 = vmatpush.msra.mxu0 0.0
    %1339 = vmatpush.msra.mxu0 0.0
    %1340 = vmatpush.msra.mxu0 0.0
    %1341 = vmatpush.msra.mxu0 0.0
    %1342 = vmatpush.msra.mxu0 0.0
    %1343 = vmatpush.msra.mxu0 0.0
    %1344 = vmatpush.msra.mxu0 0.0
    %1345 = vmatpush.msra.mxu0 0.0
    %1346 = vmatpush.msra.mxu0 0.0
    %1347 = vmatpush.msra.mxu0 0.0
    %1348 = vmatpush.msra.mxu0 0.0
    %1349 = vmatpush.msra.mxu0 0.0
    %1350 = vmatpush.msra.mxu0 0.0
    %1351 = vmatpush.msra.mxu0 0.0
    %1352 = vmatpush.msra.mxu0 %v1336
    %1353 = vmatpush.msra.mxu0 %v1322
    %1354 = vmatmul.f32.gmra.mxu0 %v1326
    %v1355 = vpop.f32.mrf.mxu0
    %v1356 = vadd.f32 0.0, %v1355
    %1357 = vmatmul.f32.gmra.mxu0 %v1329
    %v1358 = vpop.f32.mrf.mxu0
    %v1359 = vadd.f32 0.0, %v1358
    %1360 = vmatmul.f32.gmra.mxu0 %v1332
    %v1361 = vpop.f32.mrf.mxu0
    %v1362 = vadd.f32 0.0, %v1361
    %1363 = vdwg.mxu0
    %v1364 = vadd.f32 %v1307, %v1356
    %v1365 = vadd.f32 %v1312, %v1359
    %v1366 = vadd.f32 %v1317, %v1362
    %s1367 = scalar_lea.vmem %s4, 24
    %v1368 = vld [vmem:[%s1367] sm:$0xff]
    %v1369 = vld [vmem:[%s1367 + $0x8] sm:$0xff]
    %v1370 = vld [vmem:[%s1367 + $0x10] sm:$0xf]
    %1372 = vrot.lane.b32.xlu0 %v1322, 64
    %v1373 = vpop.permute.xlu0 %1372
    %1374 = vrot.lane.b32.xlu0 %v1323, 64
    %v1375 = vpop.permute.xlu0 %1374
    %v1378 = vsel %vm1324, %v1368, 0
    %v1381 = vsel %vm1324, %v1369, 0
    %v1384 = vsel %vm1324, %v1370, 0
    %v1386 = vsel %vm1334, %v1375, 0
    %1388 = vmatpush.msra.mxu0 0.0
    %1389 = vmatpush.msra.mxu0 0.0
    %1390 = vmatpush.msra.mxu0 0.0
    %1391 = vmatpush.msra.mxu0 0.0
    %1392 = vmatpush.msra.mxu0 0.0
    %1393 = vmatpush.msra.mxu0 0.0
    %1394 = vmatpush.msra.mxu0 0.0
    %1395 = vmatpush.msra.mxu0 0.0
    %1396 = vmatpush.msra.mxu0 0.0
    %1397 = vmatpush.msra.mxu0 0.0
    %1398 = vmatpush.msra.mxu0 0.0
    %1399 = vmatpush.msra.mxu0 0.0
    %1400 = vmatpush.msra.mxu0 0.0
    %1401 = vmatpush.msra.mxu0 0.0
    %1402 = vmatpush.msra.mxu0 %v1386
    %1403 = vmatpush.msra.mxu0 %v1373
    %1404 = vmatmul.f32.gmra.mxu0 %v1378
    %v1405 = vpop.f32.mrf.mxu0
    %v1406 = vadd.f32 0.0, %v1405
    %1407 = vmatmul.f32.gmra.mxu0 %v1381
    %v1408 = vpop.f32.mrf.mxu0
    %v1409 = vadd.f32 0.0, %v1408
    %1410 = vmatmul.f32.gmra.mxu0 %v1384
    %v1411 = vpop.f32.mrf.mxu0
    %v1412 = vadd.f32 0.0, %v1411
    %1413 = vdwg.mxu0
    %v1414 = vadd.f32 %v1364, %v1406
    %v1415 = vadd.f32 %v1365, %v1409
    %v1416 = vadd.f32 %v1366, %v1412
    %s1417 = scalar_lea.vmem %s4, 48
    %v1418 = vld [vmem:[%s1417] sm:$0xff]
    %v1419 = vld [vmem:[%s1417 + $0x8] sm:$0xff]
    %v1420 = vld [vmem:[%s1417 + $0x10] sm:$0xf]
    %v1421 = vld [vmem:[#allocation3 + $0x8] sm:$0xff]
    %v1422 = vld [vmem:[#allocation3 + $0x70] sm:$0x3]
    %v1424 = vsel %vm1324, %v1418, 0
    %v1427 = vsel %vm1324, %v1419, 0
    %v1430 = vsel %vm1324, %v1420, 0
    %v1433 = vsel %vm1334, %v1422, 0
    %1435 = vmatpush.msra.mxu0 0.0
    %1436 = vmatpush.msra.mxu0 0.0
    %1437 = vmatpush.msra.mxu0 0.0
    %1438 = vmatpush.msra.mxu0 0.0
    %1439 = vmatpush.msra.mxu0 0.0
    %1440 = vmatpush.msra.mxu0 0.0
    %1441 = vmatpush.msra.mxu0 0.0
    %1442 = vmatpush.msra.mxu0 0.0
    %1443 = vmatpush.msra.mxu0 0.0
    %1444 = vmatpush.msra.mxu0 0.0
    %1445 = vmatpush.msra.mxu0 0.0
    %1446 = vmatpush.msra.mxu0 0.0
    %1447 = vmatpush.msra.mxu0 0.0
    %1448 = vmatpush.msra.mxu0 0.0
    %1449 = vmatpush.msra.mxu0 %v1433
    %1450 = vmatpush.msra.mxu0 %v1421
    %1451 = vmatmul.f32.gmra.mxu0 %v1424
    %v1452 = vpop.f32.mrf.mxu0
    %v1453 = vadd.f32 0.0, %v1452
    %1454 = vmatmul.f32.gmra.mxu0 %v1427
    %v1455 = vpop.f32.mrf.mxu0
    %v1456 = vadd.f32 0.0, %v1455
    %1457 = vmatmul.f32.gmra.mxu0 %v1430
    %v1458 = vpop.f32.mrf.mxu0
    %v1459 = vadd.f32 0.0, %v1458
    %1460 = vdwg.mxu0
    %v1461 = vadd.f32 %v1414, %v1453
    %v1462 = vadd.f32 %v1415, %v1456
    %v1463 = vadd.f32 %v1416, %v1459
    %s1464 = scalar_lea.vmem %s4, 72
    %v1465 = vld [vmem:[%s1464] sm:$0xff]
    %v1466 = vld [vmem:[%s1464 + $0x8] sm:$0xff]
    %v1467 = vld [vmem:[%s1464 + $0x10] sm:$0xf]
    %1469 = vrot.lane.b32.xlu0 %v1421, 64
    %v1470 = vpop.permute.xlu0 %1469
    %1471 = vrot.lane.b32.xlu0 %v1422, 64
    %v1472 = vpop.permute.xlu0 %1471
    %v1475 = vsel %vm1324, %v1465, 0
    %v1478 = vsel %vm1324, %v1466, 0
    %v1481 = vsel %vm1324, %v1467, 0
    %v1483 = vsel %vm1334, %v1472, 0
    %1485 = vmatpush.msra.mxu0 0.0
    %1486 = vmatpush.msra.mxu0 0.0
    %1487 = vmatpush.msra.mxu0 0.0
    %1488 = vmatpush.msra.mxu0 0.0
    %1489 = vmatpush.msra.mxu0 0.0
    %1490 = vmatpush.msra.mxu0 0.0
    %1491 = vmatpush.msra.mxu0 0.0
    %1492 = vmatpush.msra.mxu0 0.0
    %1493 = vmatpush.msra.mxu0 0.0
    %1494 = vmatpush.msra.mxu0 0.0
    %1495 = vmatpush.msra.mxu0 0.0
    %1496 = vmatpush.msra.mxu0 0.0
    %1497 = vmatpush.msra.mxu0 0.0
    %1498 = vmatpush.msra.mxu0 0.0
    %1499 = vmatpush.msra.mxu0 %v1483
    %1500 = vmatpush.msra.mxu0 %v1470
    %1501 = vmatmul.f32.gmra.mxu0 %v1475
    %v1502 = vpop.f32.mrf.mxu0
    %v1503 = vadd.f32 0.0, %v1502
    %1504 = vmatmul.f32.gmra.mxu0 %v1478
    %v1505 = vpop.f32.mrf.mxu0
    %v1506 = vadd.f32 0.0, %v1505
    %1507 = vmatmul.f32.gmra.mxu0 %v1481
    %v1508 = vpop.f32.mrf.mxu0
    %v1509 = vadd.f32 0.0, %v1508
    %1510 = vdwg.mxu0
    %v1511 = vadd.f32 %v1461, %v1503
    %v1512 = vadd.f32 %v1462, %v1506
    %v1513 = vadd.f32 %v1463, %v1509
    %s1514 = scalar_lea.vmem %s4, 96
    %v1515 = vld [vmem:[%s1514] sm:$0xff]
    %v1516 = vld [vmem:[%s1514 + $0x8] sm:$0xff]
    %v1517 = vld [vmem:[%s1514 + $0x10] sm:$0xf]
    %v1518 = vld [vmem:[#allocation3 + $0x10] sm:$0xff]
    %v1519 = vld [vmem:[#allocation3 + $0x78] sm:$0x3]
    %v1521 = vsel %vm1324, %v1515, 0
    %v1524 = vsel %vm1324, %v1516, 0
    %v1527 = vsel %vm1324, %v1517, 0
    %v1530 = vsel %vm1334, %v1519, 0
    %1532 = vmatpush.msra.mxu0 0.0
    %1533 = vmatpush.msra.mxu0 0.0
    %1534 = vmatpush.msra.mxu0 0.0
    %1535 = vmatpush.msra.mxu0 0.0
    %1536 = vmatpush.msra.mxu0 0.0
    %1537 = vmatpush.msra.mxu0 0.0
    %1538 = vmatpush.msra.mxu0 0.0
    %1539 = vmatpush.msra.mxu0 0.0
    %1540 = vmatpush.msra.mxu0 0.0
    %1541 = vmatpush.msra.mxu0 0.0
    %1542 = vmatpush.msra.mxu0 0.0
    %1543 = vmatpush.msra.mxu0 0.0
    %1544 = vmatpush.msra.mxu0 0.0
    %1545 = vmatpush.msra.mxu0 0.0
    %1546 = vmatpush.msra.mxu0 %v1530
    %1547 = vmatpush.msra.mxu0 %v1518
    %1548 = vmatmul.f32.gmra.mxu0 %v1521
    %v1549 = vpop.f32.mrf.mxu0
    %v1550 = vadd.f32 0.0, %v1549
    %1551 = vmatmul.f32.gmra.mxu0 %v1524
    %v1552 = vpop.f32.mrf.mxu0
    %v1553 = vadd.f32 0.0, %v1552
    %1554 = vmatmul.f32.gmra.mxu0 %v1527
    %v1555 = vpop.f32.mrf.mxu0
    %v1556 = vadd.f32 0.0, %v1555
    %1557 = vdwg.mxu0
    %v1558 = vadd.f32 %v1511, %v1550
    %v1559 = vadd.f32 %v1512, %v1553
    %v1560 = vadd.f32 %v1513, %v1556
    %s1561 = scalar_lea.vmem %s4, 120
    %v1562 = vld [vmem:[%s1561] sm:$0xff]
    %v1563 = vld [vmem:[%s1561 + $0x8] sm:$0xff]
    %v1564 = vld [vmem:[%s1561 + $0x10] sm:$0xf]
    %1566 = vrot.lane.b32.xlu0 %v1518, 64
    %v1567 = vpop.permute.xlu0 %1566
    %1568 = vrot.lane.b32.xlu0 %v1519, 64
    %v1569 = vpop.permute.xlu0 %1568
    %v1572 = vsel %vm1324, %v1562, 0
    %v1575 = vsel %vm1324, %v1563, 0
    %v1578 = vsel %vm1324, %v1564, 0
    %v1580 = vsel %vm1334, %v1569, 0
    %1582 = vmatpush.msra.mxu0 0.0
    %1583 = vmatpush.msra.mxu0 0.0
    %1584 = vmatpush.msra.mxu0 0.0
    %1585 = vmatpush.msra.mxu0 0.0
    %1586 = vmatpush.msra.mxu0 0.0
    %1587 = vmatpush.msra.mxu0 0.0
    %1588 = vmatpush.msra.mxu0 0.0
    %1589 = vmatpush.msra.mxu0 0.0
    %1590 = vmatpush.msra.mxu0 0.0
    %1591 = vmatpush.msra.mxu0 0.0
    %1592 = vmatpush.msra.mxu0 0.0
    %1593 = vmatpush.msra.mxu0 0.0
    %1594 = vmatpush.msra.mxu0 0.0
    %1595 = vmatpush.msra.mxu0 0.0
    %1596 = vmatpush.msra.mxu0 %v1580
    %1597 = vmatpush.msra.mxu0 %v1567
    %1598 = vmatmul.f32.gmra.mxu0 %v1572
    %v1599 = vpop.f32.mrf.mxu0
    %v1600 = vadd.f32 0.0, %v1599
    %1601 = vmatmul.f32.gmra.mxu0 %v1575
    %v1602 = vpop.f32.mrf.mxu0
    %v1603 = vadd.f32 0.0, %v1602
    %1604 = vmatmul.f32.gmra.mxu0 %v1578
    %v1605 = vpop.f32.mrf.mxu0
    %v1606 = vadd.f32 0.0, %v1605
    %1607 = vdwg.mxu0
    %v1608 = vadd.f32 %v1558, %v1600
    %v1609 = vadd.f32 %v1559, %v1603
    %v1610 = vadd.f32 %v1560, %v1606
    %s1611 = scalar_lea.vmem %s4, 144
    %v1612 = vld [vmem:[%s1611] sm:$0xff]
    %v1613 = vld [vmem:[%s1611 + $0x8] sm:$0xff]
    %v1614 = vld [vmem:[%s1611 + $0x10] sm:$0xf]
    %v1615 = vld [vmem:[#allocation3 + $0x18] sm:$0xff]
    %v1616 = vld [vmem:[#allocation3 + $0x80] sm:$0x3]
    %v1618 = vsel %vm1324, %v1612, 0
    %v1621 = vsel %vm1324, %v1613, 0
    %v1624 = vsel %vm1324, %v1614, 0
    %v1627 = vsel %vm1334, %v1616, 0
    %1629 = vmatpush.msra.mxu0 0.0
    %1630 = vmatpush.msra.mxu0 0.0
    %1631 = vmatpush.msra.mxu0 0.0
    %1632 = vmatpush.msra.mxu0 0.0
    %1633 = vmatpush.msra.mxu0 0.0
    %1634 = vmatpush.msra.mxu0 0.0
    %1635 = vmatpush.msra.mxu0 0.0
    %1636 = vmatpush.msra.mxu0 0.0
    %1637 = vmatpush.msra.mxu0 0.0
    %1638 = vmatpush.msra.mxu0 0.0
    %1639 = vmatpush.msra.mxu0 0.0
    %1640 = vmatpush.msra.mxu0 0.0
    %1641 = vmatpush.msra.mxu0 0.0
    %1642 = vmatpush.msra.mxu0 0.0
    %1643 = vmatpush.msra.mxu0 %v1627
    %1644 = vmatpush.msra.mxu0 %v1615
    %1645 = vmatmul.f32.gmra.mxu0 %v1618
    %v1646 = vpop.f32.mrf.mxu0
    %v1647 = vadd.f32 0.0, %v1646
    %1648 = vmatmul.f32.gmra.mxu0 %v1621
    %v1649 = vpop.f32.mrf.mxu0
    %v1650 = vadd.f32 0.0, %v1649
    %1651 = vmatmul.f32.gmra.mxu0 %v1624
    %v1652 = vpop.f32.mrf.mxu0
    %v1653 = vadd.f32 0.0, %v1652
    %1654 = vdwg.mxu0
    %v1655 = vadd.f32 %v1608, %v1647
    %v1656 = vadd.f32 %v1609, %v1650
    %v1657 = vadd.f32 %v1610, %v1653
    %s1658 = scalar_lea.vmem %s4, 168
    %v1659 = vld [vmem:[%s1658] sm:$0xff]
    %v1660 = vld [vmem:[%s1658 + $0x8] sm:$0xff]
    %v1661 = vld [vmem:[%s1658 + $0x10] sm:$0xf]
    %1663 = vrot.lane.b32.xlu0 %v1615, 64
    %v1664 = vpop.permute.xlu0 %1663
    %1665 = vrot.lane.b32.xlu0 %v1616, 64
    %v1666 = vpop.permute.xlu0 %1665
    %v1669 = vsel %vm1324, %v1659, 0
    %v1672 = vsel %vm1324, %v1660, 0
    %v1675 = vsel %vm1324, %v1661, 0
    %v1677 = vsel %vm1334, %v1666, 0
    %1679 = vmatpush.msra.mxu0 0.0
    %1680 = vmatpush.msra.mxu0 0.0
    %1681 = vmatpush.msra.mxu0 0.0
    %1682 = vmatpush.msra.mxu0 0.0
    %1683 = vmatpush.msra.mxu0 0.0
    %1684 = vmatpush.msra.mxu0 0.0
    %1685 = vmatpush.msra.mxu0 0.0
    %1686 = vmatpush.msra.mxu0 0.0
    %1687 = vmatpush.msra.mxu0 0.0
    %1688 = vmatpush.msra.mxu0 0.0
    %1689 = vmatpush.msra.mxu0 0.0
    %1690 = vmatpush.msra.mxu0 0.0
    %1691 = vmatpush.msra.mxu0 0.0
    %1692 = vmatpush.msra.mxu0 0.0
    %1693 = vmatpush.msra.mxu0 %v1677
    %1694 = vmatpush.msra.mxu0 %v1664
    %1695 = vmatmul.f32.gmra.mxu0 %v1669
    %v1696 = vpop.f32.mrf.mxu0
    %v1697 = vadd.f32 0.0, %v1696
    %1698 = vmatmul.f32.gmra.mxu0 %v1672
    %v1699 = vpop.f32.mrf.mxu0
    %v1700 = vadd.f32 0.0, %v1699
    %1701 = vmatmul.f32.gmra.mxu0 %v1675
    %v1702 = vpop.f32.mrf.mxu0
    %v1703 = vadd.f32 0.0, %v1702
    %1704 = vdwg.mxu0
    %v1705 = vadd.f32 %v1655, %v1697
    %v1706 = vadd.f32 %v1656, %v1700
    %v1707 = vadd.f32 %v1657, %v1703
    %s1708 = scalar_lea.vmem %s4, 192
    %v1709 = vld [vmem:[%s1708] sm:$0xff]
    %v1710 = vld [vmem:[%s1708 + $0x8] sm:$0xff]
    %v1711 = vld [vmem:[%s1708 + $0x10] sm:$0xf]
    %v1712 = vld [vmem:[#allocation3 + $0x20] sm:$0xff]
    %v1713 = vld [vmem:[#allocation3 + $0x88] sm:$0x3]
    %v1715 = vsel %vm1324, %v1709, 0
    %v1718 = vsel %vm1324, %v1710, 0
    %v1721 = vsel %vm1324, %v1711, 0
    %v1724 = vsel %vm1334, %v1713, 0
    %1726 = vmatpush.msra.mxu0 0.0
    %1727 = vmatpush.msra.mxu0 0.0
    %1728 = vmatpush.msra.mxu0 0.0
    %1729 = vmatpush.msra.mxu0 0.0
    %1730 = vmatpush.msra.mxu0 0.0
    %1731 = vmatpush.msra.mxu0 0.0
    %1732 = vmatpush.msra.mxu0 0.0
    %1733 = vmatpush.msra.mxu0 0.0
    %1734 = vmatpush.msra.mxu0 0.0
    %1735 = vmatpush.msra.mxu0 0.0
    %1736 = vmatpush.msra.mxu0 0.0
    %1737 = vmatpush.msra.mxu0 0.0
    %1738 = vmatpush.msra.mxu0 0.0
    %1739 = vmatpush.msra.mxu0 0.0
    %1740 = vmatpush.msra.mxu0 %v1724
    %1741 = vmatpush.msra.mxu0 %v1712
    %1742 = vmatmul.f32.gmra.mxu0 %v1715
    %v1743 = vpop.f32.mrf.mxu0
    %v1744 = vadd.f32 0.0, %v1743
    %1745 = vmatmul.f32.gmra.mxu0 %v1718
    %v1746 = vpop.f32.mrf.mxu0
    %v1747 = vadd.f32 0.0, %v1746
    %1748 = vmatmul.f32.gmra.mxu0 %v1721
    %v1749 = vpop.f32.mrf.mxu0
    %v1750 = vadd.f32 0.0, %v1749
    %1751 = vdwg.mxu0
    %v1752 = vadd.f32 %v1705, %v1744
    %v1753 = vadd.f32 %v1706, %v1747
    %v1754 = vadd.f32 %v1707, %v1750
    %s1755 = scalar_lea.vmem %s4, 216
    %v1756 = vld [vmem:[%s1755] sm:$0xff]
    %v1757 = vld [vmem:[%s1755 + $0x8] sm:$0xff]
    %v1758 = vld [vmem:[%s1755 + $0x10] sm:$0xf]
    %1760 = vrot.lane.b32.xlu0 %v1712, 64
    %v1761 = vpop.permute.xlu0 %1760
    %1762 = vrot.lane.b32.xlu0 %v1713, 64
    %v1763 = vpop.permute.xlu0 %1762
    %v1766 = vsel %vm1324, %v1756, 0
    %v1769 = vsel %vm1324, %v1757, 0
    %v1772 = vsel %vm1324, %v1758, 0
    %v1774 = vsel %vm1334, %v1763, 0
    %1776 = vmatpush.msra.mxu0 0.0
    %1777 = vmatpush.msra.mxu0 0.0
    %1778 = vmatpush.msra.mxu0 0.0
    %1779 = vmatpush.msra.mxu0 0.0
    %1780 = vmatpush.msra.mxu0 0.0
    %1781 = vmatpush.msra.mxu0 0.0
    %1782 = vmatpush.msra.mxu0 0.0
    %1783 = vmatpush.msra.mxu0 0.0
    %1784 = vmatpush.msra.mxu0 0.0
    %1785 = vmatpush.msra.mxu0 0.0
    %1786 = vmatpush.msra.mxu0 0.0
    %1787 = vmatpush.msra.mxu0 0.0
    %1788 = vmatpush.msra.mxu0 0.0
    %1789 = vmatpush.msra.mxu0 0.0
    %1790 = vmatpush.msra.mxu0 %v1774
    %1791 = vmatpush.msra.mxu0 %v1761
    %1792 = vmatmul.f32.gmra.mxu0 %v1766
    %v1793 = vpop.f32.mrf.mxu0
    %v1794 = vadd.f32 0.0, %v1793
    %1795 = vmatmul.f32.gmra.mxu0 %v1769
    %v1796 = vpop.f32.mrf.mxu0
    %v1797 = vadd.f32 0.0, %v1796
    %1798 = vmatmul.f32.gmra.mxu0 %v1772
    %v1799 = vpop.f32.mrf.mxu0
    %v1800 = vadd.f32 0.0, %v1799
    %1801 = vdwg.mxu0
    %v1802 = vadd.f32 %v1752, %v1794
    %v1803 = vadd.f32 %v1753, %v1797
    %v1804 = vadd.f32 %v1754, %v1800
    %s1805 = scalar_lea.vmem %s4, 240
    %v1806 = vld [vmem:[%s1805] sm:$0xff]
    %v1807 = vld [vmem:[%s1805 + $0x8] sm:$0xff]
    %v1808 = vld [vmem:[%s1805 + $0x10] sm:$0xf]
    %v1809 = vld [vmem:[#allocation3 + $0x28] sm:$0xff]
    %v1810 = vld [vmem:[#allocation3 + $0x90] sm:$0x3]
    %v1812 = vsel %vm1324, %v1806, 0
    %v1815 = vsel %vm1324, %v1807, 0
    %v1818 = vsel %vm1324, %v1808, 0
    %v1821 = vsel %vm1334, %v1810, 0
    %1823 = vmatpush.msra.mxu0 0.0
    %1824 = vmatpush.msra.mxu0 0.0
    %1825 = vmatpush.msra.mxu0 0.0
    %1826 = vmatpush.msra.mxu0 0.0
    %1827 = vmatpush.msra.mxu0 0.0
    %1828 = vmatpush.msra.mxu0 0.0
    %1829 = vmatpush.msra.mxu0 0.0
    %1830 = vmatpush.msra.mxu0 0.0
    %1831 = vmatpush.msra.mxu0 0.0
    %1832 = vmatpush.msra.mxu0 0.0
    %1833 = vmatpush.msra.mxu0 0.0
    %1834 = vmatpush.msra.mxu0 0.0
    %1835 = vmatpush.msra.mxu0 0.0
    %1836 = vmatpush.msra.mxu0 0.0
    %1837 = vmatpush.msra.mxu0 %v1821
    %1838 = vmatpush.msra.mxu0 %v1809
    %1839 = vmatmul.f32.gmra.mxu0 %v1812
    %v1840 = vpop.f32.mrf.mxu0
    %v1841 = vadd.f32 0.0, %v1840
    %1842 = vmatmul.f32.gmra.mxu0 %v1815
    %v1843 = vpop.f32.mrf.mxu0
    %v1844 = vadd.f32 0.0, %v1843
    %1845 = vmatmul.f32.gmra.mxu0 %v1818
    %v1846 = vpop.f32.mrf.mxu0
    %v1847 = vadd.f32 0.0, %v1846
    %1848 = vdwg.mxu0
    %v1849 = vadd.f32 %v1802, %v1841
    %v1850 = vadd.f32 %v1803, %v1844
    %v1851 = vadd.f32 %v1804, %v1847
    %s1852 = scalar_lea.vmem %s4, 264
    %v1853 = vld [vmem:[%s1852] sm:$0xff]
    %v1854 = vld [vmem:[%s1852 + $0x8] sm:$0xff]
    %v1855 = vld [vmem:[%s1852 + $0x10] sm:$0xf]
    %1857 = vrot.lane.b32.xlu0 %v1809, 64
    %v1858 = vpop.permute.xlu0 %1857
    %1859 = vrot.lane.b32.xlu0 %v1810, 64
    %v1860 = vpop.permute.xlu0 %1859
    %v1863 = vsel %vm1324, %v1853, 0
    %v1866 = vsel %vm1324, %v1854, 0
    %v1869 = vsel %vm1324, %v1855, 0
    %v1871 = vsel %vm1334, %v1860, 0
    %1873 = vmatpush.msra.mxu0 0.0
    %1874 = vmatpush.msra.mxu0 0.0
    %1875 = vmatpush.msra.mxu0 0.0
    %1876 = vmatpush.msra.mxu0 0.0
    %1877 = vmatpush.msra.mxu0 0.0
    %1878 = vmatpush.msra.mxu0 0.0
    %1879 = vmatpush.msra.mxu0 0.0
    %1880 = vmatpush.msra.mxu0 0.0
    %1881 = vmatpush.msra.mxu0 0.0
    %1882 = vmatpush.msra.mxu0 0.0
    %1883 = vmatpush.msra.mxu0 0.0
    %1884 = vmatpush.msra.mxu0 0.0
    %1885 = vmatpush.msra.mxu0 0.0
    %1886 = vmatpush.msra.mxu0 0.0
    %1887 = vmatpush.msra.mxu0 %v1871
    %1888 = vmatpush.msra.mxu0 %v1858
    %1889 = vmatmul.f32.gmra.mxu0 %v1863
    %v1890 = vpop.f32.mrf.mxu0
    %v1891 = vadd.f32 0.0, %v1890
    %1892 = vmatmul.f32.gmra.mxu0 %v1866
    %v1893 = vpop.f32.mrf.mxu0
    %v1894 = vadd.f32 0.0, %v1893
    %1895 = vmatmul.f32.gmra.mxu0 %v1869
    %v1896 = vpop.f32.mrf.mxu0
    %v1897 = vadd.f32 0.0, %v1896
    %1898 = vdwg.mxu0
    %v1899 = vadd.f32 %v1849, %v1891
    %v1900 = vadd.f32 %v1850, %v1894
    %v1901 = vadd.f32 %v1851, %v1897
    %s1902 = scalar_lea.vmem %s4, 288
    %v1903 = vld [vmem:[%s1902] sm:$0xff]
    %v1904 = vld [vmem:[%s1902 + $0x8] sm:$0xff]
    %v1905 = vld [vmem:[%s1902 + $0x10] sm:$0xf]
    %v1906 = vld [vmem:[#allocation3 + $0x30] sm:$0xff]
    %v1907 = vld [vmem:[#allocation3 + $0x98] sm:$0x3]
    %v1909 = vsel %vm1324, %v1903, 0
    %v1912 = vsel %vm1324, %v1904, 0
    %v1915 = vsel %vm1324, %v1905, 0
    %v1918 = vsel %vm1334, %v1907, 0
    %1920 = vmatpush.msra.mxu0 0.0
    %1921 = vmatpush.msra.mxu0 0.0
    %1922 = vmatpush.msra.mxu0 0.0
    %1923 = vmatpush.msra.mxu0 0.0
    %1924 = vmatpush.msra.mxu0 0.0
    %1925 = vmatpush.msra.mxu0 0.0
    %1926 = vmatpush.msra.mxu0 0.0
    %1927 = vmatpush.msra.mxu0 0.0
    %1928 = vmatpush.msra.mxu0 0.0
    %1929 = vmatpush.msra.mxu0 0.0
    %1930 = vmatpush.msra.mxu0 0.0
    %1931 = vmatpush.msra.mxu0 0.0
    %1932 = vmatpush.msra.mxu0 0.0
    %1933 = vmatpush.msra.mxu0 0.0
    %1934 = vmatpush.msra.mxu0 %v1918
    %1935 = vmatpush.msra.mxu0 %v1906
    %1936 = vmatmul.f32.gmra.mxu0 %v1909
    %v1937 = vpop.f32.mrf.mxu0
    %v1938 = vadd.f32 0.0, %v1937
    %1939 = vmatmul.f32.gmra.mxu0 %v1912
    %v1940 = vpop.f32.mrf.mxu0
    %v1941 = vadd.f32 0.0, %v1940
    %1942 = vmatmul.f32.gmra.mxu0 %v1915
    %v1943 = vpop.f32.mrf.mxu0
    %v1944 = vadd.f32 0.0, %v1943
    %1945 = vdwg.mxu0
    %v1946 = vadd.f32 %v1899, %v1938
    %v1947 = vadd.f32 %v1900, %v1941
    %v1948 = vadd.f32 %v1901, %v1944
    %s1949 = scalar_lea.vmem %s4, 312
    %v1950 = vld [vmem:[%s1949] sm:$0xff]
    %v1951 = vld [vmem:[%s1949 + $0x8] sm:$0xff]
    %v1952 = vld [vmem:[%s1949 + $0x10] sm:$0xf]
    %1954 = vrot.lane.b32.xlu0 %v1906, 64
    %v1955 = vpop.permute.xlu0 %1954
    %1956 = vrot.lane.b32.xlu0 %v1907, 64
    %v1957 = vpop.permute.xlu0 %1956
    %v1960 = vsel %vm1324, %v1950, 0
    %v1963 = vsel %vm1324, %v1951, 0
    %v1966 = vsel %vm1324, %v1952, 0
    %v1968 = vsel %vm1334, %v1957, 0
    %1970 = vmatpush.msra.mxu0 0.0
    %1971 = vmatpush.msra.mxu0 0.0
    %1972 = vmatpush.msra.mxu0 0.0
    %1973 = vmatpush.msra.mxu0 0.0
    %1974 = vmatpush.msra.mxu0 0.0
    %1975 = vmatpush.msra.mxu0 0.0
    %1976 = vmatpush.msra.mxu0 0.0
    %1977 = vmatpush.msra.mxu0 0.0
    %1978 = vmatpush.msra.mxu0 0.0
    %1979 = vmatpush.msra.mxu0 0.0
    %1980 = vmatpush.msra.mxu0 0.0
    %1981 = vmatpush.msra.mxu0 0.0
    %1982 = vmatpush.msra.mxu0 0.0
    %1983 = vmatpush.msra.mxu0 0.0
    %1984 = vmatpush.msra.mxu0 %v1968
    %1985 = vmatpush.msra.mxu0 %v1955
    %1986 = vmatmul.f32.gmra.mxu0 %v1960
    %v1987 = vpop.f32.mrf.mxu0
    %v1988 = vadd.f32 0.0, %v1987
    %1989 = vmatmul.f32.gmra.mxu0 %v1963
    %v1990 = vpop.f32.mrf.mxu0
    %v1991 = vadd.f32 0.0, %v1990
    %1992 = vmatmul.f32.gmra.mxu0 %v1966
    %v1993 = vpop.f32.mrf.mxu0
    %v1994 = vadd.f32 0.0, %v1993
    %1995 = vdwg.mxu0
    %v1996 = vadd.f32 %v1946, %v1988
    %v1997 = vadd.f32 %v1947, %v1991
    %v1998 = vadd.f32 %v1948, %v1994
    %s1999 = scalar_lea.vmem %s4, 336
    %v2000 = vld [vmem:[%s1999] sm:$0xff]
    %v2001 = vld [vmem:[%s1999 + $0x8] sm:$0xff]
    %v2002 = vld [vmem:[%s1999 + $0x10] sm:$0xf]
    %v2003 = vld [vmem:[#allocation3 + $0x38] sm:$0xff]
    %v2004 = vld [vmem:[#allocation3 + $0xa0] sm:$0x3]
    %v2006 = vsel %vm1324, %v2000, 0
    %v2009 = vsel %vm1324, %v2001, 0
    %v2012 = vsel %vm1324, %v2002, 0
    %v2015 = vsel %vm1334, %v2004, 0
    %2017 = vmatpush.msra.mxu0 0.0
    %2018 = vmatpush.msra.mxu0 0.0
    %2019 = vmatpush.msra.mxu0 0.0
    %2020 = vmatpush.msra.mxu0 0.0
    %2021 = vmatpush.msra.mxu0 0.0
    %2022 = vmatpush.msra.mxu0 0.0
    %2023 = vmatpush.msra.mxu0 0.0
    %2024 = vmatpush.msra.mxu0 0.0
    %2025 = vmatpush.msra.mxu0 0.0
    %2026 = vmatpush.msra.mxu0 0.0
    %2027 = vmatpush.msra.mxu0 0.0
    %2028 = vmatpush.msra.mxu0 0.0
    %2029 = vmatpush.msra.mxu0 0.0
    %2030 = vmatpush.msra.mxu0 0.0
    %2031 = vmatpush.msra.mxu0 %v2015
    %2032 = vmatpush.msra.mxu0 %v2003
    %2033 = vmatmul.f32.gmra.mxu0 %v2006
    %v2034 = vpop.f32.mrf.mxu0
    %v2035 = vadd.f32 0.0, %v2034
    %2036 = vmatmul.f32.gmra.mxu0 %v2009
    %v2037 = vpop.f32.mrf.mxu0
    %v2038 = vadd.f32 0.0, %v2037
    %2039 = vmatmul.f32.gmra.mxu0 %v2012
    %v2040 = vpop.f32.mrf.mxu0
    %v2041 = vadd.f32 0.0, %v2040
    %2042 = vdwg.mxu0
    %v2043 = vadd.f32 %v1996, %v2035
    %v2044 = vadd.f32 %v1997, %v2038
    %v2045 = vadd.f32 %v1998, %v2041
    %s2046 = scalar_lea.vmem %s4, 360
    %v2047 = vld [vmem:[%s2046] sm:$0xff]
    %v2048 = vld [vmem:[%s2046 + $0x8] sm:$0xff]
    %v2049 = vld [vmem:[%s2046 + $0x10] sm:$0xf]
    %2051 = vrot.lane.b32.xlu0 %v2003, 64
    %v2052 = vpop.permute.xlu0 %2051
    %2053 = vrot.lane.b32.xlu0 %v2004, 64
    %v2054 = vpop.permute.xlu0 %2053
    %v2057 = vsel %vm1324, %v2047, 0
    %v2060 = vsel %vm1324, %v2048, 0
    %v2063 = vsel %vm1324, %v2049, 0
    %v2065 = vsel %vm1334, %v2054, 0
    %2067 = vmatpush.msra.mxu0 0.0
    %2068 = vmatpush.msra.mxu0 0.0
    %2069 = vmatpush.msra.mxu0 0.0
    %2070 = vmatpush.msra.mxu0 0.0
    %2071 = vmatpush.msra.mxu0 0.0
    %2072 = vmatpush.msra.mxu0 0.0
    %2073 = vmatpush.msra.mxu0 0.0
    %2074 = vmatpush.msra.mxu0 0.0
    %2075 = vmatpush.msra.mxu0 0.0
    %2076 = vmatpush.msra.mxu0 0.0
    %2077 = vmatpush.msra.mxu0 0.0
    %2078 = vmatpush.msra.mxu0 0.0
    %2079 = vmatpush.msra.mxu0 0.0
    %2080 = vmatpush.msra.mxu0 0.0
    %2081 = vmatpush.msra.mxu0 %v2065
    %2082 = vmatpush.msra.mxu0 %v2052
    %2083 = vmatmul.f32.gmra.mxu0 %v2057
    %v2084 = vpop.f32.mrf.mxu0
    %v2085 = vadd.f32 0.0, %v2084
    %2086 = vmatmul.f32.gmra.mxu0 %v2060
    %v2087 = vpop.f32.mrf.mxu0
    %v2088 = vadd.f32 0.0, %v2087
    %2089 = vmatmul.f32.gmra.mxu0 %v2063
    %v2090 = vpop.f32.mrf.mxu0
    %v2091 = vadd.f32 0.0, %v2090
    %2092 = vdwg.mxu0
    %v2093 = vadd.f32 %v2043, %v2085
    %v2094 = vadd.f32 %v2044, %v2088
    %v2095 = vadd.f32 %v2045, %v2091
    %s2096 = scalar_lea.vmem %s4, 384
    %v2097 = vld [vmem:[%s2096] sm:$0xff]
    %v2098 = vld [vmem:[%s2096 + $0x8] sm:$0xff]
    %v2099 = vld [vmem:[%s2096 + $0x10] sm:$0xf]
    %v2100 = vld [vmem:[#allocation3 + $0x40] sm:$0xff]
    %v2101 = vld [vmem:[#allocation3 + $0xa8] sm:$0x3]
    %v2103 = vsel %vm1324, %v2097, 0
    %v2106 = vsel %vm1324, %v2098, 0
    %v2109 = vsel %vm1324, %v2099, 0
    %v2112 = vsel %vm1334, %v2101, 0
    %2114 = vmatpush.msra.mxu0 0.0
    %2115 = vmatpush.msra.mxu0 0.0
    %2116 = vmatpush.msra.mxu0 0.0
    %2117 = vmatpush.msra.mxu0 0.0
    %2118 = vmatpush.msra.mxu0 0.0
    %2119 = vmatpush.msra.mxu0 0.0
    %2120 = vmatpush.msra.mxu0 0.0
    %2121 = vmatpush.msra.mxu0 0.0
    %2122 = vmatpush.msra.mxu0 0.0
    %2123 = vmatpush.msra.mxu0 0.0
    %2124 = vmatpush.msra.mxu0 0.0
    %2125 = vmatpush.msra.mxu0 0.0
    %2126 = vmatpush.msra.mxu0 0.0
    %2127 = vmatpush.msra.mxu0 0.0
    %2128 = vmatpush.msra.mxu0 %v2112
    %2129 = vmatpush.msra.mxu0 %v2100
    %2130 = vmatmul.f32.gmra.mxu0 %v2103
    %v2131 = vpop.f32.mrf.mxu0
    %v2132 = vadd.f32 0.0, %v2131
    %2133 = vmatmul.f32.gmra.mxu0 %v2106
    %v2134 = vpop.f32.mrf.mxu0
    %v2135 = vadd.f32 0.0, %v2134
    %2136 = vmatmul.f32.gmra.mxu0 %v2109
    %v2137 = vpop.f32.mrf.mxu0
    %v2138 = vadd.f32 0.0, %v2137
    %2139 = vdwg.mxu0
    %v2140 = vadd.f32 %v2093, %v2132
    %v2141 = vadd.f32 %v2094, %v2135
    %v2142 = vadd.f32 %v2095, %v2138
    %s2143 = scalar_lea.vmem %s4, 408
    %v2144 = vld [vmem:[%s2143] sm:$0xff]
    %v2145 = vld [vmem:[%s2143 + $0x8] sm:$0xff]
    %v2146 = vld [vmem:[%s2143 + $0x10] sm:$0xf]
    %2148 = vrot.lane.b32.xlu0 %v2100, 64
    %v2149 = vpop.permute.xlu0 %2148
    %2150 = vrot.lane.b32.xlu0 %v2101, 64
    %v2151 = vpop.permute.xlu0 %2150
    %v2154 = vsel %vm1324, %v2144, 0
    %v2157 = vsel %vm1324, %v2145, 0
    %v2160 = vsel %vm1324, %v2146, 0
    %v2162 = vsel %vm1334, %v2151, 0
    %2164 = vmatpush.msra.mxu0 0.0
    %2165 = vmatpush.msra.mxu0 0.0
    %2166 = vmatpush.msra.mxu0 0.0
    %2167 = vmatpush.msra.mxu0 0.0
    %2168 = vmatpush.msra.mxu0 0.0
    %2169 = vmatpush.msra.mxu0 0.0
    %2170 = vmatpush.msra.mxu0 0.0
    %2171 = vmatpush.msra.mxu0 0.0
    %2172 = vmatpush.msra.mxu0 0.0
    %2173 = vmatpush.msra.mxu0 0.0
    %2174 = vmatpush.msra.mxu0 0.0
    %2175 = vmatpush.msra.mxu0 0.0
    %2176 = vmatpush.msra.mxu0 0.0
    %2177 = vmatpush.msra.mxu0 0.0
    %2178 = vmatpush.msra.mxu0 %v2162
    %2179 = vmatpush.msra.mxu0 %v2149
    %2180 = vmatmul.f32.gmra.mxu0 %v2154
    %v2181 = vpop.f32.mrf.mxu0
    %v2182 = vadd.f32 0.0, %v2181
    %2183 = vmatmul.f32.gmra.mxu0 %v2157
    %v2184 = vpop.f32.mrf.mxu0
    %v2185 = vadd.f32 0.0, %v2184
    %2186 = vmatmul.f32.gmra.mxu0 %v2160
    %v2187 = vpop.f32.mrf.mxu0
    %v2188 = vadd.f32 0.0, %v2187
    %2189 = vdwg.mxu0
    %v2190 = vadd.f32 %v2140, %v2182
    %v2191 = vadd.f32 %v2141, %v2185
    %v2192 = vadd.f32 %v2142, %v2188
    %s2193 = scalar_lea.vmem %s4, 432
    %v2194 = vld [vmem:[%s2193] sm:$0xff]
    %v2195 = vld [vmem:[%s2193 + $0x8] sm:$0xff]
    %v2196 = vld [vmem:[%s2193 + $0x10] sm:$0xf]
    %v2197 = vld [vmem:[#allocation3 + $0x48] sm:$0xff]
    %v2198 = vld [vmem:[#allocation3 + $0xb0] sm:$0x3]
    %v2200 = vsel %vm1324, %v2194, 0
    %v2203 = vsel %vm1324, %v2195, 0
    %v2206 = vsel %vm1324, %v2196, 0
    %v2209 = vsel %vm1334, %v2198, 0
    %2211 = vmatpush.msra.mxu0 0.0
    %2212 = vmatpush.msra.mxu0 0.0
    %2213 = vmatpush.msra.mxu0 0.0
    %2214 = vmatpush.msra.mxu0 0.0
    %2215 = vmatpush.msra.mxu0 0.0
    %2216 = vmatpush.msra.mxu0 0.0
    %2217 = vmatpush.msra.mxu0 0.0
    %2218 = vmatpush.msra.mxu0 0.0
    %2219 = vmatpush.msra.mxu0 0.0
    %2220 = vmatpush.msra.mxu0 0.0
    %2221 = vmatpush.msra.mxu0 0.0
    %2222 = vmatpush.msra.mxu0 0.0
    %2223 = vmatpush.msra.mxu0 0.0
    %2224 = vmatpush.msra.mxu0 0.0
    %2225 = vmatpush.msra.mxu0 %v2209
    %2226 = vmatpush.msra.mxu0 %v2197
    %2227 = vmatmul.f32.gmra.mxu0 %v2200
    %v2228 = vpop.f32.mrf.mxu0
    %v2229 = vadd.f32 0.0, %v2228
    %2230 = vmatmul.f32.gmra.mxu0 %v2203
    %v2231 = vpop.f32.mrf.mxu0
    %v2232 = vadd.f32 0.0, %v2231
    %2233 = vmatmul.f32.gmra.mxu0 %v2206
    %v2234 = vpop.f32.mrf.mxu0
    %v2235 = vadd.f32 0.0, %v2234
    %2236 = vdwg.mxu0
    %v2237 = vadd.f32 %v2190, %v2229
    %v2238 = vadd.f32 %v2191, %v2232
    %v2239 = vadd.f32 %v2192, %v2235
    %s2240 = scalar_lea.vmem %s4, 456
    %v2241 = vld [vmem:[%s2240] sm:$0xff]
    %v2242 = vld [vmem:[%s2240 + $0x8] sm:$0xff]
    %v2243 = vld [vmem:[%s2240 + $0x10] sm:$0xf]
    %2245 = vrot.lane.b32.xlu0 %v2197, 64
    %v2246 = vpop.permute.xlu0 %2245
    %2247 = vrot.lane.b32.xlu0 %v2198, 64
    %v2248 = vpop.permute.xlu0 %2247
    %v2251 = vsel %vm1324, %v2241, 0
    %v2254 = vsel %vm1324, %v2242, 0
    %v2257 = vsel %vm1324, %v2243, 0
    %v2259 = vsel %vm1334, %v2248, 0
    %2261 = vmatpush.msra.mxu0 0.0
    %2262 = vmatpush.msra.mxu0 0.0
    %2263 = vmatpush.msra.mxu0 0.0
    %2264 = vmatpush.msra.mxu0 0.0
    %2265 = vmatpush.msra.mxu0 0.0
    %2266 = vmatpush.msra.mxu0 0.0
    %2267 = vmatpush.msra.mxu0 0.0
    %2268 = vmatpush.msra.mxu0 0.0
    %2269 = vmatpush.msra.mxu0 0.0
    %2270 = vmatpush.msra.mxu0 0.0
    %2271 = vmatpush.msra.mxu0 0.0
    %2272 = vmatpush.msra.mxu0 0.0
    %2273 = vmatpush.msra.mxu0 0.0
    %2274 = vmatpush.msra.mxu0 0.0
    %2275 = vmatpush.msra.mxu0 %v2259
    %2276 = vmatpush.msra.mxu0 %v2246
    %2277 = vmatmul.f32.gmra.mxu0 %v2251
    %v2278 = vpop.f32.mrf.mxu0
    %v2279 = vadd.f32 0.0, %v2278
    %2280 = vmatmul.f32.gmra.mxu0 %v2254
    %v2281 = vpop.f32.mrf.mxu0
    %v2282 = vadd.f32 0.0, %v2281
    %2283 = vmatmul.f32.gmra.mxu0 %v2257
    %v2284 = vpop.f32.mrf.mxu0
    %v2285 = vadd.f32 0.0, %v2284
    %2286 = vdwg.mxu0
    %v2287 = vadd.f32 %v2237, %v2279
    %v2288 = vadd.f32 %v2238, %v2282
    %v2289 = vadd.f32 %v2239, %v2285
    %s2290 = scalar_lea.vmem %s4, 480
    %v2291 = vld [vmem:[%s2290] sm:$0xff]
    %v2292 = vld [vmem:[%s2290 + $0x8] sm:$0xff]
    %v2293 = vld [vmem:[%s2290 + $0x10] sm:$0xf]
    %v2294 = vld [vmem:[#allocation3 + $0x50] sm:$0xff]
    %v2295 = vld [vmem:[#allocation3 + $0xb8] sm:$0x3]
    %v2297 = vsel %vm1324, %v2291, 0
    %v2300 = vsel %vm1324, %v2292, 0
    %v2303 = vsel %vm1324, %v2293, 0
    %v2306 = vsel %vm1334, %v2295, 0
    %2308 = vmatpush.msra.mxu0 0.0
    %2309 = vmatpush.msra.mxu0 0.0
    %2310 = vmatpush.msra.mxu0 0.0
    %2311 = vmatpush.msra.mxu0 0.0
    %2312 = vmatpush.msra.mxu0 0.0
    %2313 = vmatpush.msra.mxu0 0.0
    %2314 = vmatpush.msra.mxu0 0.0
    %2315 = vmatpush.msra.mxu0 0.0
    %2316 = vmatpush.msra.mxu0 0.0
    %2317 = vmatpush.msra.mxu0 0.0
    %2318 = vmatpush.msra.mxu0 0.0
    %2319 = vmatpush.msra.mxu0 0.0
    %2320 = vmatpush.msra.mxu0 0.0
    %2321 = vmatpush.msra.mxu0 0.0
    %2322 = vmatpush.msra.mxu0 %v2306
    %2323 = vmatpush.msra.mxu0 %v2294
    %2324 = vmatmul.f32.gmra.mxu0 %v2297
    %v2325 = vpop.f32.mrf.mxu0
    %v2326 = vadd.f32 0.0, %v2325
    %2327 = vmatmul.f32.gmra.mxu0 %v2300
    %v2328 = vpop.f32.mrf.mxu0
    %v2329 = vadd.f32 0.0, %v2328
    %2330 = vmatmul.f32.gmra.mxu0 %v2303
    %v2331 = vpop.f32.mrf.mxu0
    %v2332 = vadd.f32 0.0, %v2331
    %2333 = vdwg.mxu0
    %v2334 = vadd.f32 %v2287, %v2326
    %v2335 = vadd.f32 %v2288, %v2329
    %v2336 = vadd.f32 %v2289, %v2332
    %s2337 = scalar_lea.vmem %s4, 504
    %v2338 = vld [vmem:[%s2337] sm:$0xff]
    %v2339 = vld [vmem:[%s2337 + $0x8] sm:$0xff]
    %v2340 = vld [vmem:[%s2337 + $0x10] sm:$0xf]
    %2342 = vrot.lane.b32.xlu0 %v2294, 64
    %v2343 = vpop.permute.xlu0 %2342
    %2344 = vrot.lane.b32.xlu0 %v2295, 64
    %v2345 = vpop.permute.xlu0 %2344
    %v2348 = vsel %vm1324, %v2338, 0
    %v2351 = vsel %vm1324, %v2339, 0
    %v2354 = vsel %vm1324, %v2340, 0
    %v2356 = vsel %vm1334, %v2345, 0
    %2358 = vmatpush.msra.mxu0 0.0
    %2359 = vmatpush.msra.mxu0 0.0
    %2360 = vmatpush.msra.mxu0 0.0
    %2361 = vmatpush.msra.mxu0 0.0
    %2362 = vmatpush.msra.mxu0 0.0
    %2363 = vmatpush.msra.mxu0 0.0
    %2364 = vmatpush.msra.mxu0 0.0
    %2365 = vmatpush.msra.mxu0 0.0
    %2366 = vmatpush.msra.mxu0 0.0
    %2367 = vmatpush.msra.mxu0 0.0
    %2368 = vmatpush.msra.mxu0 0.0
    %2369 = vmatpush.msra.mxu0 0.0
    %2370 = vmatpush.msra.mxu0 0.0
    %2371 = vmatpush.msra.mxu0 0.0
    %2372 = vmatpush.msra.mxu0 %v2356
    %2373 = vmatpush.msra.mxu0 %v2343
    %2374 = vmatmul.f32.gmra.mxu0 %v2348
    %v2375 = vpop.f32.mrf.mxu0
    %v2376 = vadd.f32 0.0, %v2375
    %2377 = vmatmul.f32.gmra.mxu0 %v2351
    %v2378 = vpop.f32.mrf.mxu0
    %v2379 = vadd.f32 0.0, %v2378
    %2380 = vmatmul.f32.gmra.mxu0 %v2354
    %v2381 = vpop.f32.mrf.mxu0
    %v2382 = vadd.f32 0.0, %v2381
    %2383 = vdwg.mxu0
    %v2384 = vadd.f32 %v2334, %v2376
    %v2385 = vadd.f32 %v2335, %v2379
    %v2386 = vadd.f32 %v2336, %v2382
    %s2387 = scalar_lea.vmem %s4, 528
    %v2388 = vld [vmem:[%s2387] sm:$0xff]
    %v2389 = vld [vmem:[%s2387 + $0x8] sm:$0xff]
    %v2390 = vld [vmem:[%s2387 + $0x10] sm:$0xf]
    %v2391 = vld [vmem:[#allocation3 + $0x58] sm:$0xff]
    %v2392 = vld [vmem:[#allocation3 + $0xc0] sm:$0x3]
    %v2394 = vsel %vm1324, %v2388, 0
    %v2397 = vsel %vm1324, %v2389, 0
    %v2400 = vsel %vm1324, %v2390, 0
    %v2403 = vsel %vm1334, %v2392, 0
    %2405 = vmatpush.msra.mxu0 0.0
    %2406 = vmatpush.msra.mxu0 0.0
    %2407 = vmatpush.msra.mxu0 0.0
    %2408 = vmatpush.msra.mxu0 0.0
    %2409 = vmatpush.msra.mxu0 0.0
    %2410 = vmatpush.msra.mxu0 0.0
    %2411 = vmatpush.msra.mxu0 0.0
    %2412 = vmatpush.msra.mxu0 0.0
    %2413 = vmatpush.msra.mxu0 0.0
    %2414 = vmatpush.msra.mxu0 0.0
    %2415 = vmatpush.msra.mxu0 0.0
    %2416 = vmatpush.msra.mxu0 0.0
    %2417 = vmatpush.msra.mxu0 0.0
    %2418 = vmatpush.msra.mxu0 0.0
    %2419 = vmatpush.msra.mxu0 %v2403
    %2420 = vmatpush.msra.mxu0 %v2391
    %2421 = vmatmul.f32.gmra.mxu0 %v2394
    %v2422 = vpop.f32.mrf.mxu0
    %v2423 = vadd.f32 0.0, %v2422
    %2424 = vmatmul.f32.gmra.mxu0 %v2397
    %v2425 = vpop.f32.mrf.mxu0
    %v2426 = vadd.f32 0.0, %v2425
    %2427 = vmatmul.f32.gmra.mxu0 %v2400
    %v2428 = vpop.f32.mrf.mxu0
    %v2429 = vadd.f32 0.0, %v2428
    %2430 = vdwg.mxu0
    %v2431 = vadd.f32 %v2384, %v2423
    %v2432 = vadd.f32 %v2385, %v2426
    %v2433 = vadd.f32 %v2386, %v2429
    %s2434 = scalar_lea.vmem %s4, 552
    %v2435 = vld [vmem:[%s2434] sm:$0xff]
    %v2436 = vld [vmem:[%s2434 + $0x8] sm:$0xff]
    %v2437 = vld [vmem:[%s2434 + $0x10] sm:$0xf]
    %2439 = vrot.lane.b32.xlu0 %v2391, 64
    %v2440 = vpop.permute.xlu0 %2439
    %2441 = vrot.lane.b32.xlu0 %v2392, 64
    %v2442 = vpop.permute.xlu0 %2441
    %v2445 = vsel %vm1324, %v2435, 0
    %v2448 = vsel %vm1324, %v2436, 0
    %v2451 = vsel %vm1324, %v2437, 0
    %v2453 = vsel %vm1334, %v2442, 0
    %2455 = vmatpush.msra.mxu0 0.0
    %2456 = vmatpush.msra.mxu0 0.0
    %2457 = vmatpush.msra.mxu0 0.0
    %2458 = vmatpush.msra.mxu0 0.0
    %2459 = vmatpush.msra.mxu0 0.0
    %2460 = vmatpush.msra.mxu0 0.0
    %2461 = vmatpush.msra.mxu0 0.0
    %2462 = vmatpush.msra.mxu0 0.0
    %2463 = vmatpush.msra.mxu0 0.0
    %2464 = vmatpush.msra.mxu0 0.0
    %2465 = vmatpush.msra.mxu0 0.0
    %2466 = vmatpush.msra.mxu0 0.0
    %2467 = vmatpush.msra.mxu0 0.0
    %2468 = vmatpush.msra.mxu0 0.0
    %2469 = vmatpush.msra.mxu0 %v2453
    %2470 = vmatpush.msra.mxu0 %v2440
    %2471 = vmatmul.f32.gmra.mxu0 %v2445
    %v2472 = vpop.f32.mrf.mxu0
    %v2473 = vadd.f32 0.0, %v2472
    %2474 = vmatmul.f32.gmra.mxu0 %v2448
    %v2475 = vpop.f32.mrf.mxu0
    %v2476 = vadd.f32 0.0, %v2475
    %2477 = vmatmul.f32.gmra.mxu0 %v2451
    %v2478 = vpop.f32.mrf.mxu0
    %v2479 = vadd.f32 0.0, %v2478
    %2480 = vdwg.mxu0
    %v2481 = vadd.f32 %v2431, %v2473
    %v2482 = vadd.f32 %v2432, %v2476
    %v2483 = vadd.f32 %v2433, %v2479
    %s2484 = scalar_lea.vmem %s4, 576
    %v2485 = vld [vmem:[%s2484] sm:$0xff]
    %v2486 = vld [vmem:[%s2484 + $0x8] sm:$0xff]
    %v2487 = vld [vmem:[%s2484 + $0x10] sm:$0xf]
    %v2488 = vld [vmem:[#allocation3 + $0x60] sm:$0xff]
    %v2489 = vld [vmem:[#allocation3 + $0xc8] sm:$0x3]
    %v2491 = vsel %vm1324, %v2485, 0
    %v2494 = vsel %vm1324, %v2486, 0
    %v2497 = vsel %vm1324, %v2487, 0
    %v2500 = vsel %vm1334, %v2489, 0
    %2502 = vmatpush.msra.mxu0 0.0
    %2503 = vmatpush.msra.mxu0 0.0
    %2504 = vmatpush.msra.mxu0 0.0
    %2505 = vmatpush.msra.mxu0 0.0
    %2506 = vmatpush.msra.mxu0 0.0
    %2507 = vmatpush.msra.mxu0 0.0
    %2508 = vmatpush.msra.mxu0 0.0
    %2509 = vmatpush.msra.mxu0 0.0
    %2510 = vmatpush.msra.mxu0 0.0
    %2511 = vmatpush.msra.mxu0 0.0
    %2512 = vmatpush.msra.mxu0 0.0
    %2513 = vmatpush.msra.mxu0 0.0
    %2514 = vmatpush.msra.mxu0 0.0
    %2515 = vmatpush.msra.mxu0 0.0
    %2516 = vmatpush.msra.mxu0 %v2500
    %2517 = vmatpush.msra.mxu0 %v2488
    %2518 = vmatmul.f32.gmra.mxu0 %v2491
    %v2519 = vpop.f32.mrf.mxu0
    %v2520 = vadd.f32 0.0, %v2519
    %2521 = vmatmul.f32.gmra.mxu0 %v2494
    %v2522 = vpop.f32.mrf.mxu0
    %v2523 = vadd.f32 0.0, %v2522
    %2524 = vmatmul.f32.gmra.mxu0 %v2497
    %v2525 = vpop.f32.mrf.mxu0
    %v2526 = vadd.f32 0.0, %v2525
    %2527 = vdwg.mxu0
    %v2528 = vadd.f32 %v2481, %v2520
    %v2529 = vadd.f32 %v2482, %v2523
    %v2530 = vadd.f32 %v2483, %v2526
    %2531 = vst.msk [vmem:[#allocation4] sm:$0xff] %vm627, %v2528
    %2532 = vst.msk [vmem:[#allocation4 + $0x8] sm:$0xff] %vm627, %v2529
    %vm2533 = vcmask 519168
    %2534 = vst.msk [vmem:[#allocation4 + $0x10] sm:$0xf] %vm2533, %v2530
    %v2535 = vld [vmem:[#allocation4] sm:$0xff]
    %v2536 = vld [vmem:[#allocation4 + $0x8] sm:$0xff]
    %v2537 = vld [vmem:[#allocation4 + $0x10] sm:$0xf]
    %2541 = vrot.lane.b32.xlu0 %v2535, 112
    %v2542 = vpop.permute.xlu0 %2541
    %2543 = vrot.lane.b32.xlu0 %v2536, 112
    %v2544 = vpop.permute.xlu0 %2543
    %2545 = vrot.lane.b32.xlu0 %v2537, 112
    %v2546 = vpop.permute.xlu0 %2545
    %v2550 = vmax.f32 %v2535, %v2542
    %v2551 = vmax.f32 %v2536, %v2544
    %v2552 = vmax.f32 %v2537, %v2546
    %2553 = vrot.lane.b32.xlu0 %v2535, 96
    %v2554 = vpop.permute.xlu0 %2553
    %2555 = vrot.lane.b32.xlu0 %v2536, 96
    %v2556 = vpop.permute.xlu0 %2555
    %2557 = vrot.lane.b32.xlu0 %v2537, 96
    %v2558 = vpop.permute.xlu0 %2557
    %v2562 = vmax.f32 %v2550, %v2554
    %v2563 = vmax.f32 %v2551, %v2556
    %v2564 = vmax.f32 %v2552, %v2558
    %2565 = vrot.lane.b32.xlu0 %v2535, 80
    %v2566 = vpop.permute.xlu0 %2565
    %2567 = vrot.lane.b32.xlu0 %v2536, 80
    %v2568 = vpop.permute.xlu0 %2567
    %2569 = vrot.lane.b32.xlu0 %v2537, 80
    %v2570 = vpop.permute.xlu0 %2569
    %v2574 = vmax.f32 %v2562, %v2566
    %v2575 = vmax.f32 %v2563, %v2568
    %v2576 = vmax.f32 %v2564, %v2570
    %v2577 = vmax.f32 %v2574, 0.0
    %v2578 = vmax.f32 %v2575, 0.0
    %v2579 = vmax.f32 %v2576, 0.0
    %2580 = vst.msk [vmem:[#allocation5] sm:$0xff] %vm669, %v2577
    %2581 = vst.msk [vmem:[#allocation5 + $0x8] sm:$0xff] %vm669, %v2578
    %vm2582 = vcmask 125952
    %2583 = vst.msk [vmem:[#allocation5 + $0x10] sm:$0xf] %vm2582, %v2579
    %v2584 = vld [vmem:[#allocation5] sm:$0x1]
    %vm2585 = vcmask 122880
    %2586 = vst.msk [vmem:[#allocation6] sm:$0x1] %vm2585, %v2584
    %v2587 = vld [vmem:[#allocation5 + $0x1] sm:$0x1]
    %2589 = vrot.lane.b32.xlu0 %v2587, 16
    %v2590 = vpop.permute.xlu0 %2589
    %vm2592 = vcmask 254080
    %2593 = vst.msk [vmem:[#allocation6] sm:$0x1] %vm2592, %v2590
    %v2594 = vld [vmem:[#allocation5 + $0x2] sm:$0x1]
    %2596 = vrot.lane.b32.xlu0 %v2594, 32
    %v2597 = vpop.permute.xlu0 %2596
    %vm2599 = vcmask 385280
    %2600 = vst.msk [vmem:[#allocation6] sm:$0x1] %vm2599, %v2597
    %v2601 = vld [vmem:[#allocation5 + $0x3] sm:$0x1]
    %2603 = vrot.lane.b32.xlu0 %v2601, 48
    %v2604 = vpop.permute.xlu0 %2603
    %vm2606 = vcmask 516480
    %2607 = vst.msk [vmem:[#allocation6] sm:$0x1] %vm2606, %v2604
    %v2608 = vld [vmem:[#allocation5 + $0x4] sm:$0x1]
    %2610 = vrot.lane.b32.xlu0 %v2608, 64
    %v2611 = vpop.permute.xlu0 %2610
    %vm2613 = vcmask 647680
    %2614 = vst.msk [vmem:[#allocation6] sm:$0x1] %vm2613, %v2611
    %v2615 = vld [vmem:[#allocation5 + $0x5] sm:$0x1]
    %2617 = vrot.lane.b32.xlu0 %v2615, 80
    %v2618 = vpop.permute.xlu0 %2617
    %vm2620 = vcmask 778880
    %2621 = vst.msk [vmem:[#allocation6] sm:$0x1] %vm2620, %v2618
    %v2622 = vld [vmem:[#allocation5 + $0x6] sm:$0x1]
    %2624 = vrot.lane.b32.xlu0 %v2622, 96
    %v2625 = vpop.permute.xlu0 %2624
    %vm2627 = vcmask 910080
    %2628 = vst.msk [vmem:[#allocation6] sm:$0x1] %vm2627, %v2625
    %v2629 = vld [vmem:[#allocation5 + $0x7] sm:$0x1]
    %2631 = vrot.lane.b32.xlu0 %v2629, 112
    %v2632 = vpop.permute.xlu0 %2631
    %vm2634 = vcmask 1041280
    %2635 = vst.msk [vmem:[#allocation6] sm:$0x1] %vm2634, %v2632
    %v2636 = vld [vmem:[#allocation5 + $0x8] sm:$0x1]
    %2637 = vst.msk [vmem:[#allocation6 + $0x2] sm:$0x1] %vm2585, %v2636
    %v2638 = vld [vmem:[#allocation5 + $0x9] sm:$0x1]
    %2640 = vrot.lane.b32.xlu0 %v2638, 16
    %v2641 = vpop.permute.xlu0 %2640
    %2643 = vst.msk [vmem:[#allocation6 + $0x2] sm:$0x1] %vm2592, %v2641
    %v2644 = vld [vmem:[#allocation5 + $0xa] sm:$0x1]
    %2646 = vrot.lane.b32.xlu0 %v2644, 32
    %v2647 = vpop.permute.xlu0 %2646
    %2649 = vst.msk [vmem:[#allocation6 + $0x2] sm:$0x1] %vm2599, %v2647
    %v2650 = vld [vmem:[#allocation5 + $0xb] sm:$0x1]
    %2652 = vrot.lane.b32.xlu0 %v2650, 48
    %v2653 = vpop.permute.xlu0 %2652
    %2655 = vst.msk [vmem:[#allocation6 + $0x2] sm:$0x1] %vm2606, %v2653
    %v2656 = vld [vmem:[#allocation5 + $0xc] sm:$0x1]
    %2658 = vrot.lane.b32.xlu0 %v2656, 64
    %v2659 = vpop.permute.xlu0 %2658
    %2661 = vst.msk [vmem:[#allocation6 + $0x2] sm:$0x1] %vm2613, %v2659
    %v2662 = vld [vmem:[#allocation5 + $0xd] sm:$0x1]
    %2664 = vrot.lane.b32.xlu0 %v2662, 80
    %v2665 = vpop.permute.xlu0 %2664
    %2667 = vst.msk [vmem:[#allocation6 + $0x2] sm:$0x1] %vm2620, %v2665
    %v2668 = vld [vmem:[#allocation5 + $0xe] sm:$0x1]
    %2670 = vrot.lane.b32.xlu0 %v2668, 96
    %v2671 = vpop.permute.xlu0 %2670
    %2673 = vst.msk [vmem:[#allocation6 + $0x2] sm:$0x1] %vm2627, %v2671
    %v2674 = vld [vmem:[#allocation5 + $0xf] sm:$0x1]
    %2676 = vrot.lane.b32.xlu0 %v2674, 112
    %v2677 = vpop.permute.xlu0 %2676
    %2679 = vst.msk [vmem:[#allocation6 + $0x2] sm:$0x1] %vm2634, %v2677
    %v2680 = vld [vmem:[#allocation5 + $0x10] sm:$0x1]
    %2681 = vst.msk [vmem:[#allocation6 + $0x4] sm:$0x1] %vm2585, %v2680
    %v2682 = vld [vmem:[#allocation5 + $0x11] sm:$0x1]
    %2684 = vrot.lane.b32.xlu0 %v2682, 16
    %v2685 = vpop.permute.xlu0 %2684
    %2687 = vst.msk [vmem:[#allocation6 + $0x4] sm:$0x1] %vm2592, %v2685
    %v2688 = vld [vmem:[#allocation5 + $0x12] sm:$0x1]
    %2690 = vrot.lane.b32.xlu0 %v2688, 32
    %v2691 = vpop.permute.xlu0 %2690
    %2693 = vst.msk [vmem:[#allocation6 + $0x4] sm:$0x1] %vm2599, %v2691
    %v2694 = vld [vmem:[#allocation5 + $0x13] sm:$0x1]
    %2696 = vrot.lane.b32.xlu0 %v2694, 48
    %v2697 = vpop.permute.xlu0 %2696
    %2699 = vst.msk [vmem:[#allocation6 + $0x4] sm:$0x1] %vm2606, %v2697
    %v2700 = vld [vmem:[#allocation2 + $0x8] sm:$0xff]
    %v2701 = vld [vmem:[#allocation2 + $0x10] sm:$0xff]
    %v2702 = vld [vmem:[#allocation2 + $0x50] sm:$0x3]
    %v2703 = vld [vmem:[#allocation2 + $0x58] sm:$0x3]
    %v2704 = vld [vmem:[#allocation2 + $0x18] sm:$0xff]
    %v2705 = vld [vmem:[#allocation2 + $0x20] sm:$0xff]
    %v2706 = vld [vmem:[#allocation2 + $0x60] sm:$0x3]
    %v2707 = vld [vmem:[#allocation2 + $0x68] sm:$0x3]
    %2712 = vrot.lane.b32.xlu0 %v2704, 96
    %v2713 = vpop.permute.xlu0 %2712
    %2714 = vrot.lane.b32.xlu0 %v2705, 96
    %v2715 = vpop.permute.xlu0 %2714
    %2716 = vrot.lane.b32.xlu0 %v2706, 96
    %v2717 = vpop.permute.xlu0 %2716
    %2718 = vrot.lane.b32.xlu0 %v2707, 96
    %v2719 = vpop.permute.xlu0 %2718
    %v2720 = vsel %vm600, %v2713, %v2715
    %v2721 = vsel %vm600, %v2717, %v2719
    %v2726 = vmax.f32 %v2700, %v2720
    %v2727 = vmax.f32 %v2701, %v2715
    %v2728 = vmax.f32 %v2702, %v2721
    %v2729 = vmax.f32 %v2703, %v2719
    %v2730 = vld [vmem:[#allocation2 + $0x28] sm:$0xff]
    %v2731 = vld [vmem:[#allocation2 + $0x30] sm:$0xff]
    %v2732 = vld [vmem:[#allocation2 + $0x70] sm:$0x3]
    %v2733 = vld [vmem:[#allocation2 + $0x78] sm:$0x3]
    %2738 = vrot.lane.b32.xlu0 %v2730, 64
    %v2739 = vpop.permute.xlu0 %2738
    %2740 = vrot.lane.b32.xlu0 %v2731, 64
    %v2741 = vpop.permute.xlu0 %2740
    %2742 = vrot.lane.b32.xlu0 %v2732, 64
    %v2743 = vpop.permute.xlu0 %2742
    %2744 = vrot.lane.b32.xlu0 %v2733, 64
    %v2745 = vpop.permute.xlu0 %2744
    %v2746 = vsel %vm627, %v2739, %v2741
    %v2747 = vsel %vm627, %v2743, %v2745
    %v2752 = vmax.f32 %v2726, %v2746
    %v2753 = vmax.f32 %v2727, %v2741
    %v2754 = vmax.f32 %v2728, %v2747
    %v2755 = vmax.f32 %v2729, %v2745
    %v2756 = vld [vmem:[#allocation2 + $0x38] sm:$0xff]
    %v2757 = vld [vmem:[#allocation2 + $0x40] sm:$0xff]
    %v2758 = vld [vmem:[#allocation2 + $0x80] sm:$0x3]
    %v2759 = vld [vmem:[#allocation2 + $0x88] sm:$0x3]
    %2764 = vrot.lane.b32.xlu0 %v2756, 32
    %v2765 = vpop.permute.xlu0 %2764
    %2766 = vrot.lane.b32.xlu0 %v2757, 32
    %v2767 = vpop.permute.xlu0 %2766
    %2768 = vrot.lane.b32.xlu0 %v2758, 32
    %v2769 = vpop.permute.xlu0 %2768
    %2770 = vrot.lane.b32.xlu0 %v2759, 32
    %v2771 = vpop.permute.xlu0 %2770
    %v2772 = vsel %vm654, %v2765, %v2767
    %v2773 = vsel %vm654, %v2769, %v2771
    %v2778 = vmax.f32 %v2752, %v2772
    %v2779 = vmax.f32 %v2753, %v2767
    %v2780 = vmax.f32 %v2754, %v2773
    %v2781 = vmax.f32 %v2755, %v2771
    %v2782 = vmax.f32 %v2778, 0.0
    %v2783 = vmax.f32 %v2779, 0.0
    %v2784 = vmax.f32 %v2780, 0.0
    %v2785 = vmax.f32 %v2781, 0.0
    %2790 = vrot.lane.b32.xlu0 %v2782, 112
    %v2791 = vpop.permute.xlu0 %2790
    %2792 = vrot.lane.b32.xlu0 %v2783, 112
    %v2793 = vpop.permute.xlu0 %2792
    %2794 = vrot.lane.b32.xlu0 %v2784, 112
    %v2795 = vpop.permute.xlu0 %2794
    %2796 = vrot.lane.b32.xlu0 %v2785, 112
    %v2797 = vpop.permute.xlu0 %2796
    %vm2798 = vcmask 916480
    %v2799 = vsel %vm2798, %v2791, %v2793
    %v2800 = vsel %vm2798, %v2795, %v2797
    %v2803 = vsel %vm669, %v2793, 0
    %v2805 = vsel %vm669, %v2797, 0
    %2807 = vmatpush.msra.mxu0 %v541
    %2808 = vmatpush.msra.mxu0 %v528
    %2809 = vmatpush.msra.mxu0 %v515
    %2810 = vmatpush.msra.mxu0 %v502
    %2811 = vmatpush.msra.mxu0 %v489
    %2812 = vmatpush.msra.mxu0 %v476
    %2813 = vmatpush.msra.mxu0 %v463
    %2814 = vmatpush.msra.mxu0 %v450
    %2815 = vmatpush.msra.mxu0 %v437
    %2816 = vmatpush.msra.mxu0 %v424
    %2817 = vmatpush.msra.mxu0 %v411
    %2818 = vmatpush.msra.mxu0 %v398
    %2819 = vmatpush.msra.mxu0 %v385
    %2820 = vmatpush.msra.mxu0 %v372
    %2821 = vmatpush.msra.mxu0 %v359
    %2822 = vmatpush.msra.mxu0 %v346
    %2823 = vmatmul.f32.gmra.mxu0 %v2799
    %v2824 = vpop.f32.mrf.mxu0
    %v2825 = vadd.f32 0.0, %v2824
    %2826 = vmatmul.f32.gmra.mxu0 %v2800
    %v2827 = vpop.f32.mrf.mxu0
    %v2828 = vadd.f32 0.0, %v2827
    %2829 = vdwg.mxu0
    %2830 = vmatpush.msra.mxu0 0.0
    %2831 = vmatpush.msra.mxu0 0.0
    %2832 = vmatpush.msra.mxu0 0.0
    %2833 = vmatpush.msra.mxu0 0.0
    %2834 = vmatpush.msra.mxu0 0.0
    %2835 = vmatpush.msra.mxu0 0.0
    %2836 = vmatpush.msra.mxu0 0.0
    %2837 = vmatpush.msra.mxu0 0.0
    %2838 = vmatpush.msra.mxu0 0.0
    %2839 = vmatpush.msra.mxu0 0.0
    %2840 = vmatpush.msra.mxu0 0.0
    %2841 = vmatpush.msra.mxu0 0.0
    %2842 = vmatpush.msra.mxu0 0.0
    %2843 = vmatpush.msra.mxu0 0.0
    %2844 = vmatpush.msra.mxu0 %v567
    %2845 = vmatpush.msra.mxu0 %v554
    %2846 = vmatmul.f32.gmra.mxu0 %v2803
    %v2847 = vpop.f32.mrf.mxu0
    %v2848 = vadd.f32 %v2825, %v2847
    %2849 = vmatmul.f32.gmra.mxu0 %v2805
    %v2850 = vpop.f32.mrf.mxu0
    %v2851 = vadd.f32 %v2828, %v2850
    %2852 = vdwg.mxu0
    %2853 = vmatpush.msra.mxu0 %v542
    %2854 = vmatpush.msra.mxu0 %v529
    %2855 = vmatpush.msra.mxu0 %v516
    %2856 = vmatpush.msra.mxu0 %v503
    %2857 = vmatpush.msra.mxu0 %v490
    %2858 = vmatpush.msra.mxu0 %v477
    %2859 = vmatpush.msra.mxu0 %v464
    %2860 = vmatpush.msra.mxu0 %v451
    %2861 = vmatpush.msra.mxu0 %v438
    %2862 = vmatpush.msra.mxu0 %v425
    %2863 = vmatpush.msra.mxu0 %v412
    %2864 = vmatpush.msra.mxu0 %v399
    %2865 = vmatpush.msra.mxu0 %v386
    %2866 = vmatpush.msra.mxu0 %v373
    %2867 = vmatpush.msra.mxu0 %v360
    %2868 = vmatpush.msra.mxu0 %v347
    %2869 = vmatmul.f32.gmra.mxu0 %v2799
    %v2870 = vpop.f32.mrf.mxu0
    %v2871 = vadd.f32 0.0, %v2870
    %2872 = vmatmul.f32.gmra.mxu0 %v2800
    %v2873 = vpop.f32.mrf.mxu0
    %v2874 = vadd.f32 0.0, %v2873
    %2875 = vdwg.mxu0
    %2876 = vmatpush.msra.mxu0 0.0
    %2877 = vmatpush.msra.mxu0 0.0
    %2878 = vmatpush.msra.mxu0 0.0
    %2879 = vmatpush.msra.mxu0 0.0
    %2880 = vmatpush.msra.mxu0 0.0
    %2881 = vmatpush.msra.mxu0 0.0
    %2882 = vmatpush.msra.mxu0 0.0
    %2883 = vmatpush.msra.mxu0 0.0
    %2884 = vmatpush.msra.mxu0 0.0
    %2885 = vmatpush.msra.mxu0 0.0
    %2886 = vmatpush.msra.mxu0 0.0
    %2887 = vmatpush.msra.mxu0 0.0
    %2888 = vmatpush.msra.mxu0 0.0
    %2889 = vmatpush.msra.mxu0 0.0
    %2890 = vmatpush.msra.mxu0 %v568
    %2891 = vmatpush.msra.mxu0 %v555
    %2892 = vmatmul.f32.gmra.mxu0 %v2803
    %v2893 = vpop.f32.mrf.mxu0
    %v2894 = vadd.f32 %v2871, %v2893
    %2895 = vmatmul.f32.gmra.mxu0 %v2805
    %v2896 = vpop.f32.mrf.mxu0
    %v2897 = vadd.f32 %v2874, %v2896
    %2898 = vdwg.mxu0
    %2899 = vmatpush.msra.mxu0 %v543
    %2900 = vmatpush.msra.mxu0 %v530
    %2901 = vmatpush.msra.mxu0 %v517
    %2902 = vmatpush.msra.mxu0 %v504
    %2903 = vmatpush.msra.mxu0 %v491
    %2904 = vmatpush.msra.mxu0 %v478
    %2905 = vmatpush.msra.mxu0 %v465
    %2906 = vmatpush.msra.mxu0 %v452
    %2907 = vmatpush.msra.mxu0 %v439
    %2908 = vmatpush.msra.mxu0 %v426
    %2909 = vmatpush.msra.mxu0 %v413
    %2910 = vmatpush.msra.mxu0 %v400
    %2911 = vmatpush.msra.mxu0 %v387
    %2912 = vmatpush.msra.mxu0 %v374
    %2913 = vmatpush.msra.mxu0 %v361
    %2914 = vmatpush.msra.mxu0 %v348
    %2915 = vmatmul.f32.gmra.mxu0 %v2799
    %v2916 = vpop.f32.mrf.mxu0
    %v2917 = vadd.f32 0.0, %v2916
    %2918 = vmatmul.f32.gmra.mxu0 %v2800
    %v2919 = vpop.f32.mrf.mxu0
    %v2920 = vadd.f32 0.0, %v2919
    %2921 = vdwg.mxu0
    %2922 = vmatpush.msra.mxu0 0.0
    %2923 = vmatpush.msra.mxu0 0.0
    %2924 = vmatpush.msra.mxu0 0.0
    %2925 = vmatpush.msra.mxu0 0.0
    %2926 = vmatpush.msra.mxu0 0.0
    %2927 = vmatpush.msra.mxu0 0.0
    %2928 = vmatpush.msra.mxu0 0.0
    %2929 = vmatpush.msra.mxu0 0.0
    %2930 = vmatpush.msra.mxu0 0.0
    %2931 = vmatpush.msra.mxu0 0.0
    %2932 = vmatpush.msra.mxu0 0.0
    %2933 = vmatpush.msra.mxu0 0.0
    %2934 = vmatpush.msra.mxu0 0.0
    %2935 = vmatpush.msra.mxu0 0.0
    %2936 = vmatpush.msra.mxu0 %v569
    %2937 = vmatpush.msra.mxu0 %v556
    %2938 = vmatmul.f32.gmra.mxu0 %v2803
    %v2939 = vpop.f32.mrf.mxu0
    %v2940 = vadd.f32 %v2917, %v2939
    %2941 = vmatmul.f32.gmra.mxu0 %v2805
    %v2942 = vpop.f32.mrf.mxu0
    %v2943 = vadd.f32 %v2920, %v2942
    %2944 = vdwg.mxu0
    %2945 = vmatpush.msra.mxu0 %v544
    %2946 = vmatpush.msra.mxu0 %v531
    %2947 = vmatpush.msra.mxu0 %v518
    %2948 = vmatpush.msra.mxu0 %v505
    %2949 = vmatpush.msra.mxu0 %v492
    %2950 = vmatpush.msra.mxu0 %v479
    %2951 = vmatpush.msra.mxu0 %v466
    %2952 = vmatpush.msra.mxu0 %v453
    %2953 = vmatpush.msra.mxu0 %v440
    %2954 = vmatpush.msra.mxu0 %v427
    %2955 = vmatpush.msra.mxu0 %v414
    %2956 = vmatpush.msra.mxu0 %v401
    %2957 = vmatpush.msra.mxu0 %v388
    %2958 = vmatpush.msra.mxu0 %v375
    %2959 = vmatpush.msra.mxu0 %v362
    %2960 = vmatpush.msra.mxu0 %v349
    %2961 = vmatmul.f32.gmra.mxu0 %v2799
    %v2962 = vpop.f32.mrf.mxu0
    %v2963 = vadd.f32 0.0, %v2962
    %2964 = vmatmul.f32.gmra.mxu0 %v2800
    %v2965 = vpop.f32.mrf.mxu0
    %v2966 = vadd.f32 0.0, %v2965
    %2967 = vdwg.mxu0
    %2968 = vmatpush.msra.mxu0 0.0
    %2969 = vmatpush.msra.mxu0 0.0
    %2970 = vmatpush.msra.mxu0 0.0
    %2971 = vmatpush.msra.mxu0 0.0
    %2972 = vmatpush.msra.mxu0 0.0
    %2973 = vmatpush.msra.mxu0 0.0
    %2974 = vmatpush.msra.mxu0 0.0
    %2975 = vmatpush.msra.mxu0 0.0
    %2976 = vmatpush.msra.mxu0 0.0
    %2977 = vmatpush.msra.mxu0 0.0
    %2978 = vmatpush.msra.mxu0 0.0
    %2979 = vmatpush.msra.mxu0 0.0
    %2980 = vmatpush.msra.mxu0 0.0
    %2981 = vmatpush.msra.mxu0 0.0
    %2982 = vmatpush.msra.mxu0 %v570
    %2983 = vmatpush.msra.mxu0 %v557
    %2984 = vmatmul.f32.gmra.mxu0 %v2803
    %v2985 = vpop.f32.mrf.mxu0
    %v2986 = vadd.f32 %v2963, %v2985
    %2987 = vmatmul.f32.gmra.mxu0 %v2805
    %v2988 = vpop.f32.mrf.mxu0
    %v2989 = vadd.f32 %v2966, %v2988
    %2990 = vdwg.mxu0
    %2991 = vmatpush.msra.mxu0 %v545
    %2992 = vmatpush.msra.mxu0 %v532
    %2993 = vmatpush.msra.mxu0 %v519
    %2994 = vmatpush.msra.mxu0 %v506
    %2995 = vmatpush.msra.mxu0 %v493
    %2996 = vmatpush.msra.mxu0 %v480
    %2997 = vmatpush.msra.mxu0 %v467
    %2998 = vmatpush.msra.mxu0 %v454
    %2999 = vmatpush.msra.mxu0 %v441
    %3000 = vmatpush.msra.mxu0 %v428
    %3001 = vmatpush.msra.mxu0 %v415
    %3002 = vmatpush.msra.mxu0 %v402
    %3003 = vmatpush.msra.mxu0 %v389
    %3004 = vmatpush.msra.mxu0 %v376
    %3005 = vmatpush.msra.mxu0 %v363
    %3006 = vmatpush.msra.mxu0 %v350
    %3007 = vmatmul.f32.gmra.mxu0 %v2799
    %v3008 = vpop.f32.mrf.mxu0
    %v3009 = vadd.f32 0.0, %v3008
    %3010 = vmatmul.f32.gmra.mxu0 %v2800
    %v3011 = vpop.f32.mrf.mxu0
    %v3012 = vadd.f32 0.0, %v3011
    %3013 = vdwg.mxu0
    %3014 = vmatpush.msra.mxu0 0.0
    %3015 = vmatpush.msra.mxu0 0.0
    %3016 = vmatpush.msra.mxu0 0.0
    %3017 = vmatpush.msra.mxu0 0.0
    %3018 = vmatpush.msra.mxu0 0.0
    %3019 = vmatpush.msra.mxu0 0.0
    %3020 = vmatpush.msra.mxu0 0.0
    %3021 = vmatpush.msra.mxu0 0.0
    %3022 = vmatpush.msra.mxu0 0.0
    %3023 = vmatpush.msra.mxu0 0.0
    %3024 = vmatpush.msra.mxu0 0.0
    %3025 = vmatpush.msra.mxu0 0.0
    %3026 = vmatpush.msra.mxu0 0.0
    %3027 = vmatpush.msra.mxu0 0.0
    %3028 = vmatpush.msra.mxu0 %v571
    %3029 = vmatpush.msra.mxu0 %v558
    %3030 = vmatmul.f32.gmra.mxu0 %v2803
    %v3031 = vpop.f32.mrf.mxu0
    %v3032 = vadd.f32 %v3009, %v3031
    %3033 = vmatmul.f32.gmra.mxu0 %v2805
    %v3034 = vpop.f32.mrf.mxu0
    %v3035 = vadd.f32 %v3012, %v3034
    %3036 = vdwg.mxu0
    %3037 = vmatpush.msra.mxu0 %v546
    %3038 = vmatpush.msra.mxu0 %v533
    %3039 = vmatpush.msra.mxu0 %v520
    %3040 = vmatpush.msra.mxu0 %v507
    %3041 = vmatpush.msra.mxu0 %v494
    %3042 = vmatpush.msra.mxu0 %v481
    %3043 = vmatpush.msra.mxu0 %v468
    %3044 = vmatpush.msra.mxu0 %v455
    %3045 = vmatpush.msra.mxu0 %v442
    %3046 = vmatpush.msra.mxu0 %v429
    %3047 = vmatpush.msra.mxu0 %v416
    %3048 = vmatpush.msra.mxu0 %v403
    %3049 = vmatpush.msra.mxu0 %v390
    %3050 = vmatpush.msra.mxu0 %v377
    %3051 = vmatpush.msra.mxu0 %v364
    %3052 = vmatpush.msra.mxu0 %v351
    %3053 = vmatmul.f32.gmra.mxu0 %v2799
    %v3054 = vpop.f32.mrf.mxu0
    %v3055 = vadd.f32 0.0, %v3054
    %3056 = vmatmul.f32.gmra.mxu0 %v2800
    %v3057 = vpop.f32.mrf.mxu0
    %v3058 = vadd.f32 0.0, %v3057
    %3059 = vdwg.mxu0
    %3060 = vmatpush.msra.mxu0 0.0
    %3061 = vmatpush.msra.mxu0 0.0
    %3062 = vmatpush.msra.mxu0 0.0
    %3063 = vmatpush.msra.mxu0 0.0
    %3064 = vmatpush.msra.mxu0 0.0
    %3065 = vmatpush.msra.mxu0 0.0
    %3066 = vmatpush.msra.mxu0 0.0
    %3067 = vmatpush.msra.mxu0 0.0
    %3068 = vmatpush.msra.mxu0 0.0
    %3069 = vmatpush.msra.mxu0 0.0
    %3070 = vmatpush.msra.mxu0 0.0
    %3071 = vmatpush.msra.mxu0 0.0
    %3072 = vmatpush.msra.mxu0 0.0
    %3073 = vmatpush.msra.mxu0 0.0
    %3074 = vmatpush.msra.mxu0 %v572
    %3075 = vmatpush.msra.mxu0 %v559
    %3076 = vmatmul.f32.gmra.mxu0 %v2803
    %v3077 = vpop.f32.mrf.mxu0
    %v3078 = vadd.f32 %v3055, %v3077
    %3079 = vmatmul.f32.gmra.mxu0 %v2805
    %v3080 = vpop.f32.mrf.mxu0
    %v3081 = vadd.f32 %v3058, %v3080
    %3082 = vdwg.mxu0
    %3083 = vmatpush.msra.mxu0 %v547
    %3084 = vmatpush.msra.mxu0 %v534
    %3085 = vmatpush.msra.mxu0 %v521
    %3086 = vmatpush.msra.mxu0 %v508
    %3087 = vmatpush.msra.mxu0 %v495
    %3088 = vmatpush.msra.mxu0 %v482
    %3089 = vmatpush.msra.mxu0 %v469
    %3090 = vmatpush.msra.mxu0 %v456
    %3091 = vmatpush.msra.mxu0 %v443
    %3092 = vmatpush.msra.mxu0 %v430
    %3093 = vmatpush.msra.mxu0 %v417
    %3094 = vmatpush.msra.mxu0 %v404
    %3095 = vmatpush.msra.mxu0 %v391
    %3096 = vmatpush.msra.mxu0 %v378
    %3097 = vmatpush.msra.mxu0 %v365
    %3098 = vmatpush.msra.mxu0 %v352
    %3099 = vmatmul.f32.gmra.mxu0 %v2799
    %v3100 = vpop.f32.mrf.mxu0
    %v3101 = vadd.f32 0.0, %v3100
    %3102 = vmatmul.f32.gmra.mxu0 %v2800
    %v3103 = vpop.f32.mrf.mxu0
    %v3104 = vadd.f32 0.0, %v3103
    %3105 = vdwg.mxu0
    %3106 = vmatpush.msra.mxu0 0.0
    %3107 = vmatpush.msra.mxu0 0.0
    %3108 = vmatpush.msra.mxu0 0.0
    %3109 = vmatpush.msra.mxu0 0.0
    %3110 = vmatpush.msra.mxu0 0.0
    %3111 = vmatpush.msra.mxu0 0.0
    %3112 = vmatpush.msra.mxu0 0.0
    %3113 = vmatpush.msra.mxu0 0.0
    %3114 = vmatpush.msra.mxu0 0.0
    %3115 = vmatpush.msra.mxu0 0.0
    %3116 = vmatpush.msra.mxu0 0.0
    %3117 = vmatpush.msra.mxu0 0.0
    %3118 = vmatpush.msra.mxu0 0.0
    %3119 = vmatpush.msra.mxu0 0.0
    %3120 = vmatpush.msra.mxu0 %v573
    %3121 = vmatpush.msra.mxu0 %v560
    %3122 = vmatmul.f32.gmra.mxu0 %v2803
    %v3123 = vpop.f32.mrf.mxu0
    %v3124 = vadd.f32 %v3101, %v3123
    %3125 = vmatmul.f32.gmra.mxu0 %v2805
    %v3126 = vpop.f32.mrf.mxu0
    %v3127 = vadd.f32 %v3104, %v3126
    %3128 = vdwg.mxu0
    %3129 = vmatpush.msra.mxu0 %v548
    %3130 = vmatpush.msra.mxu0 %v535
    %3131 = vmatpush.msra.mxu0 %v522
    %3132 = vmatpush.msra.mxu0 %v509
    %3133 = vmatpush.msra.mxu0 %v496
    %3134 = vmatpush.msra.mxu0 %v483
    %3135 = vmatpush.msra.mxu0 %v470
    %3136 = vmatpush.msra.mxu0 %v457
    %3137 = vmatpush.msra.mxu0 %v444
    %3138 = vmatpush.msra.mxu0 %v431
    %3139 = vmatpush.msra.mxu0 %v418
    %3140 = vmatpush.msra.mxu0 %v405
    %3141 = vmatpush.msra.mxu0 %v392
    %3142 = vmatpush.msra.mxu0 %v379
    %3143 = vmatpush.msra.mxu0 %v366
    %3144 = vmatpush.msra.mxu0 %v353
    %3145 = vmatmul.f32.gmra.mxu0 %v2799
    %v3146 = vpop.f32.mrf.mxu0
    %v3147 = vadd.f32 0.0, %v3146
    %3148 = vmatmul.f32.gmra.mxu0 %v2800
    %v3149 = vpop.f32.mrf.mxu0
    %v3150 = vadd.f32 0.0, %v3149
    %3151 = vdwg.mxu0
    %3152 = vmatpush.msra.mxu0 0.0
    %3153 = vmatpush.msra.mxu0 0.0
    %3154 = vmatpush.msra.mxu0 0.0
    %3155 = vmatpush.msra.mxu0 0.0
    %3156 = vmatpush.msra.mxu0 0.0
    %3157 = vmatpush.msra.mxu0 0.0
    %3158 = vmatpush.msra.mxu0 0.0
    %3159 = vmatpush.msra.mxu0 0.0
    %3160 = vmatpush.msra.mxu0 0.0
    %3161 = vmatpush.msra.mxu0 0.0
    %3162 = vmatpush.msra.mxu0 0.0
    %3163 = vmatpush.msra.mxu0 0.0
    %3164 = vmatpush.msra.mxu0 0.0
    %3165 = vmatpush.msra.mxu0 0.0
    %3166 = vmatpush.msra.mxu0 %v574
    %3167 = vmatpush.msra.mxu0 %v561
    %3168 = vmatmul.f32.gmra.mxu0 %v2803
    %v3169 = vpop.f32.mrf.mxu0
    %v3170 = vadd.f32 %v3147, %v3169
    %3171 = vmatmul.f32.gmra.mxu0 %v2805
    %v3172 = vpop.f32.mrf.mxu0
    %v3173 = vadd.f32 %v3150, %v3172
    %3174 = vdwg.mxu0
    %3175 = vmatpush.msra.mxu0 %v549
    %3176 = vmatpush.msra.mxu0 %v536
    %3177 = vmatpush.msra.mxu0 %v523
    %3178 = vmatpush.msra.mxu0 %v510
    %3179 = vmatpush.msra.mxu0 %v497
    %3180 = vmatpush.msra.mxu0 %v484
    %3181 = vmatpush.msra.mxu0 %v471
    %3182 = vmatpush.msra.mxu0 %v458
    %3183 = vmatpush.msra.mxu0 %v445
    %3184 = vmatpush.msra.mxu0 %v432
    %3185 = vmatpush.msra.mxu0 %v419
    %3186 = vmatpush.msra.mxu0 %v406
    %3187 = vmatpush.msra.mxu0 %v393
    %3188 = vmatpush.msra.mxu0 %v380
    %3189 = vmatpush.msra.mxu0 %v367
    %3190 = vmatpush.msra.mxu0 %v354
    %3191 = vmatmul.f32.gmra.mxu0 %v2799
    %v3192 = vpop.f32.mrf.mxu0
    %v3193 = vadd.f32 0.0, %v3192
    %3194 = vmatmul.f32.gmra.mxu0 %v2800
    %v3195 = vpop.f32.mrf.mxu0
    %v3196 = vadd.f32 0.0, %v3195
    %3197 = vdwg.mxu0
    %3198 = vmatpush.msra.mxu0 0.0
    %3199 = vmatpush.msra.mxu0 0.0
    %3200 = vmatpush.msra.mxu0 0.0
    %3201 = vmatpush.msra.mxu0 0.0
    %3202 = vmatpush.msra.mxu0 0.0
    %3203 = vmatpush.msra.mxu0 0.0
    %3204 = vmatpush.msra.mxu0 0.0
    %3205 = vmatpush.msra.mxu0 0.0
    %3206 = vmatpush.msra.mxu0 0.0
    %3207 = vmatpush.msra.mxu0 0.0
    %3208 = vmatpush.msra.mxu0 0.0
    %3209 = vmatpush.msra.mxu0 0.0
    %3210 = vmatpush.msra.mxu0 0.0
    %3211 = vmatpush.msra.mxu0 0.0
    %3212 = vmatpush.msra.mxu0 %v575
    %3213 = vmatpush.msra.mxu0 %v562
    %3214 = vmatmul.f32.gmra.mxu0 %v2803
    %v3215 = vpop.f32.mrf.mxu0
    %v3216 = vadd.f32 %v3193, %v3215
    %3217 = vmatmul.f32.gmra.mxu0 %v2805
    %v3218 = vpop.f32.mrf.mxu0
    %v3219 = vadd.f32 %v3196, %v3218
    %3220 = vdwg.mxu0
    %3221 = vmatpush.msra.mxu0 %v550
    %3222 = vmatpush.msra.mxu0 %v537
    %3223 = vmatpush.msra.mxu0 %v524
    %3224 = vmatpush.msra.mxu0 %v511
    %3225 = vmatpush.msra.mxu0 %v498
    %3226 = vmatpush.msra.mxu0 %v485
    %3227 = vmatpush.msra.mxu0 %v472
    %3228 = vmatpush.msra.mxu0 %v459
    %3229 = vmatpush.msra.mxu0 %v446
    %3230 = vmatpush.msra.mxu0 %v433
    %3231 = vmatpush.msra.mxu0 %v420
    %3232 = vmatpush.msra.mxu0 %v407
    %3233 = vmatpush.msra.mxu0 %v394
    %3234 = vmatpush.msra.mxu0 %v381
    %3235 = vmatpush.msra.mxu0 %v368
    %3236 = vmatpush.msra.mxu0 %v355
    %3237 = vmatmul.f32.gmra.mxu0 %v2799
    %v3238 = vpop.f32.mrf.mxu0
    %v3239 = vadd.f32 0.0, %v3238
    %3240 = vmatmul.f32.gmra.mxu0 %v2800
    %v3241 = vpop.f32.mrf.mxu0
    %v3242 = vadd.f32 0.0, %v3241
    %3243 = vdwg.mxu0
    %3244 = vmatpush.msra.mxu0 0.0
    %3245 = vmatpush.msra.mxu0 0.0
    %3246 = vmatpush.msra.mxu0 0.0
    %3247 = vmatpush.msra.mxu0 0.0
    %3248 = vmatpush.msra.mxu0 0.0
    %3249 = vmatpush.msra.mxu0 0.0
    %3250 = vmatpush.msra.mxu0 0.0
    %3251 = vmatpush.msra.mxu0 0.0
    %3252 = vmatpush.msra.mxu0 0.0
    %3253 = vmatpush.msra.mxu0 0.0
    %3254 = vmatpush.msra.mxu0 0.0
    %3255 = vmatpush.msra.mxu0 0.0
    %3256 = vmatpush.msra.mxu0 0.0
    %3257 = vmatpush.msra.mxu0 0.0
    %3258 = vmatpush.msra.mxu0 %v576
    %3259 = vmatpush.msra.mxu0 %v563
    %3260 = vmatmul.f32.gmra.mxu0 %v2803
    %v3261 = vpop.f32.mrf.mxu0
    %v3262 = vadd.f32 %v3239, %v3261
    %3263 = vmatmul.f32.gmra.mxu0 %v2805
    %v3264 = vpop.f32.mrf.mxu0
    %v3265 = vadd.f32 %v3242, %v3264
    %3266 = vdwg.mxu0
    %3267 = vmatpush.msra.mxu0 %v551
    %3268 = vmatpush.msra.mxu0 %v538
    %3269 = vmatpush.msra.mxu0 %v525
    %3270 = vmatpush.msra.mxu0 %v512
    %3271 = vmatpush.msra.mxu0 %v499
    %3272 = vmatpush.msra.mxu0 %v486
    %3273 = vmatpush.msra.mxu0 %v473
    %3274 = vmatpush.msra.mxu0 %v460
    %3275 = vmatpush.msra.mxu0 %v447
    %3276 = vmatpush.msra.mxu0 %v434
    %3277 = vmatpush.msra.mxu0 %v421
    %3278 = vmatpush.msra.mxu0 %v408
    %3279 = vmatpush.msra.mxu0 %v395
    %3280 = vmatpush.msra.mxu0 %v382
    %3281 = vmatpush.msra.mxu0 %v369
    %3282 = vmatpush.msra.mxu0 %v356
    %3283 = vmatmul.f32.gmra.mxu0 %v2799
    %v3284 = vpop.f32.mrf.mxu0
    %v3285 = vadd.f32 0.0, %v3284
    %3286 = vmatmul.f32.gmra.mxu0 %v2800
    %v3287 = vpop.f32.mrf.mxu0
    %v3288 = vadd.f32 0.0, %v3287
    %3289 = vdwg.mxu0
    %3290 = vmatpush.msra.mxu0 0.0
    %3291 = vmatpush.msra.mxu0 0.0
    %3292 = vmatpush.msra.mxu0 0.0
    %3293 = vmatpush.msra.mxu0 0.0
    %3294 = vmatpush.msra.mxu0 0.0
    %3295 = vmatpush.msra.mxu0 0.0
    %3296 = vmatpush.msra.mxu0 0.0
    %3297 = vmatpush.msra.mxu0 0.0
    %3298 = vmatpush.msra.mxu0 0.0
    %3299 = vmatpush.msra.mxu0 0.0
    %3300 = vmatpush.msra.mxu0 0.0
    %3301 = vmatpush.msra.mxu0 0.0
    %3302 = vmatpush.msra.mxu0 0.0
    %3303 = vmatpush.msra.mxu0 0.0
    %3304 = vmatpush.msra.mxu0 %v577
    %3305 = vmatpush.msra.mxu0 %v564
    %3306 = vmatmul.f32.gmra.mxu0 %v2803
    %v3307 = vpop.f32.mrf.mxu0
    %v3308 = vadd.f32 %v3285, %v3307
    %3309 = vmatmul.f32.gmra.mxu0 %v2805
    %v3310 = vpop.f32.mrf.mxu0
    %v3311 = vadd.f32 %v3288, %v3310
    %3312 = vdwg.mxu0
    %3313 = vmatpush.msra.mxu0 %v552
    %3314 = vmatpush.msra.mxu0 %v539
    %3315 = vmatpush.msra.mxu0 %v526
    %3316 = vmatpush.msra.mxu0 %v513
    %3317 = vmatpush.msra.mxu0 %v500
    %3318 = vmatpush.msra.mxu0 %v487
    %3319 = vmatpush.msra.mxu0 %v474
    %3320 = vmatpush.msra.mxu0 %v461
    %3321 = vmatpush.msra.mxu0 %v448
    %3322 = vmatpush.msra.mxu0 %v435
    %3323 = vmatpush.msra.mxu0 %v422
    %3324 = vmatpush.msra.mxu0 %v409
    %3325 = vmatpush.msra.mxu0 %v396
    %3326 = vmatpush.msra.mxu0 %v383
    %3327 = vmatpush.msra.mxu0 %v370
    %3328 = vmatpush.msra.mxu0 %v357
    %3329 = vmatmul.f32.gmra.mxu0 %v2799
    %v3330 = vpop.f32.mrf.mxu0
    %v3331 = vadd.f32 0.0, %v3330
    %3332 = vmatmul.f32.gmra.mxu0 %v2800
    %v3333 = vpop.f32.mrf.mxu0
    %v3334 = vadd.f32 0.0, %v3333
    %3335 = vdwg.mxu0
    %3336 = vmatpush.msra.mxu0 0.0
    %3337 = vmatpush.msra.mxu0 0.0
    %3338 = vmatpush.msra.mxu0 0.0
    %3339 = vmatpush.msra.mxu0 0.0
    %3340 = vmatpush.msra.mxu0 0.0
    %3341 = vmatpush.msra.mxu0 0.0
    %3342 = vmatpush.msra.mxu0 0.0
    %3343 = vmatpush.msra.mxu0 0.0
    %3344 = vmatpush.msra.mxu0 0.0
    %3345 = vmatpush.msra.mxu0 0.0
    %3346 = vmatpush.msra.mxu0 0.0
    %3347 = vmatpush.msra.mxu0 0.0
    %3348 = vmatpush.msra.mxu0 0.0
    %3349 = vmatpush.msra.mxu0 0.0
    %3350 = vmatpush.msra.mxu0 %v578
    %3351 = vmatpush.msra.mxu0 %v565
    %3352 = vmatmul.f32.gmra.mxu0 %v2803
    %v3353 = vpop.f32.mrf.mxu0
    %v3354 = vadd.f32 %v3331, %v3353
    %3355 = vmatmul.f32.gmra.mxu0 %v2805
    %v3356 = vpop.f32.mrf.mxu0
    %v3357 = vadd.f32 %v3334, %v3356
    %3358 = vdwg.mxu0
    %3359 = vmatpush.msra.mxu0 %v553
    %3360 = vmatpush.msra.mxu0 %v540
    %3361 = vmatpush.msra.mxu0 %v527
    %3362 = vmatpush.msra.mxu0 %v514
    %3363 = vmatpush.msra.mxu0 %v501
    %3364 = vmatpush.msra.mxu0 %v488
    %3365 = vmatpush.msra.mxu0 %v475
    %3366 = vmatpush.msra.mxu0 %v462
    %3367 = vmatpush.msra.mxu0 %v449
    %3368 = vmatpush.msra.mxu0 %v436
    %3369 = vmatpush.msra.mxu0 %v423
    %3370 = vmatpush.msra.mxu0 %v410
    %3371 = vmatpush.msra.mxu0 %v397
    %3372 = vmatpush.msra.mxu0 %v384
    %3373 = vmatpush.msra.mxu0 %v371
    %3374 = vmatpush.msra.mxu0 %v358
    %3375 = vmatmul.f32.gmra.mxu0 %v2799
    %v3376 = vpop.f32.mrf.mxu0
    %v3377 = vadd.f32 0.0, %v3376
    %3378 = vmatmul.f32.gmra.mxu0 %v2800
    %v3379 = vpop.f32.mrf.mxu0
    %v3380 = vadd.f32 0.0, %v3379
    %3381 = vdwg.mxu0
    %3382 = vmatpush.msra.mxu0 0.0
    %3383 = vmatpush.msra.mxu0 0.0
    %3384 = vmatpush.msra.mxu0 0.0
    %3385 = vmatpush.msra.mxu0 0.0
    %3386 = vmatpush.msra.mxu0 0.0
    %3387 = vmatpush.msra.mxu0 0.0
    %3388 = vmatpush.msra.mxu0 0.0
    %3389 = vmatpush.msra.mxu0 0.0
    %3390 = vmatpush.msra.mxu0 0.0
    %3391 = vmatpush.msra.mxu0 0.0
    %3392 = vmatpush.msra.mxu0 0.0
    %3393 = vmatpush.msra.mxu0 0.0
    %3394 = vmatpush.msra.mxu0 0.0
    %3395 = vmatpush.msra.mxu0 0.0
    %3396 = vmatpush.msra.mxu0 %v579
    %3397 = vmatpush.msra.mxu0 %v566
    %3398 = vmatmul.f32.gmra.mxu0 %v2803
    %v3399 = vpop.f32.mrf.mxu0
    %v3400 = vadd.f32 %v3377, %v3399
    %3401 = vmatmul.f32.gmra.mxu0 %v2805
    %v3402 = vpop.f32.mrf.mxu0
    %v3403 = vadd.f32 %v3380, %v3402
    %3404 = vdwg.mxu0
    %3405 = vst [vmem:[#allocation3] sm:$0xff] %v2848
    %3406 = vst [vmem:[#allocation3 + $0x8] sm:$0xff] %v2894
    %3407 = vst [vmem:[#allocation3 + $0x10] sm:$0xff] %v2940
    %3408 = vst [vmem:[#allocation3 + $0x18] sm:$0xff] %v2986
    %3409 = vst [vmem:[#allocation3 + $0x20] sm:$0xff] %v3032
    %3410 = vst [vmem:[#allocation3 + $0x28] sm:$0xff] %v3078
    %3411 = vst [vmem:[#allocation3 + $0x30] sm:$0xff] %v3124
    %3412 = vst [vmem:[#allocation3 + $0x38] sm:$0xff] %v3170
    %3413 = vst [vmem:[#allocation3 + $0x40] sm:$0xff] %v3216
    %3414 = vst [vmem:[#allocation3 + $0x48] sm:$0xff] %v3262
    %3415 = vst [vmem:[#allocation3 + $0x50] sm:$0xff] %v3308
    %3416 = vst [vmem:[#allocation3 + $0x58] sm:$0xff] %v3354
    %3417 = vst.msk [vmem:[#allocation3 + $0x60] sm:$0xff] %vm627, %v3400
    %3418 = vst [vmem:[#allocation3 + $0x68] sm:$0x3] %v2851
    %3419 = vst [vmem:[#allocation3 + $0x70] sm:$0x3] %v2897
    %3420 = vst [vmem:[#allocation3 + $0x78] sm:$0x3] %v2943
    %3421 = vst [vmem:[#allocation3 + $0x80] sm:$0x3] %v2989
    %3422 = vst [vmem:[#allocation3 + $0x88] sm:$0x3] %v3035
    %3423 = vst [vmem:[#allocation3 + $0x90] sm:$0x3] %v3081
    %3424 = vst [vmem:[#allocation3 + $0x98] sm:$0x3] %v3127
    %3425 = vst [vmem:[#allocation3 + $0xa0] sm:$0x3] %v3173
    %3426 = vst [vmem:[#allocation3 + $0xa8] sm:$0x3] %v3219
    %3427 = vst [vmem:[#allocation3 + $0xb0] sm:$0x3] %v3265
    %3428 = vst [vmem:[#allocation3 + $0xb8] sm:$0x3] %v3311
    %3429 = vst [vmem:[#allocation3 + $0xc0] sm:$0x3] %v3357
    %3430 = vst.msk [vmem:[#allocation3 + $0xc8] sm:$0x3] %vm1299, %v3403
    %v3431 = vld [vmem:[%s5] sm:$0xff]
    %v3432 = vld [vmem:[%s5 + $0x8] sm:$0xff]
    %v3433 = vld [vmem:[%s5 + $0x10] sm:$0xf]
    %3435 = vset.pattern.permute.xlu0 0
    %3436 = vperm.xlu0 %3435, %v3431
    %v3437 = vpop.permute.xlu0 %3436
    %3440 = vset.pattern.permute.xlu0 0
    %3441 = vperm.xlu0 %3440, %v3432
    %v3442 = vpop.permute.xlu0 %3441
    %3445 = vset.pattern.permute.xlu0 0
    %3446 = vperm.xlu0 %3445, %v3433
    %v3447 = vpop.permute.xlu0 %3446
    %v3449 = vld [vmem:[%s4] sm:$0xff]
    %v3450 = vld [vmem:[%s4 + $0x8] sm:$0xff]
    %v3451 = vld [vmem:[%s4 + $0x10] sm:$0xf]
    %v3452 = vld [vmem:[#allocation3] sm:$0xff]
    %v3453 = vld [vmem:[#allocation3 + $0x68] sm:$0x3]
    %v3455 = vsel %vm1324, %v3449, 0
    %v3458 = vsel %vm1324, %v3450, 0
    %v3461 = vsel %vm1324, %v3451, 0
    %v3464 = vsel %vm1334, %v3453, 0
    %3466 = vmatpush.msra.mxu0 0.0
    %3467 = vmatpush.msra.mxu0 0.0
    %3468 = vmatpush.msra.mxu0 0.0
    %3469 = vmatpush.msra.mxu0 0.0
    %3470 = vmatpush.msra.mxu0 0.0
    %3471 = vmatpush.msra.mxu0 0.0
    %3472 = vmatpush.msra.mxu0 0.0
    %3473 = vmatpush.msra.mxu0 0.0
    %3474 = vmatpush.msra.mxu0 0.0
    %3475 = vmatpush.msra.mxu0 0.0
    %3476 = vmatpush.msra.mxu0 0.0
    %3477 = vmatpush.msra.mxu0 0.0
    %3478 = vmatpush.msra.mxu0 0.0
    %3479 = vmatpush.msra.mxu0 0.0
    %3480 = vmatpush.msra.mxu0 %v3464
    %3481 = vmatpush.msra.mxu0 %v3452
    %3482 = vmatmul.f32.gmra.mxu0 %v3455
    %v3483 = vpop.f32.mrf.mxu0
    %v3484 = vadd.f32 0.0, %v3483
    %3485 = vmatmul.f32.gmra.mxu0 %v3458
    %v3486 = vpop.f32.mrf.mxu0
    %v3487 = vadd.f32 0.0, %v3486
    %3488 = vmatmul.f32.gmra.mxu0 %v3461
    %v3489 = vpop.f32.mrf.mxu0
    %v3490 = vadd.f32 0.0, %v3489
    %3491 = vdwg.mxu0
    %v3492 = vadd.f32 %v3437, %v3484
    %v3493 = vadd.f32 %v3442, %v3487
    %v3494 = vadd.f32 %v3447, %v3490
    %v3495 = vld [vmem:[%s1367] sm:$0xff]
    %v3496 = vld [vmem:[%s1367 + $0x8] sm:$0xff]
    %v3497 = vld [vmem:[%s1367 + $0x10] sm:$0xf]
    %3499 = vrot.lane.b32.xlu0 %v3452, 64
    %v3500 = vpop.permute.xlu0 %3499
    %3501 = vrot.lane.b32.xlu0 %v3453, 64
    %v3502 = vpop.permute.xlu0 %3501
    %v3505 = vsel %vm1324, %v3495, 0
    %v3508 = vsel %vm1324, %v3496, 0
    %v3511 = vsel %vm1324, %v3497, 0
    %v3513 = vsel %vm1334, %v3502, 0
    %3515 = vmatpush.msra.mxu0 0.0
    %3516 = vmatpush.msra.mxu0 0.0
    %3517 = vmatpush.msra.mxu0 0.0
    %3518 = vmatpush.msra.mxu0 0.0
    %3519 = vmatpush.msra.mxu0 0.0
    %3520 = vmatpush.msra.mxu0 0.0
    %3521 = vmatpush.msra.mxu0 0.0
    %3522 = vmatpush.msra.mxu0 0.0
    %3523 = vmatpush.msra.mxu0 0.0
    %3524 = vmatpush.msra.mxu0 0.0
    %3525 = vmatpush.msra.mxu0 0.0
    %3526 = vmatpush.msra.mxu0 0.0
    %3527 = vmatpush.msra.mxu0 0.0
    %3528 = vmatpush.msra.mxu0 0.0
    %3529 = vmatpush.msra.mxu0 %v3513
    %3530 = vmatpush.msra.mxu0 %v3500
    %3531 = vmatmul.f32.gmra.mxu0 %v3505
    %v3532 = vpop.f32.mrf.mxu0
    %v3533 = vadd.f32 0.0, %v3532
    %3534 = vmatmul.f32.gmra.mxu0 %v3508
    %v3535 = vpop.f32.mrf.mxu0
    %v3536 = vadd.f32 0.0, %v3535
    %3537 = vmatmul.f32.gmra.mxu0 %v3511
    %v3538 = vpop.f32.mrf.mxu0
    %v3539 = vadd.f32 0.0, %v3538
    %3540 = vdwg.mxu0
    %v3541 = vadd.f32 %v3492, %v3533
    %v3542 = vadd.f32 %v3493, %v3536
    %v3543 = vadd.f32 %v3494, %v3539
    %v3544 = vld [vmem:[%s1417] sm:$0xff]
    %v3545 = vld [vmem:[%s1417 + $0x8] sm:$0xff]
    %v3546 = vld [vmem:[%s1417 + $0x10] sm:$0xf]
    %v3547 = vld [vmem:[#allocation3 + $0x8] sm:$0xff]
    %v3548 = vld [vmem:[#allocation3 + $0x70] sm:$0x3]
    %v3550 = vsel %vm1324, %v3544, 0
    %v3553 = vsel %vm1324, %v3545, 0
    %v3556 = vsel %vm1324, %v3546, 0
    %v3559 = vsel %vm1334, %v3548, 0
    %3561 = vmatpush.msra.mxu0 0.0
    %3562 = vmatpush.msra.mxu0 0.0
    %3563 = vmatpush.msra.mxu0 0.0
    %3564 = vmatpush.msra.mxu0 0.0
    %3565 = vmatpush.msra.mxu0 0.0
    %3566 = vmatpush.msra.mxu0 0.0
    %3567 = vmatpush.msra.mxu0 0.0
    %3568 = vmatpush.msra.mxu0 0.0
    %3569 = vmatpush.msra.mxu0 0.0
    %3570 = vmatpush.msra.mxu0 0.0
    %3571 = vmatpush.msra.mxu0 0.0
    %3572 = vmatpush.msra.mxu0 0.0
    %3573 = vmatpush.msra.mxu0 0.0
    %3574 = vmatpush.msra.mxu0 0.0
    %3575 = vmatpush.msra.mxu0 %v3559
    %3576 = vmatpush.msra.mxu0 %v3547
    %3577 = vmatmul.f32.gmra.mxu0 %v3550
    %v3578 = vpop.f32.mrf.mxu0
    %v3579 = vadd.f32 0.0, %v3578
    %3580 = vmatmul.f32.gmra.mxu0 %v3553
    %v3581 = vpop.f32.mrf.mxu0
    %v3582 = vadd.f32 0.0, %v3581
    %3583 = vmatmul.f32.gmra.mxu0 %v3556
    %v3584 = vpop.f32.mrf.mxu0
    %v3585 = vadd.f32 0.0, %v3584
    %3586 = vdwg.mxu0
    %v3587 = vadd.f32 %v3541, %v3579
    %v3588 = vadd.f32 %v3542, %v3582
    %v3589 = vadd.f32 %v3543, %v3585
    %v3590 = vld [vmem:[%s1464] sm:$0xff]
    %v3591 = vld [vmem:[%s1464 + $0x8] sm:$0xff]
    %v3592 = vld [vmem:[%s1464 + $0x10] sm:$0xf]
    %3594 = vrot.lane.b32.xlu0 %v3547, 64
    %v3595 = vpop.permute.xlu0 %3594
    %3596 = vrot.lane.b32.xlu0 %v3548, 64
    %v3597 = vpop.permute.xlu0 %3596
    %v3600 = vsel %vm1324, %v3590, 0
    %v3603 = vsel %vm1324, %v3591, 0
    %v3606 = vsel %vm1324, %v3592, 0
    %v3608 = vsel %vm1334, %v3597, 0
    %3610 = vmatpush.msra.mxu0 0.0
    %3611 = vmatpush.msra.mxu0 0.0
    %3612 = vmatpush.msra.mxu0 0.0
    %3613 = vmatpush.msra.mxu0 0.0
    %3614 = vmatpush.msra.mxu0 0.0
    %3615 = vmatpush.msra.mxu0 0.0
    %3616 = vmatpush.msra.mxu0 0.0
    %3617 = vmatpush.msra.mxu0 0.0
    %3618 = vmatpush.msra.mxu0 0.0
    %3619 = vmatpush.msra.mxu0 0.0
    %3620 = vmatpush.msra.mxu0 0.0
    %3621 = vmatpush.msra.mxu0 0.0
    %3622 = vmatpush.msra.mxu0 0.0
    %3623 = vmatpush.msra.mxu0 0.0
    %3624 = vmatpush.msra.mxu0 %v3608
    %3625 = vmatpush.msra.mxu0 %v3595
    %3626 = vmatmul.f32.gmra.mxu0 %v3600
    %v3627 = vpop.f32.mrf.mxu0
    %v3628 = vadd.f32 0.0, %v3627
    %3629 = vmatmul.f32.gmra.mxu0 %v3603
    %v3630 = vpop.f32.mrf.mxu0
    %v3631 = vadd.f32 0.0, %v3630
    %3632 = vmatmul.f32.gmra.mxu0 %v3606
    %v3633 = vpop.f32.mrf.mxu0
    %v3634 = vadd.f32 0.0, %v3633
    %3635 = vdwg.mxu0
    %v3636 = vadd.f32 %v3587, %v3628
    %v3637 = vadd.f32 %v3588, %v3631
    %v3638 = vadd.f32 %v3589, %v3634
    %v3639 = vld [vmem:[%s1514] sm:$0xff]
    %v3640 = vld [vmem:[%s1514 + $0x8] sm:$0xff]
    %v3641 = vld [vmem:[%s1514 + $0x10] sm:$0xf]
    %v3642 = vld [vmem:[#allocation3 + $0x10] sm:$0xff]
    %v3643 = vld [vmem:[#allocation3 + $0x78] sm:$0x3]
    %v3645 = vsel %vm1324, %v3639, 0
    %v3648 = vsel %vm1324, %v3640, 0
    %v3651 = vsel %vm1324, %v3641, 0
    %v3654 = vsel %vm1334, %v3643, 0
    %3656 = vmatpush.msra.mxu0 0.0
    %3657 = vmatpush.msra.mxu0 0.0
    %3658 = vmatpush.msra.mxu0 0.0
    %3659 = vmatpush.msra.mxu0 0.0
    %3660 = vmatpush.msra.mxu0 0.0
    %3661 = vmatpush.msra.mxu0 0.0
    %3662 = vmatpush.msra.mxu0 0.0
    %3663 = vmatpush.msra.mxu0 0.0
    %3664 = vmatpush.msra.mxu0 0.0
    %3665 = vmatpush.msra.mxu0 0.0
    %3666 = vmatpush.msra.mxu0 0.0
    %3667 = vmatpush.msra.mxu0 0.0
    %3668 = vmatpush.msra.mxu0 0.0
    %3669 = vmatpush.msra.mxu0 0.0
    %3670 = vmatpush.msra.mxu0 %v3654
    %3671 = vmatpush.msra.mxu0 %v3642
    %3672 = vmatmul.f32.gmra.mxu0 %v3645
    %v3673 = vpop.f32.mrf.mxu0
    %v3674 = vadd.f32 0.0, %v3673
    %3675 = vmatmul.f32.gmra.mxu0 %v3648
    %v3676 = vpop.f32.mrf.mxu0
    %v3677 = vadd.f32 0.0, %v3676
    %3678 = vmatmul.f32.gmra.mxu0 %v3651
    %v3679 = vpop.f32.mrf.mxu0
    %v3680 = vadd.f32 0.0, %v3679
    %3681 = vdwg.mxu0
    %v3682 = vadd.f32 %v3636, %v3674
    %v3683 = vadd.f32 %v3637, %v3677
    %v3684 = vadd.f32 %v3638, %v3680
    %v3685 = vld [vmem:[%s1561] sm:$0xff]
    %v3686 = vld [vmem:[%s1561 + $0x8] sm:$0xff]
    %v3687 = vld [vmem:[%s1561 + $0x10] sm:$0xf]
    %3689 = vrot.lane.b32.xlu0 %v3642, 64
    %v3690 = vpop.permute.xlu0 %3689
    %3691 = vrot.lane.b32.xlu0 %v3643, 64
    %v3692 = vpop.permute.xlu0 %3691
    %v3695 = vsel %vm1324, %v3685, 0
    %v3698 = vsel %vm1324, %v3686, 0
    %v3701 = vsel %vm1324, %v3687, 0
    %v3703 = vsel %vm1334, %v3692, 0
    %3705 = vmatpush.msra.mxu0 0.0
    %3706 = vmatpush.msra.mxu0 0.0
    %3707 = vmatpush.msra.mxu0 0.0
    %3708 = vmatpush.msra.mxu0 0.0
    %3709 = vmatpush.msra.mxu0 0.0
    %3710 = vmatpush.msra.mxu0 0.0
    %3711 = vmatpush.msra.mxu0 0.0
    %3712 = vmatpush.msra.mxu0 0.0
    %3713 = vmatpush.msra.mxu0 0.0
    %3714 = vmatpush.msra.mxu0 0.0
    %3715 = vmatpush.msra.mxu0 0.0
    %3716 = vmatpush.msra.mxu0 0.0
    %3717 = vmatpush.msra.mxu0 0.0
    %3718 = vmatpush.msra.mxu0 0.0
    %3719 = vmatpush.msra.mxu0 %v3703
    %3720 = vmatpush.msra.mxu0 %v3690
    %3721 = vmatmul.f32.gmra.mxu0 %v3695
    %v3722 = vpop.f32.mrf.mxu0
    %v3723 = vadd.f32 0.0, %v3722
    %3724 = vmatmul.f32.gmra.mxu0 %v3698
    %v3725 = vpop.f32.mrf.mxu0
    %v3726 = vadd.f32 0.0, %v3725
    %3727 = vmatmul.f32.gmra.mxu0 %v3701
    %v3728 = vpop.f32.mrf.mxu0
    %v3729 = vadd.f32 0.0, %v3728
    %3730 = vdwg.mxu0
    %v3731 = vadd.f32 %v3682, %v3723
    %v3732 = vadd.f32 %v3683, %v3726
    %v3733 = vadd.f32 %v3684, %v3729
    %v3734 = vld [vmem:[%s1611] sm:$0xff]
    %v3735 = vld [vmem:[%s1611 + $0x8] sm:$0xff]
    %v3736 = vld [vmem:[%s1611 + $0x10] sm:$0xf]
    %v3737 = vld [vmem:[#allocation3 + $0x18] sm:$0xff]
    %v3738 = vld [vmem:[#allocation3 + $0x80] sm:$0x3]
    %v3740 = vsel %vm1324, %v3734, 0
    %v3743 = vsel %vm1324, %v3735, 0
    %v3746 = vsel %vm1324, %v3736, 0
    %v3749 = vsel %vm1334, %v3738, 0
    %3751 = vmatpush.msra.mxu0 0.0
    %3752 = vmatpush.msra.mxu0 0.0
    %3753 = vmatpush.msra.mxu0 0.0
    %3754 = vmatpush.msra.mxu0 0.0
    %3755 = vmatpush.msra.mxu0 0.0
    %3756 = vmatpush.msra.mxu0 0.0
    %3757 = vmatpush.msra.mxu0 0.0
    %3758 = vmatpush.msra.mxu0 0.0
    %3759 = vmatpush.msra.mxu0 0.0
    %3760 = vmatpush.msra.mxu0 0.0
    %3761 = vmatpush.msra.mxu0 0.0
    %3762 = vmatpush.msra.mxu0 0.0
    %3763 = vmatpush.msra.mxu0 0.0
    %3764 = vmatpush.msra.mxu0 0.0
    %3765 = vmatpush.msra.mxu0 %v3749
    %3766 = vmatpush.msra.mxu0 %v3737
    %3767 = vmatmul.f32.gmra.mxu0 %v3740
    %v3768 = vpop.f32.mrf.mxu0
    %v3769 = vadd.f32 0.0, %v3768
    %3770 = vmatmul.f32.gmra.mxu0 %v3743
    %v3771 = vpop.f32.mrf.mxu0
    %v3772 = vadd.f32 0.0, %v3771
    %3773 = vmatmul.f32.gmra.mxu0 %v3746
    %v3774 = vpop.f32.mrf.mxu0
    %v3775 = vadd.f32 0.0, %v3774
    %3776 = vdwg.mxu0
    %v3777 = vadd.f32 %v3731, %v3769
    %v3778 = vadd.f32 %v3732, %v3772
    %v3779 = vadd.f32 %v3733, %v3775
    %v3780 = vld [vmem:[%s1658] sm:$0xff]
    %v3781 = vld [vmem:[%s1658 + $0x8] sm:$0xff]
    %v3782 = vld [vmem:[%s1658 + $0x10] sm:$0xf]
    %3784 = vrot.lane.b32.xlu0 %v3737, 64
    %v3785 = vpop.permute.xlu0 %3784
    %3786 = vrot.lane.b32.xlu0 %v3738, 64
    %v3787 = vpop.permute.xlu0 %3786
    %v3790 = vsel %vm1324, %v3780, 0
    %v3793 = vsel %vm1324, %v3781, 0
    %v3796 = vsel %vm1324, %v3782, 0
    %v3798 = vsel %vm1334, %v3787, 0
    %3800 = vmatpush.msra.mxu0 0.0
    %3801 = vmatpush.msra.mxu0 0.0
    %3802 = vmatpush.msra.mxu0 0.0
    %3803 = vmatpush.msra.mxu0 0.0
    %3804 = vmatpush.msra.mxu0 0.0
    %3805 = vmatpush.msra.mxu0 0.0
    %3806 = vmatpush.msra.mxu0 0.0
    %3807 = vmatpush.msra.mxu0 0.0
    %3808 = vmatpush.msra.mxu0 0.0
    %3809 = vmatpush.msra.mxu0 0.0
    %3810 = vmatpush.msra.mxu0 0.0
    %3811 = vmatpush.msra.mxu0 0.0
    %3812 = vmatpush.msra.mxu0 0.0
    %3813 = vmatpush.msra.mxu0 0.0
    %3814 = vmatpush.msra.mxu0 %v3798
    %3815 = vmatpush.msra.mxu0 %v3785
    %3816 = vmatmul.f32.gmra.mxu0 %v3790
    %v3817 = vpop.f32.mrf.mxu0
    %v3818 = vadd.f32 0.0, %v3817
    %3819 = vmatmul.f32.gmra.mxu0 %v3793
    %v3820 = vpop.f32.mrf.mxu0
    %v3821 = vadd.f32 0.0, %v3820
    %3822 = vmatmul.f32.gmra.mxu0 %v3796
    %v3823 = vpop.f32.mrf.mxu0
    %v3824 = vadd.f32 0.0, %v3823
    %3825 = vdwg.mxu0
    %v3826 = vadd.f32 %v3777, %v3818
    %v3827 = vadd.f32 %v3778, %v3821
    %v3828 = vadd.f32 %v3779, %v3824
    %v3829 = vld [vmem:[%s1708] sm:$0xff]
    %v3830 = vld [vmem:[%s1708 + $0x8] sm:$0xff]
    %v3831 = vld [vmem:[%s1708 + $0x10] sm:$0xf]
    %v3832 = vld [vmem:[#allocation3 + $0x20] sm:$0xff]
    %v3833 = vld [vmem:[#allocation3 + $0x88] sm:$0x3]
    %v3835 = vsel %vm1324, %v3829, 0
    %v3838 = vsel %vm1324, %v3830, 0
    %v3841 = vsel %vm1324, %v3831, 0
    %v3844 = vsel %vm1334, %v3833, 0
    %3846 = vmatpush.msra.mxu0 0.0
    %3847 = vmatpush.msra.mxu0 0.0
    %3848 = vmatpush.msra.mxu0 0.0
    %3849 = vmatpush.msra.mxu0 0.0
    %3850 = vmatpush.msra.mxu0 0.0
    %3851 = vmatpush.msra.mxu0 0.0
    %3852 = vmatpush.msra.mxu0 0.0
    %3853 = vmatpush.msra.mxu0 0.0
    %3854 = vmatpush.msra.mxu0 0.0
    %3855 = vmatpush.msra.mxu0 0.0
    %3856 = vmatpush.msra.mxu0 0.0
    %3857 = vmatpush.msra.mxu0 0.0
    %3858 = vmatpush.msra.mxu0 0.0
    %3859 = vmatpush.msra.mxu0 0.0
    %3860 = vmatpush.msra.mxu0 %v3844
    %3861 = vmatpush.msra.mxu0 %v3832
    %3862 = vmatmul.f32.gmra.mxu0 %v3835
    %v3863 = vpop.f32.mrf.mxu0
    %v3864 = vadd.f32 0.0, %v3863
    %3865 = vmatmul.f32.gmra.mxu0 %v3838
    %v3866 = vpop.f32.mrf.mxu0
    %v3867 = vadd.f32 0.0, %v3866
    %3868 = vmatmul.f32.gmra.mxu0 %v3841
    %v3869 = vpop.f32.mrf.mxu0
    %v3870 = vadd.f32 0.0, %v3869
    %3871 = vdwg.mxu0
    %v3872 = vadd.f32 %v3826, %v3864
    %v3873 = vadd.f32 %v3827, %v3867
    %v3874 = vadd.f32 %v3828, %v3870
    %v3875 = vld [vmem:[%s1755] sm:$0xff]
    %v3876 = vld [vmem:[%s1755 + $0x8] sm:$0xff]
    %v3877 = vld [vmem:[%s1755 + $0x10] sm:$0xf]
    %3879 = vrot.lane.b32.xlu0 %v3832, 64
    %v3880 = vpop.permute.xlu0 %3879
    %3881 = vrot.lane.b32.xlu0 %v3833, 64
    %v3882 = vpop.permute.xlu0 %3881
    %v3885 = vsel %vm1324, %v3875, 0
    %v3888 = vsel %vm1324, %v3876, 0
    %v3891 = vsel %vm1324, %v3877, 0
    %v3893 = vsel %vm1334, %v3882, 0
    %3895 = vmatpush.msra.mxu0 0.0
    %3896 = vmatpush.msra.mxu0 0.0
    %3897 = vmatpush.msra.mxu0 0.0
    %3898 = vmatpush.msra.mxu0 0.0
    %3899 = vmatpush.msra.mxu0 0.0
    %3900 = vmatpush.msra.mxu0 0.0
    %3901 = vmatpush.msra.mxu0 0.0
    %3902 = vmatpush.msra.mxu0 0.0
    %3903 = vmatpush.msra.mxu0 0.0
    %3904 = vmatpush.msra.mxu0 0.0
    %3905 = vmatpush.msra.mxu0 0.0
    %3906 = vmatpush.msra.mxu0 0.0
    %3907 = vmatpush.msra.mxu0 0.0
    %3908 = vmatpush.msra.mxu0 0.0
    %3909 = vmatpush.msra.mxu0 %v3893
    %3910 = vmatpush.msra.mxu0 %v3880
    %3911 = vmatmul.f32.gmra.mxu0 %v3885
    %v3912 = vpop.f32.mrf.mxu0
    %v3913 = vadd.f32 0.0, %v3912
    %3914 = vmatmul.f32.gmra.mxu0 %v3888
    %v3915 = vpop.f32.mrf.mxu0
    %v3916 = vadd.f32 0.0, %v3915
    %3917 = vmatmul.f32.gmra.mxu0 %v3891
    %v3918 = vpop.f32.mrf.mxu0
    %v3919 = vadd.f32 0.0, %v3918
    %3920 = vdwg.mxu0
    %v3921 = vadd.f32 %v3872, %v3913
    %v3922 = vadd.f32 %v3873, %v3916
    %v3923 = vadd.f32 %v3874, %v3919
    %v3924 = vld [vmem:[%s1805] sm:$0xff]
    %v3925 = vld [vmem:[%s1805 + $0x8] sm:$0xff]
    %v3926 = vld [vmem:[%s1805 + $0x10] sm:$0xf]
    %v3927 = vld [vmem:[#allocation3 + $0x28] sm:$0xff]
    %v3928 = vld [vmem:[#allocation3 + $0x90] sm:$0x3]
    %v3930 = vsel %vm1324, %v3924, 0
    %v3933 = vsel %vm1324, %v3925, 0
    %v3936 = vsel %vm1324, %v3926, 0
    %v3939 = vsel %vm1334, %v3928, 0
    %3941 = vmatpush.msra.mxu0 0.0
    %3942 = vmatpush.msra.mxu0 0.0
    %3943 = vmatpush.msra.mxu0 0.0
    %3944 = vmatpush.msra.mxu0 0.0
    %3945 = vmatpush.msra.mxu0 0.0
    %3946 = vmatpush.msra.mxu0 0.0
    %3947 = vmatpush.msra.mxu0 0.0
    %3948 = vmatpush.msra.mxu0 0.0
    %3949 = vmatpush.msra.mxu0 0.0
    %3950 = vmatpush.msra.mxu0 0.0
    %3951 = vmatpush.msra.mxu0 0.0
    %3952 = vmatpush.msra.mxu0 0.0
    %3953 = vmatpush.msra.mxu0 0.0
    %3954 = vmatpush.msra.mxu0 0.0
    %3955 = vmatpush.msra.mxu0 %v3939
    %3956 = vmatpush.msra.mxu0 %v3927
    %3957 = vmatmul.f32.gmra.mxu0 %v3930
    %v3958 = vpop.f32.mrf.mxu0
    %v3959 = vadd.f32 0.0, %v3958
    %3960 = vmatmul.f32.gmra.mxu0 %v3933
    %v3961 = vpop.f32.mrf.mxu0
    %v3962 = vadd.f32 0.0, %v3961
    %3963 = vmatmul.f32.gmra.mxu0 %v3936
    %v3964 = vpop.f32.mrf.mxu0
    %v3965 = vadd.f32 0.0, %v3964
    %3966 = vdwg.mxu0
    %v3967 = vadd.f32 %v3921, %v3959
    %v3968 = vadd.f32 %v3922, %v3962
    %v3969 = vadd.f32 %v3923, %v3965
    %v3970 = vld [vmem:[%s1852] sm:$0xff]
    %v3971 = vld [vmem:[%s1852 + $0x8] sm:$0xff]
    %v3972 = vld [vmem:[%s1852 + $0x10] sm:$0xf]
    %3974 = vrot.lane.b32.xlu0 %v3927, 64
    %v3975 = vpop.permute.xlu0 %3974
    %3976 = vrot.lane.b32.xlu0 %v3928, 64
    %v3977 = vpop.permute.xlu0 %3976
    %v3980 = vsel %vm1324, %v3970, 0
    %v3983 = vsel %vm1324, %v3971, 0
    %v3986 = vsel %vm1324, %v3972, 0
    %v3988 = vsel %vm1334, %v3977, 0
    %3990 = vmatpush.msra.mxu0 0.0
    %3991 = vmatpush.msra.mxu0 0.0
    %3992 = vmatpush.msra.mxu0 0.0
    %3993 = vmatpush.msra.mxu0 0.0
    %3994 = vmatpush.msra.mxu0 0.0
    %3995 = vmatpush.msra.mxu0 0.0
    %3996 = vmatpush.msra.mxu0 0.0
    %3997 = vmatpush.msra.mxu0 0.0
    %3998 = vmatpush.msra.mxu0 0.0
    %3999 = vmatpush.msra.mxu0 0.0
    %4000 = vmatpush.msra.mxu0 0.0
    %4001 = vmatpush.msra.mxu0 0.0
    %4002 = vmatpush.msra.mxu0 0.0
    %4003 = vmatpush.msra.mxu0 0.0
    %4004 = vmatpush.msra.mxu0 %v3988
    %4005 = vmatpush.msra.mxu0 %v3975
    %4006 = vmatmul.f32.gmra.mxu0 %v3980
    %v4007 = vpop.f32.mrf.mxu0
    %v4008 = vadd.f32 0.0, %v4007
    %4009 = vmatmul.f32.gmra.mxu0 %v3983
    %v4010 = vpop.f32.mrf.mxu0
    %v4011 = vadd.f32 0.0, %v4010
    %4012 = vmatmul.f32.gmra.mxu0 %v3986
    %v4013 = vpop.f32.mrf.mxu0
    %v4014 = vadd.f32 0.0, %v4013
    %4015 = vdwg.mxu0
    %v4016 = vadd.f32 %v3967, %v4008
    %v4017 = vadd.f32 %v3968, %v4011
    %v4018 = vadd.f32 %v3969, %v4014
    %v4019 = vld [vmem:[%s1902] sm:$0xff]
    %v4020 = vld [vmem:[%s1902 + $0x8] sm:$0xff]
    %v4021 = vld [vmem:[%s1902 + $0x10] sm:$0xf]
    %v4022 = vld [vmem:[#allocation3 + $0x30] sm:$0xff]
    %v4023 = vld [vmem:[#allocation3 + $0x98] sm:$0x3]
    %v4025 = vsel %vm1324, %v4019, 0
    %v4028 = vsel %vm1324, %v4020, 0
    %v4031 = vsel %vm1324, %v4021, 0
    %v4034 = vsel %vm1334, %v4023, 0
    %4036 = vmatpush.msra.mxu0 0.0
    %4037 = vmatpush.msra.mxu0 0.0
    %4038 = vmatpush.msra.mxu0 0.0
    %4039 = vmatpush.msra.mxu0 0.0
    %4040 = vmatpush.msra.mxu0 0.0
    %4041 = vmatpush.msra.mxu0 0.0
    %4042 = vmatpush.msra.mxu0 0.0
    %4043 = vmatpush.msra.mxu0 0.0
    %4044 = vmatpush.msra.mxu0 0.0
    %4045 = vmatpush.msra.mxu0 0.0
    %4046 = vmatpush.msra.mxu0 0.0
    %4047 = vmatpush.msra.mxu0 0.0
    %4048 = vmatpush.msra.mxu0 0.0
    %4049 = vmatpush.msra.mxu0 0.0
    %4050 = vmatpush.msra.mxu0 %v4034
    %4051 = vmatpush.msra.mxu0 %v4022
    %4052 = vmatmul.f32.gmra.mxu0 %v4025
    %v4053 = vpop.f32.mrf.mxu0
    %v4054 = vadd.f32 0.0, %v4053
    %4055 = vmatmul.f32.gmra.mxu0 %v4028
    %v4056 = vpop.f32.mrf.mxu0
    %v4057 = vadd.f32 0.0, %v4056
    %4058 = vmatmul.f32.gmra.mxu0 %v4031
    %v4059 = vpop.f32.mrf.mxu0
    %v4060 = vadd.f32 0.0, %v4059
    %4061 = vdwg.mxu0
    %v4062 = vadd.f32 %v4016, %v4054
    %v4063 = vadd.f32 %v4017, %v4057
    %v4064 = vadd.f32 %v4018, %v4060
    %v4065 = vld [vmem:[%s1949] sm:$0xff]
    %v4066 = vld [vmem:[%s1949 + $0x8] sm:$0xff]
    %v4067 = vld [vmem:[%s1949 + $0x10] sm:$0xf]
    %4069 = vrot.lane.b32.xlu0 %v4022, 64
    %v4070 = vpop.permute.xlu0 %4069
    %4071 = vrot.lane.b32.xlu0 %v4023, 64
    %v4072 = vpop.permute.xlu0 %4071
    %v4075 = vsel %vm1324, %v4065, 0
    %v4078 = vsel %vm1324, %v4066, 0
    %v4081 = vsel %vm1324, %v4067, 0
    %v4083 = vsel %vm1334, %v4072, 0
    %4085 = vmatpush.msra.mxu0 0.0
    %4086 = vmatpush.msra.mxu0 0.0
    %4087 = vmatpush.msra.mxu0 0.0
    %4088 = vmatpush.msra.mxu0 0.0
    %4089 = vmatpush.msra.mxu0 0.0
    %4090 = vmatpush.msra.mxu0 0.0
    %4091 = vmatpush.msra.mxu0 0.0
    %4092 = vmatpush.msra.mxu0 0.0
    %4093 = vmatpush.msra.mxu0 0.0
    %4094 = vmatpush.msra.mxu0 0.0
    %4095 = vmatpush.msra.mxu0 0.0
    %4096 = vmatpush.msra.mxu0 0.0
    %4097 = vmatpush.msra.mxu0 0.0
    %4098 = vmatpush.msra.mxu0 0.0
    %4099 = vmatpush.msra.mxu0 %v4083
    %4100 = vmatpush.msra.mxu0 %v4070
    %4101 = vmatmul.f32.gmra.mxu0 %v4075
    %v4102 = vpop.f32.mrf.mxu0
    %v4103 = vadd.f32 0.0, %v4102
    %4104 = vmatmul.f32.gmra.mxu0 %v4078
    %v4105 = vpop.f32.mrf.mxu0
    %v4106 = vadd.f32 0.0, %v4105
    %4107 = vmatmul.f32.gmra.mxu0 %v4081
    %v4108 = vpop.f32.mrf.mxu0
    %v4109 = vadd.f32 0.0, %v4108
    %4110 = vdwg.mxu0
    %v4111 = vadd.f32 %v4062, %v4103
    %v4112 = vadd.f32 %v4063, %v4106
    %v4113 = vadd.f32 %v4064, %v4109
    %v4114 = vld [vmem:[%s1999] sm:$0xff]
    %v4115 = vld [vmem:[%s1999 + $0x8] sm:$0xff]
    %v4116 = vld [vmem:[%s1999 + $0x10] sm:$0xf]
    %v4117 = vld [vmem:[#allocation3 + $0x38] sm:$0xff]
    %v4118 = vld [vmem:[#allocation3 + $0xa0] sm:$0x3]
    %v4120 = vsel %vm1324, %v4114, 0
    %v4123 = vsel %vm1324, %v4115, 0
    %v4126 = vsel %vm1324, %v4116, 0
    %v4129 = vsel %vm1334, %v4118, 0
    %4131 = vmatpush.msra.mxu0 0.0
    %4132 = vmatpush.msra.mxu0 0.0
    %4133 = vmatpush.msra.mxu0 0.0
    %4134 = vmatpush.msra.mxu0 0.0
    %4135 = vmatpush.msra.mxu0 0.0
    %4136 = vmatpush.msra.mxu0 0.0
    %4137 = vmatpush.msra.mxu0 0.0
    %4138 = vmatpush.msra.mxu0 0.0
    %4139 = vmatpush.msra.mxu0 0.0
    %4140 = vmatpush.msra.mxu0 0.0
    %4141 = vmatpush.msra.mxu0 0.0
    %4142 = vmatpush.msra.mxu0 0.0
    %4143 = vmatpush.msra.mxu0 0.0
    %4144 = vmatpush.msra.mxu0 0.0
    %4145 = vmatpush.msra.mxu0 %v4129
    %4146 = vmatpush.msra.mxu0 %v4117
    %4147 = vmatmul.f32.gmra.mxu0 %v4120
    %v4148 = vpop.f32.mrf.mxu0
    %v4149 = vadd.f32 0.0, %v4148
    %4150 = vmatmul.f32.gmra.mxu0 %v4123
    %v4151 = vpop.f32.mrf.mxu0
    %v4152 = vadd.f32 0.0, %v4151
    %4153 = vmatmul.f32.gmra.mxu0 %v4126
    %v4154 = vpop.f32.mrf.mxu0
    %v4155 = vadd.f32 0.0, %v4154
    %4156 = vdwg.mxu0
    %v4157 = vadd.f32 %v4111, %v4149
    %v4158 = vadd.f32 %v4112, %v4152
    %v4159 = vadd.f32 %v4113, %v4155
    %v4160 = vld [vmem:[%s2046] sm:$0xff]
    %v4161 = vld [vmem:[%s2046 + $0x8] sm:$0xff]
    %v4162 = vld [vmem:[%s2046 + $0x10] sm:$0xf]
    %4164 = vrot.lane.b32.xlu0 %v4117, 64
    %v4165 = vpop.permute.xlu0 %4164
    %4166 = vrot.lane.b32.xlu0 %v4118, 64
    %v4167 = vpop.permute.xlu0 %4166
    %v4170 = vsel %vm1324, %v4160, 0
    %v4173 = vsel %vm1324, %v4161, 0
    %v4176 = vsel %vm1324, %v4162, 0
    %v4178 = vsel %vm1334, %v4167, 0
    %4180 = vmatpush.msra.mxu0 0.0
    %4181 = vmatpush.msra.mxu0 0.0
    %4182 = vmatpush.msra.mxu0 0.0
    %4183 = vmatpush.msra.mxu0 0.0
    %4184 = vmatpush.msra.mxu0 0.0
    %4185 = vmatpush.msra.mxu0 0.0
    %4186 = vmatpush.msra.mxu0 0.0
    %4187 = vmatpush.msra.mxu0 0.0
    %4188 = vmatpush.msra.mxu0 0.0
    %4189 = vmatpush.msra.mxu0 0.0
    %4190 = vmatpush.msra.mxu0 0.0
    %4191 = vmatpush.msra.mxu0 0.0
    %4192 = vmatpush.msra.mxu0 0.0
    %4193 = vmatpush.msra.mxu0 0.0
    %4194 = vmatpush.msra.mxu0 %v4178
    %4195 = vmatpush.msra.mxu0 %v4165
    %4196 = vmatmul.f32.gmra.mxu0 %v4170
    %v4197 = vpop.f32.mrf.mxu0
    %v4198 = vadd.f32 0.0, %v4197
    %4199 = vmatmul.f32.gmra.mxu0 %v4173
    %v4200 = vpop.f32.mrf.mxu0
    %v4201 = vadd.f32 0.0, %v4200
    %4202 = vmatmul.f32.gmra.mxu0 %v4176
    %v4203 = vpop.f32.mrf.mxu0
    %v4204 = vadd.f32 0.0, %v4203
    %4205 = vdwg.mxu0
    %v4206 = vadd.f32 %v4157, %v4198
    %v4207 = vadd.f32 %v4158, %v4201
    %v4208 = vadd.f32 %v4159, %v4204
    %v4209 = vld [vmem:[%s2096] sm:$0xff]
    %v4210 = vld [vmem:[%s2096 + $0x8] sm:$0xff]
    %v4211 = vld [vmem:[%s2096 + $0x10] sm:$0xf]
    %v4212 = vld [vmem:[#allocation3 + $0x40] sm:$0xff]
    %v4213 = vld [vmem:[#allocation3 + $0xa8] sm:$0x3]
    %v4215 = vsel %vm1324, %v4209, 0
    %v4218 = vsel %vm1324, %v4210, 0
    %v4221 = vsel %vm1324, %v4211, 0
    %v4224 = vsel %vm1334, %v4213, 0
    %4226 = vmatpush.msra.mxu0 0.0
    %4227 = vmatpush.msra.mxu0 0.0
    %4228 = vmatpush.msra.mxu0 0.0
    %4229 = vmatpush.msra.mxu0 0.0
    %4230 = vmatpush.msra.mxu0 0.0
    %4231 = vmatpush.msra.mxu0 0.0
    %4232 = vmatpush.msra.mxu0 0.0
    %4233 = vmatpush.msra.mxu0 0.0
    %4234 = vmatpush.msra.mxu0 0.0
    %4235 = vmatpush.msra.mxu0 0.0
    %4236 = vmatpush.msra.mxu0 0.0
    %4237 = vmatpush.msra.mxu0 0.0
    %4238 = vmatpush.msra.mxu0 0.0
    %4239 = vmatpush.msra.mxu0 0.0
    %4240 = vmatpush.msra.mxu0 %v4224
    %4241 = vmatpush.msra.mxu0 %v4212
    %4242 = vmatmul.f32.gmra.mxu0 %v4215
    %v4243 = vpop.f32.mrf.mxu0
    %v4244 = vadd.f32 0.0, %v4243
    %4245 = vmatmul.f32.gmra.mxu0 %v4218
    %v4246 = vpop.f32.mrf.mxu0
    %v4247 = vadd.f32 0.0, %v4246
    %4248 = vmatmul.f32.gmra.mxu0 %v4221
    %v4249 = vpop.f32.mrf.mxu0
    %v4250 = vadd.f32 0.0, %v4249
    %4251 = vdwg.mxu0
    %v4252 = vadd.f32 %v4206, %v4244
    %v4253 = vadd.f32 %v4207, %v4247
    %v4254 = vadd.f32 %v4208, %v4250
    %v4255 = vld [vmem:[%s2143] sm:$0xff]
    %v4256 = vld [vmem:[%s2143 + $0x8] sm:$0xff]
    %v4257 = vld [vmem:[%s2143 + $0x10] sm:$0xf]
    %4259 = vrot.lane.b32.xlu0 %v4212, 64
    %v4260 = vpop.permute.xlu0 %4259
    %4261 = vrot.lane.b32.xlu0 %v4213, 64
    %v4262 = vpop.permute.xlu0 %4261
    %v4265 = vsel %vm1324, %v4255, 0
    %v4268 = vsel %vm1324, %v4256, 0
    %v4271 = vsel %vm1324, %v4257, 0
    %v4273 = vsel %vm1334, %v4262, 0
    %4275 = vmatpush.msra.mxu0 0.0
    %4276 = vmatpush.msra.mxu0 0.0
    %4277 = vmatpush.msra.mxu0 0.0
    %4278 = vmatpush.msra.mxu0 0.0
    %4279 = vmatpush.msra.mxu0 0.0
    %4280 = vmatpush.msra.mxu0 0.0
    %4281 = vmatpush.msra.mxu0 0.0
    %4282 = vmatpush.msra.mxu0 0.0
    %4283 = vmatpush.msra.mxu0 0.0
    %4284 = vmatpush.msra.mxu0 0.0
    %4285 = vmatpush.msra.mxu0 0.0
    %4286 = vmatpush.msra.mxu0 0.0
    %4287 = vmatpush.msra.mxu0 0.0
    %4288 = vmatpush.msra.mxu0 0.0
    %4289 = vmatpush.msra.mxu0 %v4273
    %4290 = vmatpush.msra.mxu0 %v4260
    %4291 = vmatmul.f32.gmra.mxu0 %v4265
    %v4292 = vpop.f32.mrf.mxu0
    %v4293 = vadd.f32 0.0, %v4292
    %4294 = vmatmul.f32.gmra.mxu0 %v4268
    %v4295 = vpop.f32.mrf.mxu0
    %v4296 = vadd.f32 0.0, %v4295
    %4297 = vmatmul.f32.gmra.mxu0 %v4271
    %v4298 = vpop.f32.mrf.mxu0
    %v4299 = vadd.f32 0.0, %v4298
    %4300 = vdwg.mxu0
    %v4301 = vadd.f32 %v4252, %v4293
    %v4302 = vadd.f32 %v4253, %v4296
    %v4303 = vadd.f32 %v4254, %v4299
    %v4304 = vld [vmem:[%s2193] sm:$0xff]
    %v4305 = vld [vmem:[%s2193 + $0x8] sm:$0xff]
    %v4306 = vld [vmem:[%s2193 + $0x10] sm:$0xf]
    %v4307 = vld [vmem:[#allocation3 + $0x48] sm:$0xff]
    %v4308 = vld [vmem:[#allocation3 + $0xb0] sm:$0x3]
    %v4310 = vsel %vm1324, %v4304, 0
    %v4313 = vsel %vm1324, %v4305, 0
    %v4316 = vsel %vm1324, %v4306, 0
    %v4319 = vsel %vm1334, %v4308, 0
    %4321 = vmatpush.msra.mxu0 0.0
    %4322 = vmatpush.msra.mxu0 0.0
    %4323 = vmatpush.msra.mxu0 0.0
    %4324 = vmatpush.msra.mxu0 0.0
    %4325 = vmatpush.msra.mxu0 0.0
    %4326 = vmatpush.msra.mxu0 0.0
    %4327 = vmatpush.msra.mxu0 0.0
    %4328 = vmatpush.msra.mxu0 0.0
    %4329 = vmatpush.msra.mxu0 0.0
    %4330 = vmatpush.msra.mxu0 0.0
    %4331 = vmatpush.msra.mxu0 0.0
    %4332 = vmatpush.msra.mxu0 0.0
    %4333 = vmatpush.msra.mxu0 0.0
    %4334 = vmatpush.msra.mxu0 0.0
    %4335 = vmatpush.msra.mxu0 %v4319
    %4336 = vmatpush.msra.mxu0 %v4307
    %4337 = vmatmul.f32.gmra.mxu0 %v4310
    %v4338 = vpop.f32.mrf.mxu0
    %v4339 = vadd.f32 0.0, %v4338
    %4340 = vmatmul.f32.gmra.mxu0 %v4313
    %v4341 = vpop.f32.mrf.mxu0
    %v4342 = vadd.f32 0.0, %v4341
    %4343 = vmatmul.f32.gmra.mxu0 %v4316
    %v4344 = vpop.f32.mrf.mxu0
    %v4345 = vadd.f32 0.0, %v4344
    %4346 = vdwg.mxu0
    %v4347 = vadd.f32 %v4301, %v4339
    %v4348 = vadd.f32 %v4302, %v4342
    %v4349 = vadd.f32 %v4303, %v4345
    %v4350 = vld [vmem:[%s2240] sm:$0xff]
    %v4351 = vld [vmem:[%s2240 + $0x8] sm:$0xff]
    %v4352 = vld [vmem:[%s2240 + $0x10] sm:$0xf]
    %4354 = vrot.lane.b32.xlu0 %v4307, 64
    %v4355 = vpop.permute.xlu0 %4354
    %4356 = vrot.lane.b32.xlu0 %v4308, 64
    %v4357 = vpop.permute.xlu0 %4356
    %v4360 = vsel %vm1324, %v4350, 0
    %v4363 = vsel %vm1324, %v4351, 0
    %v4366 = vsel %vm1324, %v4352, 0
    %v4368 = vsel %vm1334, %v4357, 0
    %4370 = vmatpush.msra.mxu0 0.0
    %4371 = vmatpush.msra.mxu0 0.0
    %4372 = vmatpush.msra.mxu0 0.0
    %4373 = vmatpush.msra.mxu0 0.0
    %4374 = vmatpush.msra.mxu0 0.0
    %4375 = vmatpush.msra.mxu0 0.0
    %4376 = vmatpush.msra.mxu0 0.0
    %4377 = vmatpush.msra.mxu0 0.0
    %4378 = vmatpush.msra.mxu0 0.0
    %4379 = vmatpush.msra.mxu0 0.0
    %4380 = vmatpush.msra.mxu0 0.0
    %4381 = vmatpush.msra.mxu0 0.0
    %4382 = vmatpush.msra.mxu0 0.0
    %4383 = vmatpush.msra.mxu0 0.0
    %4384 = vmatpush.msra.mxu0 %v4368
    %4385 = vmatpush.msra.mxu0 %v4355
    %4386 = vmatmul.f32.gmra.mxu0 %v4360
    %v4387 = vpop.f32.mrf.mxu0
    %v4388 = vadd.f32 0.0, %v4387
    %4389 = vmatmul.f32.gmra.mxu0 %v4363
    %v4390 = vpop.f32.mrf.mxu0
    %v4391 = vadd.f32 0.0, %v4390
    %4392 = vmatmul.f32.gmra.mxu0 %v4366
    %v4393 = vpop.f32.mrf.mxu0
    %v4394 = vadd.f32 0.0, %v4393
    %4395 = vdwg.mxu0
    %v4396 = vadd.f32 %v4347, %v4388
    %v4397 = vadd.f32 %v4348, %v4391
    %v4398 = vadd.f32 %v4349, %v4394
    %v4399 = vld [vmem:[%s2290] sm:$0xff]
    %v4400 = vld [vmem:[%s2290 + $0x8] sm:$0xff]
    %v4401 = vld [vmem:[%s2290 + $0x10] sm:$0xf]
    %v4402 = vld [vmem:[#allocation3 + $0x50] sm:$0xff]
    %v4403 = vld [vmem:[#allocation3 + $0xb8] sm:$0x3]
    %v4405 = vsel %vm1324, %v4399, 0
    %v4408 = vsel %vm1324, %v4400, 0
    %v4411 = vsel %vm1324, %v4401, 0
    %v4414 = vsel %vm1334, %v4403, 0
    %4416 = vmatpush.msra.mxu0 0.0
    %4417 = vmatpush.msra.mxu0 0.0
    %4418 = vmatpush.msra.mxu0 0.0
    %4419 = vmatpush.msra.mxu0 0.0
    %4420 = vmatpush.msra.mxu0 0.0
    %4421 = vmatpush.msra.mxu0 0.0
    %4422 = vmatpush.msra.mxu0 0.0
    %4423 = vmatpush.msra.mxu0 0.0
    %4424 = vmatpush.msra.mxu0 0.0
    %4425 = vmatpush.msra.mxu0 0.0
    %4426 = vmatpush.msra.mxu0 0.0
    %4427 = vmatpush.msra.mxu0 0.0
    %4428 = vmatpush.msra.mxu0 0.0
    %4429 = vmatpush.msra.mxu0 0.0
    %4430 = vmatpush.msra.mxu0 %v4414
    %4431 = vmatpush.msra.mxu0 %v4402
    %4432 = vmatmul.f32.gmra.mxu0 %v4405
    %v4433 = vpop.f32.mrf.mxu0
    %v4434 = vadd.f32 0.0, %v4433
    %4435 = vmatmul.f32.gmra.mxu0 %v4408
    %v4436 = vpop.f32.mrf.mxu0
    %v4437 = vadd.f32 0.0, %v4436
    %4438 = vmatmul.f32.gmra.mxu0 %v4411
    %v4439 = vpop.f32.mrf.mxu0
    %v4440 = vadd.f32 0.0, %v4439
    %4441 = vdwg.mxu0
    %v4442 = vadd.f32 %v4396, %v4434
    %v4443 = vadd.f32 %v4397, %v4437
    %v4444 = vadd.f32 %v4398, %v4440
    %v4445 = vld [vmem:[%s2337] sm:$0xff]
    %v4446 = vld [vmem:[%s2337 + $0x8] sm:$0xff]
    %v4447 = vld [vmem:[%s2337 + $0x10] sm:$0xf]
    %4449 = vrot.lane.b32.xlu0 %v4402, 64
    %v4450 = vpop.permute.xlu0 %4449
    %4451 = vrot.lane.b32.xlu0 %v4403, 64
    %v4452 = vpop.permute.xlu0 %4451
    %v4455 = vsel %vm1324, %v4445, 0
    %v4458 = vsel %vm1324, %v4446, 0
    %v4461 = vsel %vm1324, %v4447, 0
    %v4463 = vsel %vm1334, %v4452, 0
    %4465 = vmatpush.msra.mxu0 0.0
    %4466 = vmatpush.msra.mxu0 0.0
    %4467 = vmatpush.msra.mxu0 0.0
    %4468 = vmatpush.msra.mxu0 0.0
    %4469 = vmatpush.msra.mxu0 0.0
    %4470 = vmatpush.msra.mxu0 0.0
    %4471 = vmatpush.msra.mxu0 0.0
    %4472 = vmatpush.msra.mxu0 0.0
    %4473 = vmatpush.msra.mxu0 0.0
    %4474 = vmatpush.msra.mxu0 0.0
    %4475 = vmatpush.msra.mxu0 0.0
    %4476 = vmatpush.msra.mxu0 0.0
    %4477 = vmatpush.msra.mxu0 0.0
    %4478 = vmatpush.msra.mxu0 0.0
    %4479 = vmatpush.msra.mxu0 %v4463
    %4480 = vmatpush.msra.mxu0 %v4450
    %4481 = vmatmul.f32.gmra.mxu0 %v4455
    %v4482 = vpop.f32.mrf.mxu0
    %v4483 = vadd.f32 0.0, %v4482
    %4484 = vmatmul.f32.gmra.mxu0 %v4458
    %v4485 = vpop.f32.mrf.mxu0
    %v4486 = vadd.f32 0.0, %v4485
    %4487 = vmatmul.f32.gmra.mxu0 %v4461
    %v4488 = vpop.f32.mrf.mxu0
    %v4489 = vadd.f32 0.0, %v4488
    %4490 = vdwg.mxu0
    %v4491 = vadd.f32 %v4442, %v4483
    %v4492 = vadd.f32 %v4443, %v4486
    %v4493 = vadd.f32 %v4444, %v4489
    %v4494 = vld [vmem:[%s2387] sm:$0xff]
    %v4495 = vld [vmem:[%s2387 + $0x8] sm:$0xff]
    %v4496 = vld [vmem:[%s2387 + $0x10] sm:$0xf]
    %v4497 = vld [vmem:[#allocation3 + $0x58] sm:$0xff]
    %v4498 = vld [vmem:[#allocation3 + $0xc0] sm:$0x3]
    %v4500 = vsel %vm1324, %v4494, 0
    %v4503 = vsel %vm1324, %v4495, 0
    %v4506 = vsel %vm1324, %v4496, 0
    %v4509 = vsel %vm1334, %v4498, 0
    %4511 = vmatpush.msra.mxu0 0.0
    %4512 = vmatpush.msra.mxu0 0.0
    %4513 = vmatpush.msra.mxu0 0.0
    %4514 = vmatpush.msra.mxu0 0.0
    %4515 = vmatpush.msra.mxu0 0.0
    %4516 = vmatpush.msra.mxu0 0.0
    %4517 = vmatpush.msra.mxu0 0.0
    %4518 = vmatpush.msra.mxu0 0.0
    %4519 = vmatpush.msra.mxu0 0.0
    %4520 = vmatpush.msra.mxu0 0.0
    %4521 = vmatpush.msra.mxu0 0.0
    %4522 = vmatpush.msra.mxu0 0.0
    %4523 = vmatpush.msra.mxu0 0.0
    %4524 = vmatpush.msra.mxu0 0.0
    %4525 = vmatpush.msra.mxu0 %v4509
    %4526 = vmatpush.msra.mxu0 %v4497
    %4527 = vmatmul.f32.gmra.mxu0 %v4500
    %v4528 = vpop.f32.mrf.mxu0
    %v4529 = vadd.f32 0.0, %v4528
    %4530 = vmatmul.f32.gmra.mxu0 %v4503
    %v4531 = vpop.f32.mrf.mxu0
    %v4532 = vadd.f32 0.0, %v4531
    %4533 = vmatmul.f32.gmra.mxu0 %v4506
    %v4534 = vpop.f32.mrf.mxu0
    %v4535 = vadd.f32 0.0, %v4534
    %4536 = vdwg.mxu0
    %v4537 = vadd.f32 %v4491, %v4529
    %v4538 = vadd.f32 %v4492, %v4532
    %v4539 = vadd.f32 %v4493, %v4535
    %v4540 = vld [vmem:[%s2434] sm:$0xff]
    %v4541 = vld [vmem:[%s2434 + $0x8] sm:$0xff]
    %v4542 = vld [vmem:[%s2434 + $0x10] sm:$0xf]
    %4544 = vrot.lane.b32.xlu0 %v4497, 64
    %v4545 = vpop.permute.xlu0 %4544
    %4546 = vrot.lane.b32.xlu0 %v4498, 64
    %v4547 = vpop.permute.xlu0 %4546
    %v4550 = vsel %vm1324, %v4540, 0
    %v4553 = vsel %vm1324, %v4541, 0
    %v4556 = vsel %vm1324, %v4542, 0
    %v4558 = vsel %vm1334, %v4547, 0
    %4560 = vmatpush.msra.mxu0 0.0
    %4561 = vmatpush.msra.mxu0 0.0
    %4562 = vmatpush.msra.mxu0 0.0
    %4563 = vmatpush.msra.mxu0 0.0
    %4564 = vmatpush.msra.mxu0 0.0
    %4565 = vmatpush.msra.mxu0 0.0
    %4566 = vmatpush.msra.mxu0 0.0
    %4567 = vmatpush.msra.mxu0 0.0
    %4568 = vmatpush.msra.mxu0 0.0
    %4569 = vmatpush.msra.mxu0 0.0
    %4570 = vmatpush.msra.mxu0 0.0
    %4571 = vmatpush.msra.mxu0 0.0
    %4572 = vmatpush.msra.mxu0 0.0
    %4573 = vmatpush.msra.mxu0 0.0
    %4574 = vmatpush.msra.mxu0 %v4558
    %4575 = vmatpush.msra.mxu0 %v4545
    %4576 = vmatmul.f32.gmra.mxu0 %v4550
    %v4577 = vpop.f32.mrf.mxu0
    %v4578 = vadd.f32 0.0, %v4577
    %4579 = vmatmul.f32.gmra.mxu0 %v4553
    %v4580 = vpop.f32.mrf.mxu0
    %v4581 = vadd.f32 0.0, %v4580
    %4582 = vmatmul.f32.gmra.mxu0 %v4556
    %v4583 = vpop.f32.mrf.mxu0
    %v4584 = vadd.f32 0.0, %v4583
    %4585 = vdwg.mxu0
    %v4586 = vadd.f32 %v4537, %v4578
    %v4587 = vadd.f32 %v4538, %v4581
    %v4588 = vadd.f32 %v4539, %v4584
    %v4589 = vld [vmem:[%s2484] sm:$0xff]
    %v4590 = vld [vmem:[%s2484 + $0x8] sm:$0xff]
    %v4591 = vld [vmem:[%s2484 + $0x10] sm:$0xf]
    %v4592 = vld [vmem:[#allocation3 + $0x60] sm:$0xff]
    %v4593 = vld [vmem:[#allocation3 + $0xc8] sm:$0x3]
    %v4595 = vsel %vm1324, %v4589, 0
    %v4598 = vsel %vm1324, %v4590, 0
    %v4601 = vsel %vm1324, %v4591, 0
    %v4604 = vsel %vm1334, %v4593, 0
    %4606 = vmatpush.msra.mxu0 0.0
    %4607 = vmatpush.msra.mxu0 0.0
    %4608 = vmatpush.msra.mxu0 0.0
    %4609 = vmatpush.msra.mxu0 0.0
    %4610 = vmatpush.msra.mxu0 0.0
    %4611 = vmatpush.msra.mxu0 0.0
    %4612 = vmatpush.msra.mxu0 0.0
    %4613 = vmatpush.msra.mxu0 0.0
    %4614 = vmatpush.msra.mxu0 0.0
    %4615 = vmatpush.msra.mxu0 0.0
    %4616 = vmatpush.msra.mxu0 0.0
    %4617 = vmatpush.msra.mxu0 0.0
    %4618 = vmatpush.msra.mxu0 0.0
    %4619 = vmatpush.msra.mxu0 0.0
    %4620 = vmatpush.msra.mxu0 %v4604
    %4621 = vmatpush.msra.mxu0 %v4592
    %4622 = vmatmul.f32.gmra.mxu0 %v4595
    %v4623 = vpop.f32.mrf.mxu0
    %v4624 = vadd.f32 0.0, %v4623
    %4625 = vmatmul.f32.gmra.mxu0 %v4598
    %v4626 = vpop.f32.mrf.mxu0
    %v4627 = vadd.f32 0.0, %v4626
    %4628 = vmatmul.f32.gmra.mxu0 %v4601
    %v4629 = vpop.f32.mrf.mxu0
    %v4630 = vadd.f32 0.0, %v4629
    %4631 = vdwg.mxu0
    %v4632 = vadd.f32 %v4586, %v4624
    %v4633 = vadd.f32 %v4587, %v4627
    %v4634 = vadd.f32 %v4588, %v4630
    %4635 = vst.msk [vmem:[#allocation4] sm:$0xff] %vm627, %v4632
    %4636 = vst.msk [vmem:[#allocation4 + $0x8] sm:$0xff] %vm627, %v4633
    %4637 = vst.msk [vmem:[#allocation4 + $0x10] sm:$0xf] %vm2533, %v4634
    %v4638 = vld [vmem:[#allocation4] sm:$0xff]
    %v4639 = vld [vmem:[#allocation4 + $0x8] sm:$0xff]
    %v4640 = vld [vmem:[#allocation4 + $0x10] sm:$0xf]
    %4644 = vrot.lane.b32.xlu0 %v4638, 112
    %v4645 = vpop.permute.xlu0 %4644
    %4646 = vrot.lane.b32.xlu0 %v4639, 112
    %v4647 = vpop.permute.xlu0 %4646
    %4648 = vrot.lane.b32.xlu0 %v4640, 112
    %v4649 = vpop.permute.xlu0 %4648
    %v4653 = vmax.f32 %v4638, %v4645
    %v4654 = vmax.f32 %v4639, %v4647
    %v4655 = vmax.f32 %v4640, %v4649
    %4656 = vrot.lane.b32.xlu0 %v4638, 96
    %v4657 = vpop.permute.xlu0 %4656
    %4658 = vrot.lane.b32.xlu0 %v4639, 96
    %v4659 = vpop.permute.xlu0 %4658
    %4660 = vrot.lane.b32.xlu0 %v4640, 96
    %v4661 = vpop.permute.xlu0 %4660
    %v4665 = vmax.f32 %v4653, %v4657
    %v4666 = vmax.f32 %v4654, %v4659
    %v4667 = vmax.f32 %v4655, %v4661
    %4668 = vrot.lane.b32.xlu0 %v4638, 80
    %v4669 = vpop.permute.xlu0 %4668
    %4670 = vrot.lane.b32.xlu0 %v4639, 80
    %v4671 = vpop.permute.xlu0 %4670
    %4672 = vrot.lane.b32.xlu0 %v4640, 80
    %v4673 = vpop.permute.xlu0 %4672
    %v4677 = vmax.f32 %v4665, %v4669
    %v4678 = vmax.f32 %v4666, %v4671
    %v4679 = vmax.f32 %v4667, %v4673
    %v4680 = vmax.f32 %v4677, 0.0
    %v4681 = vmax.f32 %v4678, 0.0
    %v4682 = vmax.f32 %v4679, 0.0
    %4683 = vst.msk [vmem:[#allocation5] sm:$0xff] %vm669, %v4680
    %4684 = vst.msk [vmem:[#allocation5 + $0x8] sm:$0xff] %vm669, %v4681
    %4685 = vst.msk [vmem:[#allocation5 + $0x10] sm:$0xf] %vm2582, %v4682
    %v4686 = vld [vmem:[#allocation5] sm:$0x1]
    %4687 = vst.msk [vmem:[#allocation6 + $0x1] sm:$0x1] %vm2585, %v4686
    %v4688 = vld [vmem:[#allocation5 + $0x1] sm:$0x1]
    %4690 = vrot.lane.b32.xlu0 %v4688, 16
    %v4691 = vpop.permute.xlu0 %4690
    %4693 = vst.msk [vmem:[#allocation6 + $0x1] sm:$0x1] %vm2592, %v4691
    %v4694 = vld [vmem:[#allocation5 + $0x2] sm:$0x1]
    %4696 = vrot.lane.b32.xlu0 %v4694, 32
    %v4697 = vpop.permute.xlu0 %4696
    %4699 = vst.msk [vmem:[#allocation6 + $0x1] sm:$0x1] %vm2599, %v4697
    %v4700 = vld [vmem:[#allocation5 + $0x3] sm:$0x1]
    %4702 = vrot.lane.b32.xlu0 %v4700, 48
    %v4703 = vpop.permute.xlu0 %4702
    %4705 = vst.msk [vmem:[#allocation6 + $0x1] sm:$0x1] %vm2606, %v4703
    %v4706 = vld [vmem:[#allocation5 + $0x4] sm:$0x1]
    %4708 = vrot.lane.b32.xlu0 %v4706, 64
    %v4709 = vpop.permute.xlu0 %4708
    %4711 = vst.msk [vmem:[#allocation6 + $0x1] sm:$0x1] %vm2613, %v4709
    %v4712 = vld [vmem:[#allocation5 + $0x5] sm:$0x1]
    %4714 = vrot.lane.b32.xlu0 %v4712, 80
    %v4715 = vpop.permute.xlu0 %4714
    %4717 = vst.msk [vmem:[#allocation6 + $0x1] sm:$0x1] %vm2620, %v4715
    %v4718 = vld [vmem:[#allocation5 + $0x6] sm:$0x1]
    %4720 = vrot.lane.b32.xlu0 %v4718, 96
    %v4721 = vpop.permute.xlu0 %4720
    %4723 = vst.msk [vmem:[#allocation6 + $0x1] sm:$0x1] %vm2627, %v4721
    %v4724 = vld [vmem:[#allocation5 + $0x7] sm:$0x1]
    %4726 = vrot.lane.b32.xlu0 %v4724, 112
    %v4727 = vpop.permute.xlu0 %4726
    %4729 = vst.msk [vmem:[#allocation6 + $0x1] sm:$0x1] %vm2634, %v4727
    %v4730 = vld [vmem:[#allocation5 + $0x8] sm:$0x1]
    %4731 = vst.msk [vmem:[#allocation6 + $0x3] sm:$0x1] %vm2585, %v4730
    %v4732 = vld [vmem:[#allocation5 + $0x9] sm:$0x1]
    %4734 = vrot.lane.b32.xlu0 %v4732, 16
    %v4735 = vpop.permute.xlu0 %4734
    %4737 = vst.msk [vmem:[#allocation6 + $0x3] sm:$0x1] %vm2592, %v4735
    %v4738 = vld [vmem:[#allocation5 + $0xa] sm:$0x1]
    %4740 = vrot.lane.b32.xlu0 %v4738, 32
    %v4741 = vpop.permute.xlu0 %4740
    %4743 = vst.msk [vmem:[#allocation6 + $0x3] sm:$0x1] %vm2599, %v4741
    %v4744 = vld [vmem:[#allocation5 + $0xb] sm:$0x1]
    %4746 = vrot.lane.b32.xlu0 %v4744, 48
    %v4747 = vpop.permute.xlu0 %4746
    %4749 = vst.msk [vmem:[#allocation6 + $0x3] sm:$0x1] %vm2606, %v4747
    %v4750 = vld [vmem:[#allocation5 + $0xc] sm:$0x1]
    %4752 = vrot.lane.b32.xlu0 %v4750, 64
    %v4753 = vpop.permute.xlu0 %4752
    %4755 = vst.msk [vmem:[#allocation6 + $0x3] sm:$0x1] %vm2613, %v4753
    %v4756 = vld [vmem:[#allocation5 + $0xd] sm:$0x1]
    %4758 = vrot.lane.b32.xlu0 %v4756, 80
    %v4759 = vpop.permute.xlu0 %4758
    %4761 = vst.msk [vmem:[#allocation6 + $0x3] sm:$0x1] %vm2620, %v4759
    %v4762 = vld [vmem:[#allocation5 + $0xe] sm:$0x1]
    %4764 = vrot.lane.b32.xlu0 %v4762, 96
    %v4765 = vpop.permute.xlu0 %4764
    %4767 = vst.msk [vmem:[#allocation6 + $0x3] sm:$0x1] %vm2627, %v4765
    %v4768 = vld [vmem:[#allocation5 + $0xf] sm:$0x1]
    %4770 = vrot.lane.b32.xlu0 %v4768, 112
    %v4771 = vpop.permute.xlu0 %4770
    %4773 = vst.msk [vmem:[#allocation6 + $0x3] sm:$0x1] %vm2634, %v4771
    %v4774 = vld [vmem:[#allocation5 + $0x10] sm:$0x1]
    %4775 = vst.msk [vmem:[#allocation6 + $0x5] sm:$0x1] %vm2585, %v4774
    %v4776 = vld [vmem:[#allocation5 + $0x11] sm:$0x1]
    %4778 = vrot.lane.b32.xlu0 %v4776, 16
    %v4779 = vpop.permute.xlu0 %4778
    %4781 = vst.msk [vmem:[#allocation6 + $0x5] sm:$0x1] %vm2592, %v4779
    %v4782 = vld [vmem:[#allocation5 + $0x12] sm:$0x1]
    %4784 = vrot.lane.b32.xlu0 %v4782, 32
    %v4785 = vpop.permute.xlu0 %4784
    %4787 = vst.msk [vmem:[#allocation6 + $0x5] sm:$0x1] %vm2599, %v4785
    %v4788 = vld [vmem:[#allocation5 + $0x13] sm:$0x1]
    %4790 = vrot.lane.b32.xlu0 %v4788, 48
    %v4791 = vpop.permute.xlu0 %4790
    %4793 = vst.msk [vmem:[#allocation6 + $0x5] sm:$0x1] %vm2606, %v4791
    %v4794 = vld [vmem:[#allocation6] sm:$0x3f]
    %v4795 = vld [vmem:[%s6] sm:$0xff]
    %v4796 = vld [vmem:[%s6 + $0x8] sm:$0xff]
    %v4797 = vld [vmem:[%s6 + $0x10] sm:$0xff]
    %v4798 = vld [vmem:[%s6 + $0x18] sm:$0xff]
    %v4799 = vld [vmem:[%s6 + $0x20] sm:$0xff]
    %v4800 = vld [vmem:[%s6 + $0x28] sm:$0xff]
    %v4801 = vld [vmem:[%s6 + $0x30] sm:$0xff]
    %v4802 = vld [vmem:[%s6 + $0x38] sm:$0xff]
    %v4803 = vld [vmem:[%s6 + $0x40] sm:$0xff]
    %v4804 = vld [vmem:[%s6 + $0x48] sm:$0xff]
    %v4805 = vld [vmem:[%s6 + $0x50] sm:$0xff]
    %v4806 = vld [vmem:[%s6 + $0x58] sm:$0xff]
    %v4807 = vld [vmem:[%s6 + $0x60] sm:$0xff]
    %v4808 = vld [vmem:[%s6 + $0x68] sm:$0xff]
    %v4809 = vld [vmem:[%s6 + $0x70] sm:$0xff]
    %v4810 = vld [vmem:[%s6 + $0x78] sm:$0xff]
    %v4811 = vld [vmem:[%s6 + $0x80] sm:$0xff]
    %v4812 = vld [vmem:[%s6 + $0x88] sm:$0xff]
    %v4813 = vld [vmem:[%s6 + $0x90] sm:$0xff]
    %v4814 = vld [vmem:[%s6 + $0x98] sm:$0xff]
    %v4815 = vld [vmem:[%s6 + $0xa0] sm:$0xff]
    %v4816 = vld [vmem:[%s6 + $0xa8] sm:$0xff]
    %v4817 = vld [vmem:[%s6 + $0xb0] sm:$0xff]
    %v4818 = vld [vmem:[%s6 + $0xb8] sm:$0xff]
    %v4819 = vld [vmem:[%s6 + $0xc0] sm:$0xff]
    %v4820 = vld [vmem:[%s6 + $0xc8] sm:$0xff]
    %v4821 = vld [vmem:[%s6 + $0xd0] sm:$0xff]
    %v4822 = vld [vmem:[%s6 + $0xd8] sm:$0xff]
    %v4823 = vld [vmem:[%s6 + $0xe0] sm:$0xff]
    %v4824 = vld [vmem:[%s6 + $0xe8] sm:$0xff]
    %v4825 = vld [vmem:[%s6 + $0xf0] sm:$0xff]
    %v4826 = vld [vmem:[%s6 + $0xf8] sm:$0xff]
    %v4827 = vld [vmem:[%s6 + $0x100] sm:$0xff]
    %v4828 = vld [vmem:[%s6 + $0x108] sm:$0xff]
    %v4829 = vld [vmem:[%s6 + $0x110] sm:$0xff]
    %v4830 = vld [vmem:[%s6 + $0x118] sm:$0xff]
    %v4831 = vld [vmem:[%s6 + $0x120] sm:$0xff]
    %v4832 = vld [vmem:[%s6 + $0x128] sm:$0xff]
    %v4833 = vld [vmem:[%s6 + $0x130] sm:$0xff]
    %v4834 = vld [vmem:[%s6 + $0x138] sm:$0xff]
    %v4835 = vld [vmem:[%s7] sm:$0x1]
    %v4837 = vperm.slane %v4835, 0
    %4840 = vst [vmem:[#allocation1] ss:$4 sm:$0xff] %v4794
    %v4841 = vld.sshfl [vmem:[#allocation1] sm:$0xff pattern:$0x73625140]
    %v4842 = vld.sshfl [vmem:[#allocation1 + $0x8] sm:$0xff pattern:$0x73625140]
    %v4843 = vld.sshfl [vmem:[#allocation1 + $0x10] sm:$0xff pattern:$0x73625140]
    %v4846 = vsel %vm627, %v4843, 0
    %4848 = vmatpush.msra.mxu0 %v4810
    %4849 = vmatpush.msra.mxu0 %v4809
    %4850 = vmatpush.msra.mxu0 %v4808
    %4851 = vmatpush.msra.mxu0 %v4807
    %4852 = vmatpush.msra.mxu0 %v4806
    %4853 = vmatpush.msra.mxu0 %v4805
    %4854 = vmatpush.msra.mxu0 %v4804
    %4855 = vmatpush.msra.mxu0 %v4803
    %4856 = vmatpush.msra.mxu0 %v4802
    %4857 = vmatpush.msra.mxu0 %v4801
    %4858 = vmatpush.msra.mxu0 %v4800
    %4859 = vmatpush.msra.mxu0 %v4799
    %4860 = vmatpush.msra.mxu0 %v4798
    %4861 = vmatpush.msra.mxu0 %v4797
    %4862 = vmatpush.msra.mxu0 %v4796
    %4863 = vmatpush.msra.mxu0 %v4795
    %4864 = vmatmul.f32.gmra.mxu0 %v4841
    %v4865 = vpop.f32.mrf.mxu0
    %v4866 = vadd.f32 %v4837, %v4865
    %4867 = vdwg.mxu0
    %4868 = vmatpush.msra.mxu0 %v4826
    %4869 = vmatpush.msra.mxu0 %v4825
    %4870 = vmatpush.msra.mxu0 %v4824
    %4871 = vmatpush.msra.mxu0 %v4823
    %4872 = vmatpush.msra.mxu0 %v4822
    %4873 = vmatpush.msra.mxu0 %v4821
    %4874 = vmatpush.msra.mxu0 %v4820
    %4875 = vmatpush.msra.mxu0 %v4819
    %4876 = vmatpush.msra.mxu0 %v4818
    %4877 = vmatpush.msra.mxu0 %v4817
    %4878 = vmatpush.msra.mxu0 %v4816
    %4879 = vmatpush.msra.mxu0 %v4815
    %4880 = vmatpush.msra.mxu0 %v4814
    %4881 = vmatpush.msra.mxu0 %v4813
    %4882 = vmatpush.msra.mxu0 %v4812
    %4883 = vmatpush.msra.mxu0 %v4811
    %4884 = vmatmul.f32.gmra.mxu0 %v4842
    %v4885 = vpop.f32.mrf.mxu0
    %v4886 = vadd.f32 %v4866, %v4885
    %4887 = vdwg.mxu0
    %4888 = vmatpush.msra.mxu0 0.0
    %4889 = vmatpush.msra.mxu0 0.0
    %4890 = vmatpush.msra.mxu0 0.0
    %4891 = vmatpush.msra.mxu0 0.0
    %4892 = vmatpush.msra.mxu0 0.0
    %4893 = vmatpush.msra.mxu0 0.0
    %4894 = vmatpush.msra.mxu0 0.0
    %4895 = vmatpush.msra.mxu0 0.0
    %4896 = vmatpush.msra.mxu0 %v4834
    %4897 = vmatpush.msra.mxu0 %v4833
    %4898 = vmatpush.msra.mxu0 %v4832
    %4899 = vmatpush.msra.mxu0 %v4831
    %4900 = vmatpush.msra.mxu0 %v4830
    %4901 = vmatpush.msra.mxu0 %v4829
    %4902 = vmatpush.msra.mxu0 %v4828
    %4903 = vmatpush.msra.mxu0 %v4827
    %4904 = vmatmul.f32.gmra.mxu0 %v4846
    %v4905 = vpop.f32.mrf.mxu0
    %v4906 = vadd.f32 %v4886, %v4905
    %4907 = vdwg.mxu0
    %v4908 = vmax.f32 %v4906, 0.0
    %v4909 = vld [vmem:[%s8] sm:$0xff]
    %v4910 = vld [vmem:[%s8 + $0x8] sm:$0xff]
    %v4911 = vld [vmem:[%s8 + $0x10] sm:$0xff]
    %v4912 = vld [vmem:[%s8 + $0x18] sm:$0xff]
    %v4913 = vld [vmem:[%s8 + $0x20] sm:$0xff]
    %v4914 = vld [vmem:[%s8 + $0x28] sm:$0xff]
    %v4915 = vld [vmem:[%s8 + $0x30] sm:$0x3]
    %v4916 = vld [vmem:[%s9] sm:$0x1]
    %v4918 = vperm.slane %v4916, 0
    %vm4920 = vcmask 408576
    %v4922 = vsel %vm4920, %v4908, 0
    %v4925 = vsel %vm1334, %v4915, 0
    %4927 = vmatpush.msra.mxu0 0.0
    %4928 = vmatpush.msra.mxu0 0.0
    %4929 = vmatpush.msra.mxu0 0.0
    %4930 = vmatpush.msra.mxu0 0.0
    %4931 = vmatpush.msra.mxu0 0.0
    %4932 = vmatpush.msra.mxu0 0.0
    %4933 = vmatpush.msra.mxu0 0.0
    %4934 = vmatpush.msra.mxu0 0.0
    %4935 = vmatpush.msra.mxu0 0.0
    %4936 = vmatpush.msra.mxu0 %v4925
    %4937 = vmatpush.msra.mxu0 %v4914
    %4938 = vmatpush.msra.mxu0 %v4913
    %4939 = vmatpush.msra.mxu0 %v4912
    %4940 = vmatpush.msra.mxu0 %v4911
    %4941 = vmatpush.msra.mxu0 %v4910
    %4942 = vmatpush.msra.mxu0 %v4909
    %4943 = vmatmul.f32.gmra.mxu0 %v4922
    %v4944 = vpop.f32.mrf.mxu0
    %v4945 = vadd.f32 %v4918, %v4944
    %4946 = vdwg.mxu0
    %vm4947 = vcmask 74752
    %v4948 = vsel %vm4947, %v4945, -inf
    %4949 = vmax.xlane.f32.xlu0 %v4948
    %v4950 = vpop.xlane.xlu0 %4949
    %v4951 = vsub.f32 %v4945, %v4950
    %v4952 = vmul.f32 %v4951, 1.442695
    %v4953 = vpow.pop %v4952
    %v4954 = vsel %vm4947, %v4953, 0.0
    %4955 = vadd.xlane.f32.xlu0 %v4954
    %v4956 = vpop.xlane.xlu0 %4955
    %v4957 = vrcp.pop %v4956
    %v4958 = vmul.f32 %v4953, %v4957
    %v4959 = vsel %vm4947, %v4958, -inf
    %4960 = vmax.xlane.f32.xlu0 %v4959
    %v4961 = vpop.xlane.xlu0 %4960
    %v4962 = vsub.f32 %v4958, %v4961
    %v4963 = vmul.f32 %v4962, 1.442695
    %v4964 = vpow.pop %v4963
    %v4965 = vsel %vm4947, %v4964, 0.0
    %4966 = vadd.xlane.f32.xlu0 %v4965
    %v4967 = vpop.xlane.xlu0 %4966
    %v4968 = vlog2.pop %v4967
    %v4969 = vmul.f32 %v4968, 0.6931472
    %v4970 = vsub.f32 %v4962, %v4969
    %4971 = vst.msk [vmem:[#allocation7] sm:$0x3] %vm4947, %v4970
    // Predicated region
    $region42: #{cnn_soft_forward.1} parent=1 // pred_check
      _
    $region43: #{cnn_soft_forward.1} parent=1 // pred_check_branch
      %4973 = sbr.rel (0) target = $region45
    $region44: #{cnn_soft_forward.1} parent=1 // pred_region
      %4975 = vsyncadd [#allocation8], 0
      %s4977 = sshll.u32 [#allocation7], 4
      %s4978 = int_to_ptr.vmem [resolvable:$true] %s4977
      %s4979 = sshll.u32 %s10, 4
      %s4980 = int_to_ptr.hbm [resolvable:$true] %s4979
      %4982 = dma.vmem_to_hbm [thread:$0]  %s4978, 32, %s4980, [#allocation8]
    $region45: #{cnn_soft_forward.1} parent=1 // pred_fallthru
      _
    // Predicated region
    $region46: #{cnn_soft_forward.1} parent=1 // pred_check
      _
    $region47: #{cnn_soft_forward.1} parent=1 // pred_check_branch
      %4984 = sbr.rel (0) target = $region49
    $region48: #{cnn_soft_forward.1} parent=1 // pred_region
      %4986 = dma.done [#allocation8], 32
    $region49: #{cnn_soft_forward.1} parent=1 // pred_fallthru
      _
    %4987 = vsyncpa [#allocation8], 1

</llo_original>
